<compile_context>
chip_gen: v7x
topology: tpu7x:2x2x1
jax: 0.10.0
libtpu: 0.0.40
codegen_flags: <defaults>
</compile_context>

<pallas_src>
import functools

import jax
import jax.numpy as jnp
from jax import lax
from jax.experimental import pallas as pl
from jax.experimental.pallas import tpu as pltpu

LANE = 128


def _round_up(x, m):
    return (x + m - 1) // m * m


def _pick_row_tile(H):
    """Largest row tile in (32, 16, 8) that strictly tiles H; else whole image."""
    for d in (32, 16, 8):
        if H % d == 0 and d < H:
            return d
    return H


# ---------------------------------------------------------------------------
# Pallas kernel: fused (2x nearest upsample -> 3x3 conv, padding=1)
# ---------------------------------------------------------------------------
def _upsample_conv_kernel(x_ref, w_ref, b_ref, o_ref, x9_ref, *, TH, W, Cin, Cout):
    """Grid = (batch, row_tile).

    x_ref  : (1, H+2, Wp, Cin)      bf16  zero-padded low-res NHWC input (resident)
    w_ref  : (8, 2*Cin, Cout)       bf16  folded+packed weights, idx = (a*2+b)*2+p
    b_ref  : (1, Cout)              f32   conv bias
    o_ref  : (1, TH, 2, W, 2*Cout)  bf16  o[0,y,a,x,b*Cout+c] == y_up[2*(h*TH+y)+a, 2x+b, c]
    x9_ref : (TH*W, 9*Cin)          bf16  scratch: the 9 shifted windows, block k = r*3+c
    """
    h = pl.program_id(1)
    r0 = h * TH
    if TH % 8 == 0:
        r0 = pl.multiple_of(r0, 8)

    # --- materialize the 9 distinct (row, col)-shifted windows exactly once --
    for r in range(3):
        for c in range(3):
            win = x_ref[0, pl.ds(r0 + r, TH), c:c + W, :]          # (TH, W, Cin)
            k = r * 3 + c
            x9_ref[:, k * Cin:(k + 1) * Cin] = win.reshape(TH * W, Cin)

    bias = b_ref[...]                                              # (1, Cout) f32

    # --- 4 output parities; two deep (K = 2*Cin) matmuls each, one accumulator
    for a in range(2):            # output row parity
        for b in range(2):        # output col parity
            acc = jnp.zeros((TH * W, Cout), jnp.float32)
            for p in range(2):    # low-res row tap
                # operand = windows (row a+p, cols b and b+1) -> contiguous slice
                s = ((a + p) * 3 + b) * Cin
                acc = acc + jnp.dot(x9_ref[:, s:s + 2 * Cin],
                                    w_ref[(a * 2 + b) * 2 + p],
                                    preferred_element_type=jnp.float32)
            res = (acc + bias).astype(o_ref.dtype).reshape(TH, W, Cout)
            # Column parity b lives in the lane axis (contiguous 128-lane range):
            # (H,2,W,2*Cout) is bit-identical to dense NHWC (2H,2W,Cout).
            o_ref[0, :, a, :, b * Cout:(b + 1) * Cout] = res


# ---------------------------------------------------------------------------
# Parameter folding (done ONCE, outside the jitted forward)
# ---------------------------------------------------------------------------
def prepare_upsample_params(w, bias):
    """Fold the 2x-nearest upsample into per-parity 2x2 weights, pack the two
    column taps along K, pad channels to lane multiples, cast to bf16 (once).

    w    : (Cout, Cin, 3, 3) torch Conv2d layout, float32
    bias : (Cout,) float32
    """
    Cout, Cin = w.shape[0], w.shape[1]
    Cip, Cop = _round_up(Cin, LANE), _round_up(Cout, LANE)
    w = jnp.pad(w, ((0, Cop - Cout), (0, Cip - Cin), (0, 0), (0, 0)))
    bias = jnp.pad(bias, ((0, Cop - Cout),))
    w_hwio = jnp.transpose(w, (2, 3, 1, 0))                       # (3, 3, Cip, Cop)
    # Row/col tap-collapse matrices R[a, p, ki]:
    #   a=0: p=0 <- ki=0,      p=1 <- ki=1,2
    #   a=1: p=0 <- ki=0,1,    p=1 <- ki=2
    R = jnp.array([[[1., 0., 0.], [0., 1., 1.]],
                   [[1., 1., 0.], [0., 0., 1.]]], jnp.float32)
    w_eff = jnp.einsum('apk,bql,klio->abpqio', R, R, w_hwio)      # (2,2,2,2,Cip,Cop)
    # Merge (a,b,p) -> 8 and (q, i) -> 2*Cip (q major), matching the in-kernel
    # operand layout [window col b (q=0) ; window col b+1 (q=1)].
    w_pack = w_eff.reshape(8, 2 * Cip, Cop).astype(jnp.bfloat16)
    return {'w_pack': w_pack, 'bias': bias.reshape(1, Cop).astype(jnp.float32)}


# ---------------------------------------------------------------------------
# Forward pass (matches PyTorch Upsample.forward for dims=2)
# ---------------------------------------------------------------------------
def upsample_forward(params, x_nchw, *, cout, use_conv=True, out_dtype=jnp.bfloat16):
    N, C, H, W = x_nchw.shape
    if not use_conv:
        # Pure data movement (no compute): plain nearest 2x upsample.
        return jnp.repeat(jnp.repeat(x_nchw, 2, axis=2), 2, axis=3)
    # TODO(synk): dims=3 (5-D NCDHW, depth kept) interpolate branch not implemented.

    w_pack, bias = params['w_pack'], params['bias']
    Cip, Cop = w_pack.shape[1] // 2, w_pack.shape[2]

    # Cast to bf16 BEFORE the layout change (halves the pre-pass bytes); pad
    # rows/cols by 1 (halo) and round padded width up to a multiple of 8.
    Wp = _round_up(W + 2, 8)
    x = jnp.transpose(x_nchw.astype(jnp.bfloat16), (0, 2, 3, 1))   # NCHW -> NHWC
    xpad = jnp.pad(x, ((0, 0), (1, 1), (1, Wp - W - 1), (0, Cip - C)))

    TH = _pick_row_tile(H)
    # TODO(synk): for very large H*W*C, slab the *input* rows too (manual halo
    # DMA) instead of keeping the whole padded low-res image resident.
    kern = functools.partial(_upsample_conv_kernel, TH=TH, W=W, Cin=Cip, Cout=Cop)
    out = pl.pallas_call(
        kern,
        # (N, H, 2, W, 2*Cop) is bit-identical to dense NHWC (N, 2H, 2W, Cop):
        # row = 2y+a, col = 2x+b, so the epilogue reshape below is free.
        out_shape=jax.ShapeDtypeStruct((N, H, 2, W, 2 * Cop), jnp.bfloat16),
        grid=(N, H // TH),
        in_specs=[
            # Padded low-res input stays resident across the row-tile axis.
            pl.BlockSpec((1, H + 2, Wp, Cip), lambda n, h: (n, 0, 0, 0)),
            # TODO(synk): single-buffer this constant-index weight block
            # (pipeline_mode=pl.Buffered(1)) to reclaim VMEM at 512+ channels.
            pl.BlockSpec((8, 2 * Cip, Cop), lambda n, h: (0, 0, 0)),
            pl.BlockSpec((1, Cop), lambda n, h: (0, 0)),
        ],
        out_specs=pl.BlockSpec((1, TH, 2, W, 2 * Cop), lambda n, h: (n, h, 0, 0, 0)),
        scratch_shapes=[pltpu.VMEM((TH * W, 9 * Cip), jnp.bfloat16)],
        compiler_params=pltpu.CompilerParams(
            dimension_semantics=("parallel", "parallel"),
            vmem_limit_bytes=48 * 1024 * 1024),
    )(xpad, w_pack, bias)

    # Free reshape to dense NHWC, then ONE plain NHWC->NCHW relayout whose
    # source minor dim is the 128-lane channel axis.
    out = out.reshape(N, 2 * H, 2 * W, Cop)
    out = jnp.transpose(out, (0, 3, 1, 2))[:, :cout]
    return out.astype(out_dtype)


# ---------------------------------------------------------------------------
# f32 reference (exactly the PyTorch semantics) for a sanity check
# ---------------------------------------------------------------------------
def upsample_reference(x, w, bias):
    up = jnp.repeat(jnp.repeat(x, 2, axis=2), 2, axis=3)           # nearest 2x
    y = lax.conv_general_dilated(
        up, w, window_strides=(1, 1), padding=((1, 1), (1, 1)),
        dimension_numbers=('NCHW', 'OIHW', 'NCHW'),
        precision=lax.Precision.HIGHEST)
    return y + bias.reshape(1, -1, 1, 1)


if __name__ == "__main__":
    key = jax.random.PRNGKey(0)
    k1, k2, k3 = jax.random.split(key, 3)

    N, C, H, W = 2, 128, 16, 16                                    # lane-dense channels
    x = jax.random.normal(k1, (N, C, H, W), jnp.float32)
    w = jax.random.normal(k2, (C, C, 3, 3), jnp.float32) / (9 * C) ** 0.5
    bias = 0.1 * jax.random.normal(k3, (C,), jnp.float32)

    params = prepare_upsample_params(w, bias)                      # fold + bf16 cast once
    fwd = jax.jit(upsample_forward, static_argnames=("cout", "use_conv", "out_dtype"))
    out = jax.block_until_ready(fwd(params, x, cout=C))

    assert out.shape == (N, C, 2 * H, 2 * W), out.shape
    out_f32 = out.astype(jnp.float32)
    assert bool(jnp.all(jnp.isfinite(out_f32)))

    ref = upsample_reference(x, w, bias)
    max_ref = float(jnp.max(jnp.abs(ref)))
    max_err = float(jnp.max(jnp.abs(out_f32 - ref)))
    rel = max_err / max(max_ref, 1e-6)
    assert rel < 5e-2, f"relative error too large: max_err={max_err}, max_ref={max_ref}"

    print("KERNEL_OK")
</pallas_src>

<mosaic_0001>
module attributes {stable_mosaic.version = 11 : i64} {
  func.func @_upsample_conv_kernel(%arg0: i32, %arg1: i32, %arg2: memref<1x18x24x128xbf16, #tpu.memory_space<vmem>>, %arg3: memref<8x256x128xbf16, #tpu.memory_space<vmem>>, %arg4: memref<1x128xf32, #tpu.memory_space<vmem>>, %arg5: memref<1x8x2x16x256xbf16, #tpu.memory_space<vmem>>, %arg6: memref<128x1152xbf16, #tpu.memory_space<vmem>>) attributes {dimension_semantics = [#tpu.dimension_semantics<parallel>, #tpu.dimension_semantics<parallel>], iteration_bounds = array<i64: 2, 2>, scalar_prefetch = 0 : i64, scratch_operands = 1 : i64, tpu.core_type = #tpu.core_type<tc>, window_params = [{transform_indices = @transform_0, window_bounds = array<i64: 1, 18, 24, 128>}, {pipeline_mode = #tpu.pipeline_mode<synchronous>, transform_indices = @transform_1, window_bounds = array<i64: 8, 256, 128>}, {pipeline_mode = #tpu.pipeline_mode<synchronous>, transform_indices = @transform_2, window_bounds = array<i64: 1, 128>}, {transform_indices = @transform_3, window_bounds = array<i64: 1, 8, 2, 16, 256>}]} {
    %c8_i32 = arith.constant 8 : i32
    %0 = arith.muli %arg1, %c8_i32 : i32
    %1 = tpu.assume_multiple %0, 8 : i32
    %c0_i32 = arith.constant 0 : i32
    %2 = arith.addi %1, %c0_i32 : i32
    %c0 = arith.constant 0 : index
    %3 = arith.index_cast %2 : i32 to index
    %c0_0 = arith.constant 0 : index
    %c0_1 = arith.constant 0 : index
    %4 = vector.load %arg2[%c0, %3, %c0_0, %c0_1] : memref<1x18x24x128xbf16, #tpu.memory_space<vmem>>, vector<1x8x16x128xbf16>
    %5 = vector.shape_cast %4 : vector<1x8x16x128xbf16> to vector<8x16x128xbf16>
    %6 = vector.shape_cast %5 : vector<8x16x128xbf16> to vector<128x128xbf16>
    %c0_2 = arith.constant 0 : index
    %c0_3 = arith.constant 0 : index
    %7 = vector.load %arg6[%c0_2, %c0_3] : memref<128x1152xbf16, #tpu.memory_space<vmem>>, vector<128x128xbf16>
    tpu.vector_store %arg6[%c0_2, %c0_3], %6 {strides = array<i32>} : memref<128x1152xbf16, #tpu.memory_space<vmem>>, vector<128x128xbf16>,
    %c0_i32_4 = arith.constant 0 : i32
    %8 = arith.addi %1, %c0_i32_4 : i32
    %c0_5 = arith.constant 0 : index
    %9 = arith.index_cast %8 : i32 to index
    %c1 = arith.constant 1 : index
    %c0_6 = arith.constant 0 : index
    %10 = vector.load %arg2[%c0_5, %9, %c1, %c0_6] : memref<1x18x24x128xbf16, #tpu.memory_space<vmem>>, vector<1x8x16x128xbf16>
    %11 = vector.shape_cast %10 : vector<1x8x16x128xbf16> to vector<8x16x128xbf16>
    %12 = vector.shape_cast %11 : vector<8x16x128xbf16> to vector<128x128xbf16>
    %c0_7 = arith.constant 0 : index
    %c128 = arith.constant 128 : index
    %13 = vector.load %arg6[%c0_7, %c128] : memref<128x1152xbf16, #tpu.memory_space<vmem>>, vector<128x128xbf16>
    tpu.vector_store %arg6[%c0_7, %c128], %12 {strides = array<i32>} : memref<128x1152xbf16, #tpu.memory_space<vmem>>, vector<128x128xbf16>,
    %c0_i32_8 = arith.constant 0 : i32
    %14 = arith.addi %1, %c0_i32_8 : i32
    %c0_9 = arith.constant 0 : index
    %15 = arith.index_cast %14 : i32 to index
    %c2 = arith.constant 2 : index
    %c0_10 = arith.constant 0 : index
    %16 = vector.load %arg2[%c0_9, %15, %c2, %c0_10] : memref<1x18x24x128xbf16, #tpu.memory_space<vmem>>, vector<1x8x16x128xbf16>
    %17 = vector.shape_cast %16 : vector<1x8x16x128xbf16> to vector<8x16x128xbf16>
    %18 = vector.shape_cast %17 : vector<8x16x128xbf16> to vector<128x128xbf16>
    %c0_11 = arith.constant 0 : index
    %c256 = arith.constant 256 : index
    %19 = vector.load %arg6[%c0_11, %c256] : memref<128x1152xbf16, #tpu.memory_space<vmem>>, vector<128x128xbf16>
    tpu.vector_store %arg6[%c0_11, %c256], %18 {strides = array<i32>} : memref<128x1152xbf16, #tpu.memory_space<vmem>>, vector<128x128xbf16>,
    %c1_i32 = arith.constant 1 : i32
    %20 = arith.addi %1, %c1_i32 : i32
    %c0_12 = arith.constant 0 : index
    %21 = arith.index_cast %20 : i32 to index
    %c0_13 = arith.constant 0 : index
    %c0_14 = arith.constant 0 : index
    %22 = vector.load %arg2[%c0_12, %21, %c0_13, %c0_14] : memref<1x18x24x128xbf16, #tpu.memory_space<vmem>>, vector<1x8x16x128xbf16>
    %23 = vector.shape_cast %22 : vector<1x8x16x128xbf16> to vector<8x16x128xbf16>
    %24 = vector.shape_cast %23 : vector<8x16x128xbf16> to vector<128x128xbf16>
    %c0_15 = arith.constant 0 : index
    %c384 = arith.constant 384 : index
    %25 = vector.load %arg6[%c0_15, %c384] : memref<128x1152xbf16, #tpu.memory_space<vmem>>, vector<128x128xbf16>
    tpu.vector_store %arg6[%c0_15, %c384], %24 {strides = array<i32>} : memref<128x1152xbf16, #tpu.memory_space<vmem>>, vector<128x128xbf16>,
    %c1_i32_16 = arith.constant 1 : i32
    %26 = arith.addi %1, %c1_i32_16 : i32
    %c0_17 = arith.constant 0 : index
    %27 = arith.index_cast %26 : i32 to index
    %c1_18 = arith.constant 1 : index
    %c0_19 = arith.constant 0 : index
    %28 = vector.load %arg2[%c0_17, %27, %c1_18, %c0_19] : memref<1x18x24x128xbf16, #tpu.memory_space<vmem>>, vector<1x8x16x128xbf16>
    %29 = vector.shape_cast %28 : vector<1x8x16x128xbf16> to vector<8x16x128xbf16>
    %30 = vector.shape_cast %29 : vector<8x16x128xbf16> to vector<128x128xbf16>
    %c0_20 = arith.constant 0 : index
    %c512 = arith.constant 512 : index
    %31 = vector.load %arg6[%c0_20, %c512] : memref<128x1152xbf16, #tpu.memory_space<vmem>>, vector<128x128xbf16>
    tpu.vector_store %arg6[%c0_20, %c512], %30 {strides = array<i32>} : memref<128x1152xbf16, #tpu.memory_space<vmem>>, vector<128x128xbf16>,
    %c1_i32_21 = arith.constant 1 : i32
    %32 = arith.addi %1, %c1_i32_21 : i32
    %c0_22 = arith.constant 0 : index
    %33 = arith.index_cast %32 : i32 to index
    %c2_23 = arith.constant 2 : index
    %c0_24 = arith.constant 0 : index
    %34 = vector.load %arg2[%c0_22, %33, %c2_23, %c0_24] : memref<1x18x24x128xbf16, #tpu.memory_space<vmem>>, vector<1x8x16x128xbf16>
    %35 = vector.shape_cast %34 : vector<1x8x16x128xbf16> to vector<8x16x128xbf16>
    %36 = vector.shape_cast %35 : vector<8x16x128xbf16> to vector<128x128xbf16>
    %c0_25 = arith.constant 0 : index
    %c640 = arith.constant 640 : index
    %37 = vector.load %arg6[%c0_25, %c640] : memref<128x1152xbf16, #tpu.memory_space<vmem>>, vector<128x128xbf16>
    tpu.vector_store %arg6[%c0_25, %c640], %36 {strides = array<i32>} : memref<128x1152xbf16, #tpu.memory_space<vmem>>, vector<128x128xbf16>,
    %c2_i32 = arith.constant 2 : i32
    %38 = arith.addi %1, %c2_i32 : i32
    %c0_26 = arith.constant 0 : index
    %39 = arith.index_cast %38 : i32 to index
    %c0_27 = arith.constant 0 : index
    %c0_28 = arith.constant 0 : index
    %40 = vector.load %arg2[%c0_26, %39, %c0_27, %c0_28] : memref<1x18x24x128xbf16, #tpu.memory_space<vmem>>, vector<1x8x16x128xbf16>
    %41 = vector.shape_cast %40 : vector<1x8x16x128xbf16> to vector<8x16x128xbf16>
    %42 = vector.shape_cast %41 : vector<8x16x128xbf16> to vector<128x128xbf16>
    %c0_29 = arith.constant 0 : index
    %c768 = arith.constant 768 : index
    %43 = vector.load %arg6[%c0_29, %c768] : memref<128x1152xbf16, #tpu.memory_space<vmem>>, vector<128x128xbf16>
    tpu.vector_store %arg6[%c0_29, %c768], %42 {strides = array<i32>} : memref<128x1152xbf16, #tpu.memory_space<vmem>>, vector<128x128xbf16>,
    %c2_i32_30 = arith.constant 2 : i32
    %44 = arith.addi %1, %c2_i32_30 : i32
    %c0_31 = arith.constant 0 : index
    %45 = arith.index_cast %44 : i32 to index
    %c1_32 = arith.constant 1 : index
    %c0_33 = arith.constant 0 : index
    %46 = vector.load %arg2[%c0_31, %45, %c1_32, %c0_33] : memref<1x18x24x128xbf16, #tpu.memory_space<vmem>>, vector<1x8x16x128xbf16>
    %47 = vector.shape_cast %46 : vector<1x8x16x128xbf16> to vector<8x16x128xbf16>
    %48 = vector.shape_cast %47 : vector<8x16x128xbf16> to vector<128x128xbf16>
    %c0_34 = arith.constant 0 : index
    %c896 = arith.constant 896 : index
    %49 = vector.load %arg6[%c0_34, %c896] : memref<128x1152xbf16, #tpu.memory_space<vmem>>, vector<128x128xbf16>
    tpu.vector_store %arg6[%c0_34, %c896], %48 {strides = array<i32>} : memref<128x1152xbf16, #tpu.memory_space<vmem>>, vector<128x128xbf16>,
    %c2_i32_35 = arith.constant 2 : i32
    %50 = arith.addi %1, %c2_i32_35 : i32
    %c0_36 = arith.constant 0 : index
    %51 = arith.index_cast %50 : i32 to index
    %c2_37 = arith.constant 2 : index
    %c0_38 = arith.constant 0 : index
    %52 = vector.load %arg2[%c0_36, %51, %c2_37, %c0_38] : memref<1x18x24x128xbf16, #tpu.memory_space<vmem>>, vector<1x8x16x128xbf16>
    %53 = vector.shape_cast %52 : vector<1x8x16x128xbf16> to vector<8x16x128xbf16>
    %54 = vector.shape_cast %53 : vector<8x16x128xbf16> to vector<128x128xbf16>
    %c0_39 = arith.constant 0 : index
    %c1024 = arith.constant 1024 : index
    %55 = vector.load %arg6[%c0_39, %c1024] : memref<128x1152xbf16, #tpu.memory_space<vmem>>, vector<128x128xbf16>
    tpu.vector_store %arg6[%c0_39, %c1024], %54 {strides = array<i32>} : memref<128x1152xbf16, #tpu.memory_space<vmem>>, vector<128x128xbf16>,
    %c0_40 = arith.constant 0 : index
    %c0_41 = arith.constant 0 : index
    %56 = vector.load %arg4[%c0_40, %c0_41] : memref<1x128xf32, #tpu.memory_space<vmem>>, vector<1x128xf32>
    %cst = arith.constant 0.000000e+00 : f32
    %57 = vector.broadcast %cst : f32 to vector<128x128xf32>
    %c0_42 = arith.constant 0 : index
    %c0_43 = arith.constant 0 : index
    %58 = vector.load %arg6[%c0_42, %c0_43] : memref<128x1152xbf16, #tpu.memory_space<vmem>>, vector<128x256xbf16>
    %c0_44 = arith.constant 0 : index
    %c0_45 = arith.constant 0 : index
    %c0_46 = arith.constant 0 : index
    %59 = vector.load %arg3[%c0_44, %c0_45, %c0_46] : memref<8x256x128xbf16, #tpu.memory_space<vmem>>, vector<1x256x128xbf16>
    %60 = vector.shape_cast %59 : vector<1x256x128xbf16> to vector<256x128xbf16>
    %cst_47 = arith.constant dense<0.000000e+00> : vector<128x128xf32>
    %61 = tpu.matmul %58, %60, %cst_47 {dimension_numbers = #tpu.dot_dimension_numbers<[1], [0], [0], [1], [0, 0, 1, 1], [], []>} : vector<128x256xbf16>, vector<256x128xbf16>, vector<128x128xf32> -> vector<128x128xf32>
    %62 = arith.addf %57, %61 : vector<128x128xf32>
    %c0_48 = arith.constant 0 : index
    %c384_49 = arith.constant 384 : index
    %63 = vector.load %arg6[%c0_48, %c384_49] : memref<128x1152xbf16, #tpu.memory_space<vmem>>, vector<128x256xbf16>
    %c1_50 = arith.constant 1 : index
    %c0_51 = arith.constant 0 : index
    %c0_52 = arith.constant 0 : index
    %64 = vector.load %arg3[%c1_50, %c0_51, %c0_52] : memref<8x256x128xbf16, #tpu.memory_space<vmem>>, vector<1x256x128xbf16>
    %65 = vector.shape_cast %64 : vector<1x256x128xbf16> to vector<256x128xbf16>
    %cst_53 = arith.constant dense<0.000000e+00> : vector<128x128xf32>
    %66 = tpu.matmul %63, %65, %cst_53 {dimension_numbers = #tpu.dot_dimension_numbers<[1], [0], [0], [1], [0, 0, 1, 1], [], []>} : vector<128x256xbf16>, vector<256x128xbf16>, vector<128x128xf32> -> vector<128x128xf32>
    %67 = arith.addf %62, %66 : vector<128x128xf32>
    %68 = vector.broadcast %56 : vector<1x128xf32> to vector<128x128xf32>
    %69 = arith.addf %67, %68 : vector<128x128xf32>
    %70 = arith.truncf %69 : vector<128x128xf32> to vector<128x128xbf16>
    %71 = vector.shape_cast %70 : vector<128x128xbf16> to vector<8x16x128xbf16>
    %c0_54 = arith.constant 0 : index
    %c0_55 = arith.constant 0 : index
    %c0_56 = arith.constant 0 : index
    %c0_57 = arith.constant 0 : index
    %c0_58 = arith.constant 0 : index
    %72 = vector.load %arg5[%c0_54, %c0_55, %c0_56, %c0_57, %c0_58] : memref<1x8x2x16x256xbf16, #tpu.memory_space<vmem>>, vector<1x8x1x16x128xbf16>
    %73 = vector.shape_cast %72 : vector<1x8x1x16x128xbf16> to vector<8x16x128xbf16>
    %74 = vector.shape_cast %71 : vector<8x16x128xbf16> to vector<1x8x1x16x128xbf16>
    tpu.vector_store %arg5[%c0_54, %c0_55, %c0_56, %c0_57, %c0_58], %74 {strides = array<i32>} : memref<1x8x2x16x256xbf16, #tpu.memory_space<vmem>>, vector<1x8x1x16x128xbf16>,
    %cst_59 = arith.constant 0.000000e+00 : f32
    %75 = vector.broadcast %cst_59 : f32 to vector<128x128xf32>
    %c0_60 = arith.constant 0 : index
    %c128_61 = arith.constant 128 : index
    %76 = vector.load %arg6[%c0_60, %c128_61] : memref<128x1152xbf16, #tpu.memory_space<vmem>>, vector<128x256xbf16>
    %c2_62 = arith.constant 2 : index
    %c0_63 = arith.constant 0 : index
    %c0_64 = arith.constant 0 : index
    %77 = vector.load %arg3[%c2_62, %c0_63, %c0_64] : memref<8x256x128xbf16, #tpu.memory_space<vmem>>, vector<1x256x128xbf16>
    %78 = vector.shape_cast %77 : vector<1x256x128xbf16> to vector<256x128xbf16>
    %cst_65 = arith.constant dense<0.000000e+00> : vector<128x128xf32>
    %79 = tpu.matmul %76, %78, %cst_65 {dimension_numbers = #tpu.dot_dimension_numbers<[1], [0], [0], [1], [0, 0, 1, 1], [], []>} : vector<128x256xbf16>, vector<256x128xbf16>, vector<128x128xf32> -> vector<128x128xf32>
    %80 = arith.addf %75, %79 : vector<128x128xf32>
    %c0_66 = arith.constant 0 : index
    %c512_67 = arith.constant 512 : index
    %81 = vector.load %arg6[%c0_66, %c512_67] : memref<128x1152xbf16, #tpu.memory_space<vmem>>, vector<128x256xbf16>
    %c3 = arith.constant 3 : index
    %c0_68 = arith.constant 0 : index
    %c0_69 = arith.constant 0 : index
    %82 = vector.load %arg3[%c3, %c0_68, %c0_69] : memref<8x256x128xbf16, #tpu.memory_space<vmem>>, vector<1x256x128xbf16>
    %83 = vector.shape_cast %82 : vector<1x256x128xbf16> to vector<256x128xbf16>
    %cst_70 = arith.constant dense<0.000000e+00> : vector<128x128xf32>
    %84 = tpu.matmul %81, %83, %cst_70 {dimension_numbers = #tpu.dot_dimension_numbers<[1], [0], [0], [1], [0, 0, 1, 1], [], []>} : vector<128x256xbf16>, vector<256x128xbf16>, vector<128x128xf32> -> vector<128x128xf32>
    %85 = arith.addf %80, %84 : vector<128x128xf32>
    %86 = vector.broadcast %56 : vector<1x128xf32> to vector<128x128xf32>
    %87 = arith.addf %85, %86 : vector<128x128xf32>
    %88 = arith.truncf %87 : vector<128x128xf32> to vector<128x128xbf16>
    %89 = vector.shape_cast %88 : vector<128x128xbf16> to vector<8x16x128xbf16>
    %c0_71 = arith.constant 0 : index
    %c0_72 = arith.constant 0 : index
    %c0_73 = arith.constant 0 : index
    %c0_74 = arith.constant 0 : index
    %c128_75 = arith.constant 128 : index
    %90 = vector.load %arg5[%c0_71, %c0_72, %c0_73, %c0_74, %c128_75] : memref<1x8x2x16x256xbf16, #tpu.memory_space<vmem>>, vector<1x8x1x16x128xbf16>
    %91 = vector.shape_cast %90 : vector<1x8x1x16x128xbf16> to vector<8x16x128xbf16>
    %92 = vector.shape_cast %89 : vector<8x16x128xbf16> to vector<1x8x1x16x128xbf16>
    tpu.vector_store %arg5[%c0_71, %c0_72, %c0_73, %c0_74, %c128_75], %92 {strides = array<i32>} : memref<1x8x2x16x256xbf16, #tpu.memory_space<vmem>>, vector<1x8x1x16x128xbf16>,
    %cst_76 = arith.constant 0.000000e+00 : f32
    %93 = vector.broadcast %cst_76 : f32 to vector<128x128xf32>
    %c0_77 = arith.constant 0 : index
    %c384_78 = arith.constant 384 : index
    %94 = vector.load %arg6[%c0_77, %c384_78] : memref<128x1152xbf16, #tpu.memory_space<vmem>>, vector<128x256xbf16>
    %c4 = arith.constant 4 : index
    %c0_79 = arith.constant 0 : index
    %c0_80 = arith.constant 0 : index
    %95 = vector.load %arg3[%c4, %c0_79, %c0_80] : memref<8x256x128xbf16, #tpu.memory_space<vmem>>, vector<1x256x128xbf16>
    %96 = vector.shape_cast %95 : vector<1x256x128xbf16> to vector<256x128xbf16>
    %cst_81 = arith.constant dense<0.000000e+00> : vector<128x128xf32>
    %97 = tpu.matmul %94, %96, %cst_81 {dimension_numbers = #tpu.dot_dimension_numbers<[1], [0], [0], [1], [0, 0, 1, 1], [], []>} : vector<128x256xbf16>, vector<256x128xbf16>, vector<128x128xf32> -> vector<128x128xf32>
    %98 = arith.addf %93, %97 : vector<128x128xf32>
    %c0_82 = arith.constant 0 : index
    %c768_83 = arith.constant 768 : index
    %99 = vector.load %arg6[%c0_82, %c768_83] : memref<128x1152xbf16, #tpu.memory_space<vmem>>, vector<128x256xbf16>
    %c5 = arith.constant 5 : index
    %c0_84 = arith.constant 0 : index
    %c0_85 = arith.constant 0 : index
    %100 = vector.load %arg3[%c5, %c0_84, %c0_85] : memref<8x256x128xbf16, #tpu.memory_space<vmem>>, vector<1x256x128xbf16>
    %101 = vector.shape_cast %100 : vector<1x256x128xbf16> to vector<256x128xbf16>
    %cst_86 = arith.constant dense<0.000000e+00> : vector<128x128xf32>
    %102 = tpu.matmul %99, %101, %cst_86 {dimension_numbers = #tpu.dot_dimension_numbers<[1], [0], [0], [1], [0, 0, 1, 1], [], []>} : vector<128x256xbf16>, vector<256x128xbf16>, vector<128x128xf32> -> vector<128x128xf32>
    %103 = arith.addf %98, %102 : vector<128x128xf32>
    %104 = vector.broadcast %56 : vector<1x128xf32> to vector<128x128xf32>
    %105 = arith.addf %103, %104 : vector<128x128xf32>
    %106 = arith.truncf %105 : vector<128x128xf32> to vector<128x128xbf16>
    %107 = vector.shape_cast %106 : vector<128x128xbf16> to vector<8x16x128xbf16>
    %c0_87 = arith.constant 0 : index
    %c0_88 = arith.constant 0 : index
    %c1_89 = arith.constant 1 : index
    %c0_90 = arith.constant 0 : index
    %c0_91 = arith.constant 0 : index
    %108 = vector.load %arg5[%c0_87, %c0_88, %c1_89, %c0_90, %c0_91] : memref<1x8x2x16x256xbf16, #tpu.memory_space<vmem>>, vector<1x8x1x16x128xbf16>
    %109 = vector.shape_cast %108 : vector<1x8x1x16x128xbf16> to vector<8x16x128xbf16>
    %110 = vector.shape_cast %107 : vector<8x16x128xbf16> to vector<1x8x1x16x128xbf16>
    tpu.vector_store %arg5[%c0_87, %c0_88, %c1_89, %c0_90, %c0_91], %110 {strides = array<i32>} : memref<1x8x2x16x256xbf16, #tpu.memory_space<vmem>>, vector<1x8x1x16x128xbf16>,
    %cst_92 = arith.constant 0.000000e+00 : f32
    %111 = vector.broadcast %cst_92 : f32 to vector<128x128xf32>
    %c0_93 = arith.constant 0 : index
    %c512_94 = arith.constant 512 : index
    %112 = vector.load %arg6[%c0_93, %c512_94] : memref<128x1152xbf16, #tpu.memory_space<vmem>>, vector<128x256xbf16>
    %c6 = arith.constant 6 : index
    %c0_95 = arith.constant 0 : index
    %c0_96 = arith.constant 0 : index
    %113 = vector.load %arg3[%c6, %c0_95, %c0_96] : memref<8x256x128xbf16, #tpu.memory_space<vmem>>, vector<1x256x128xbf16>
    %114 = vector.shape_cast %113 : vector<1x256x128xbf16> to vector<256x128xbf16>
    %cst_97 = arith.constant dense<0.000000e+00> : vector<128x128xf32>
    %115 = tpu.matmul %112, %114, %cst_97 {dimension_numbers = #tpu.dot_dimension_numbers<[1], [0], [0], [1], [0, 0, 1, 1], [], []>} : vector<128x256xbf16>, vector<256x128xbf16>, vector<128x128xf32> -> vector<128x128xf32>
    %116 = arith.addf %111, %115 : vector<128x128xf32>
    %c0_98 = arith.constant 0 : index
    %c896_99 = arith.constant 896 : index
    %117 = vector.load %arg6[%c0_98, %c896_99] : memref<128x1152xbf16, #tpu.memory_space<vmem>>, vector<128x256xbf16>
    %c7 = arith.constant 7 : index
    %c0_100 = arith.constant 0 : index
    %c0_101 = arith.constant 0 : index
    %118 = vector.load %arg3[%c7, %c0_100, %c0_101] : memref<8x256x128xbf16, #tpu.memory_space<vmem>>, vector<1x256x128xbf16>
    %119 = vector.shape_cast %118 : vector<1x256x128xbf16> to vector<256x128xbf16>
    %cst_102 = arith.constant dense<0.000000e+00> : vector<128x128xf32>
    %120 = tpu.matmul %117, %119, %cst_102 {dimension_numbers = #tpu.dot_dimension_numbers<[1], [0], [0], [1], [0, 0, 1, 1], [], []>} : vector<128x256xbf16>, vector<256x128xbf16>, vector<128x128xf32> -> vector<128x128xf32>
    %121 = arith.addf %116, %120 : vector<128x128xf32>
    %122 = vector.broadcast %56 : vector<1x128xf32> to vector<128x128xf32>
    %123 = arith.addf %121, %122 : vector<128x128xf32>
    %124 = arith.truncf %123 : vector<128x128xf32> to vector<128x128xbf16>
    %125 = vector.shape_cast %124 : vector<128x128xbf16> to vector<8x16x128xbf16>
    %c0_103 = arith.constant 0 : index
    %c0_104 = arith.constant 0 : index
    %c1_105 = arith.constant 1 : index
    %c0_106 = arith.constant 0 : index
    %c128_107 = arith.constant 128 : index
    %126 = vector.load %arg5[%c0_103, %c0_104, %c1_105, %c0_106, %c128_107] : memref<1x8x2x16x256xbf16, #tpu.memory_space<vmem>>, vector<1x8x1x16x128xbf16>
    %127 = vector.shape_cast %126 : vector<1x8x1x16x128xbf16> to vector<8x16x128xbf16>
    %128 = vector.shape_cast %125 : vector<8x16x128xbf16> to vector<1x8x1x16x128xbf16>
    tpu.vector_store %arg5[%c0_103, %c0_104, %c1_105, %c0_106, %c128_107], %128 {strides = array<i32>} : memref<1x8x2x16x256xbf16, #tpu.memory_space<vmem>>, vector<1x8x1x16x128xbf16>,
    return
  }
  func.func @transform_0(%arg0: i32, %arg1: i32) -> (i32, i32, i32, i32) {
    %c0_i32 = arith.constant 0 : i32
    %c0_i32_0 = arith.constant 0 : i32
    %c0_i32_1 = arith.constant 0 : i32
    %c0_i32_2 = arith.constant 0 : i32
    return %arg0, %c0_i32, %c0_i32_0, %c0_i32_1 : i32, i32, i32, i32
  }
  func.func @transform_1(%arg0: i32, %arg1: i32) -> (i32, i32, i32) {
    %c0_i32 = arith.constant 0 : i32
    %c0_i32_0 = arith.constant 0 : i32
    %c0_i32_1 = arith.constant 0 : i32
    %c0_i32_2 = arith.constant 0 : i32
    return %c0_i32, %c0_i32_0, %c0_i32_1 : i32, i32, i32
  }
  func.func @transform_2(%arg0: i32, %arg1: i32) -> (i32, i32) {
    %c0_i32 = arith.constant 0 : i32
    %c0_i32_0 = arith.constant 0 : i32
    %c0_i32_1 = arith.constant 0 : i32
    return %c0_i32, %c0_i32_0 : i32, i32
  }
  func.func @transform_3(%arg0: i32, %arg1: i32) -> (i32, i32, i32, i32, i32) {
    %c0_i32 = arith.constant 0 : i32
    %c0_i32_0 = arith.constant 0 : i32
    %c0_i32_1 = arith.constant 0 : i32
    %c0_i32_2 = arith.constant 0 : i32
    return %arg0, %arg1, %c0_i32, %c0_i32_0, %c0_i32_1 : i32, i32, i32, i32, i32
  }
}

</mosaic_0001>

<llo_original>
// kernel: upsample_forward.1
$region0: #{upsample_forward.1}
  #allocation0 [shape = 'u32[]', space=smem, size = 0x4, offset = 0x4, fixed_abs, tag = 'smem constant byte address 0x4 - core index']
  #allocation1 [shape = 'u32[144,128]{1,0:T(1,128)}', space=vmem, size = 0x12000, scoped, tag = 'internal scratch']
  #allocation2 [shape = 'bf16[128,1152]{1,0:T(16,128)(2,1)}', space=vmem, size = 0x48000, scoped, tag = 'scratch operand']
  %s0 = inlined_call_operand.vmem [shape: bf16[2,18,24,128], index: 0, kind: input, shape index: {}]
  %s1 = inlined_call_operand.vmem [shape: bf16[8,256,128], index: 1, kind: input, shape index: {}]
  %s2 = inlined_call_operand.vmem [shape: f32[1,128], index: 2, kind: input, shape index: {}]
  %s3 = inlined_call_operand.vmem [shape: bf16[2,16,2,16,256], index: 3, kind: output, shape index: {}]
  %s4 = sld [smem:[#allocation0]]
  $region45: #{upsample_forward.1} parent=0
    _
  %s6 = ssub.s32 1, %s4
  %s7 = scalar_select 0, %s6, %s4
  loop: start=0, step=1, limit=6
  $region2: #{upsample_forward.1} parent=0 // loop_pre_header
    _
  $region3: #{upsample_forward.1} parent=0 // loop_header
    %s9 = sphi 0, %s13
    %p10 = scmp.ge.s32.totalorder %s9, 6
    %s16 = sphi 0, %s28
    %s17 = sphi 0, %s24
    %s18 = sphi 0, %s16
    %s19 = sphi 0, %s17
    %s20 = sphi 0, %s18
    %s21 = sphi 0, %s19
    %s31 = sphi 0, %s33
    %s34 = sphi 0, %s31
    %s35 = sphi 0, %s34
    %s51 = sphi 0, %s35
    %s55 = sphi 0, %s55
    %s57 = sphi 0, %s55
    %s58 = sphi 0, %s57
    %s72 = sphi 0, %s58
    %s76 = sphi 0, %s76
    %s78 = sphi 0, %s76
    %s79 = sphi 0, %s78
    %s93 = sphi 0, %s79
    %s101 = sphi 0, %s103
    %s104 = sphi 0, %s101
    %s105 = sphi 0, %s104
    %s121 = sphi 0, %s105
  $region4: #{upsample_forward.1} parent=0 // loop_header_branch
    %12 = sbr.rel (%p10) target = $region8
  $region5: #{upsample_forward.1} parent=0 // loop_body
    %s14 = ssub.s32 %s9, 1
    %s15 = ssub.s32 %s9, 2
    %s22 = sadd.s32 1, %s17
    %p23 = scmp.ge.s32.totalorder %s22, 2
    %s24 = scalar_select %p23, 0, %s22
    %s25 = sadd.s32 1, %s16
    %s26 = scalar_select %p23, %s25, %s16
    %p27 = scmp.ge.s32.totalorder %s26, 2
    %s28 = scalar_select %p27, 0, %s26
    %s29 = ssub.s32 %s16, %s28
    %p30 = scmp.eq.s32.totalorder %s29, 0
    %s32 = sadd.s32 %s31, 1
    %s33 = scalar_select %p30, %s31, %s32
    %p36 = pneg %p30
    %p37 = scmp.eq.s32.totalorder %s9, 3
    %p38 = por %p36, %p37
    %p39 = scmp.ne.s32.totalorder %s31, %s34
    %p40 = scmp.eq.s32.totalorder %s9, 0
    %p41 = por %p39, %p40
    %p42 = scmp.ne.s32.totalorder %s31, %s34
    %p43 = scmp.eq.s32.totalorder %s14, 3
    %p44 = por %p42, %p43
    %p45 = scmp.ne.s32.totalorder %s34, %s35
    %p46 = scmp.eq.s32.totalorder %s14, 0
    %p47 = por %p45, %p46
    %p48 = scmp.ne.s32.totalorder %s34, %s35
    %p49 = scmp.eq.s32.totalorder %s15, 3
    %p50 = por %p48, %p49
    %p52 = scmp.ne.s32.totalorder %s35, %s51
    %p53 = scmp.eq.s32.totalorder %s15, 0
    %p54 = por %p52, %p53
    %s56 = sadd.s32 %s55, 1
    %p59 = scmp.eq.s32.totalorder %s9, 3
    %p60 = scmp.ne.s32.totalorder %s55, %s57
    %p61 = scmp.eq.s32.totalorder %s9, 0
    %p62 = por %p60, %p61
    %p63 = scmp.ne.s32.totalorder %s55, %s57
    %p64 = scmp.eq.s32.totalorder %s14, 3
    %p65 = por %p63, %p64
    %p66 = scmp.ne.s32.totalorder %s57, %s58
    %p67 = scmp.eq.s32.totalorder %s14, 0
    %p68 = por %p66, %p67
    %p69 = scmp.ne.s32.totalorder %s57, %s58
    %p70 = scmp.eq.s32.totalorder %s15, 3
    %p71 = por %p69, %p70
    %p73 = scmp.ne.s32.totalorder %s58, %s72
    %p74 = scmp.eq.s32.totalorder %s15, 0
    %p75 = por %p73, %p74
    %s77 = sadd.s32 %s76, 1
    %p80 = scmp.eq.s32.totalorder %s9, 3
    %p81 = scmp.ne.s32.totalorder %s76, %s78
    %p82 = scmp.eq.s32.totalorder %s9, 0
    %p83 = por %p81, %p82
    %p84 = scmp.ne.s32.totalorder %s76, %s78
    %p85 = scmp.eq.s32.totalorder %s14, 3
    %p86 = por %p84, %p85
    %p87 = scmp.ne.s32.totalorder %s78, %s79
    %p88 = scmp.eq.s32.totalorder %s14, 0
    %p89 = por %p87, %p88
    %p90 = scmp.ne.s32.totalorder %s78, %s79
    %p91 = scmp.eq.s32.totalorder %s15, 3
    %p92 = por %p90, %p91
    %p94 = scmp.ne.s32.totalorder %s79, %s93
    %p95 = scmp.eq.s32.totalorder %s15, 0
    %p96 = por %p94, %p95
    %s97 = ssub.s32 %s16, %s28
    %s98 = ssub.s32 %s17, %s24
    %s99 = sor.u32 %s97, %s98
    %p100 = scmp.eq.s32.totalorder %s99, 0
    %s102 = sadd.s32 %s101, 1
    %s103 = scalar_select %p100, %s101, %s102
    %p106 = pneg %p100
    %p107 = scmp.eq.s32.totalorder %s9, 3
    %p108 = por %p106, %p107
    %p109 = scmp.ne.s32.totalorder %s101, %s104
    %p110 = scmp.eq.s32.totalorder %s9, 0
    %p111 = por %p109, %p110
    %p112 = scmp.ne.s32.totalorder %s101, %s104
    %p113 = scmp.eq.s32.totalorder %s14, 3
    %p114 = por %p112, %p113
    %p115 = scmp.ne.s32.totalorder %s104, %s105
    %p116 = scmp.eq.s32.totalorder %s14, 0
    %p117 = por %p115, %p116
    %p118 = scmp.ne.s32.totalorder %s104, %s105
    %p119 = scmp.eq.s32.totalorder %s15, 3
    %p120 = por %p118, %p119
    %p122 = scmp.ne.s32.totalorder %s105, %s121
    %p123 = scmp.eq.s32.totalorder %s15, 0
    %p124 = por %p122, %p123
    %p125 = scmp.le.s32.totalorder 1, %s9
    %p126 = scmp.lt.s32.totalorder %s9, 5
    %p127 = pnand %p125, %p126
    %p128 = pneg %p127
    // Predicated region
    $region9: #{upsample_forward.1} parent=5 // pred_check
      _
    $region10: #{upsample_forward.1} parent=5 // pred_check_branch
      %130 = sbr.rel (%p127) target = $region12
    $region11: #{upsample_forward.1} parent=5 // pred_region
      %s131 = ssub.s32 %s9, 1
      // Predicated region
      $region13: #{upsample_forward.1} parent=11 // pred_check
        %p132 = pneg %p68
      $region14: #{upsample_forward.1} parent=11 // pred_check_branch
        %134 = sbr.rel (%p132) target = $region16
      $region15: #{upsample_forward.1} parent=11 // pred_region
        _
      $region16: #{upsample_forward.1} parent=11 // pred_fallthru
        _
      // Predicated region
      $region17: #{upsample_forward.1} parent=11 // pred_check
        %p135 = pneg %p89
      $region18: #{upsample_forward.1} parent=11 // pred_check_branch
        %137 = sbr.rel (%p135) target = $region20
      $region19: #{upsample_forward.1} parent=11 // pred_region
        _
      $region20: #{upsample_forward.1} parent=11 // pred_fallthru
        _
    $region12: #{upsample_forward.1} parent=5 // pred_fallthru
      _
    %p138 = scmp.lt.s32.totalorder %s9, 4
    // Predicated region
    $region21: #{upsample_forward.1} parent=5 // pred_check
      %p139 = pneg %p138
    $region22: #{upsample_forward.1} parent=5 // pred_check_branch
      %141 = sbr.rel (%p139) target = $region24
    $region23: #{upsample_forward.1} parent=5 // pred_region
      // Predicated region
      $region25: #{upsample_forward.1} parent=23 // pred_check
        %p142 = pneg %p41
      $region26: #{upsample_forward.1} parent=23 // pred_check_branch
        %144 = sbr.rel (%p142) target = $region28
      $region27: #{upsample_forward.1} parent=23 // pred_region
        %p145 = scmp.lt.s32.totalorder %s16, 1
        %s146 = scalar_select %p145, %s16, 1
        %s147 = smul.addr %s146, 54
        %s148 = smul.addr %s147, 4
        %s149 = scalar_lea.vmem %s0, %s148
      $region28: #{upsample_forward.1} parent=23 // pred_fallthru
        _
    $region24: #{upsample_forward.1} parent=5 // pred_fallthru
      _
    %p150 = scmp.le.s32.totalorder 1, %s9
    %p151 = scmp.lt.s32.totalorder %s9, 5
    %p152 = pnand %p150, %p151
    %p153 = pneg %p152
    // Predicated region
    $region29: #{upsample_forward.1} parent=5 // pred_check
      _
    $region30: #{upsample_forward.1} parent=5 // pred_check_branch
      %155 = sbr.rel (%p152) target = $region32
    $region31: #{upsample_forward.1} parent=5 // pred_region
      %s156 = ssub.s32 %s9, 1
      %p157 = scmp.lt.s32.totalorder %s18, 1
      %s158 = scalar_select %p157, %s18, 1
      %s159 = smul.addr %s158, 54
      %s160 = smul.addr %s159, 4
      %s161 = scalar_lea.vmem %s0, %s160
      %p162 = pneg %p47
      %p163 = pneg %p44
      %p164 = pneg %p68
      %p165 = pneg %p65
      %p166 = pneg %p89
      %p167 = pneg %p86
      %p168 = pneg %p117
      %p169 = pneg %p114
      %s170 = smul.u32 8, %s19
      %p171 = scmp.lt.s32.totalorder %s18, 1
      %s172 = scalar_select %p171, %s18, 1
      %p173 = scmp.lt.s32.totalorder %s170, 15
      %s174 = scalar_select %p173, %s170, 15
      %s175 = smul.addr %s174, 8
      %s176 = smul.addr %s172, 128
      %s177 = sadd.s32 %s175, %s176
      %s178 = smul.addr %s177, 4
      %s179 = scalar_lea.vmem %s3, %s178
      %p180 = scmp.lt.s32.totalorder %s18, 1
      %s181 = scalar_select %p180, %s18, 1
      %s182 = smul.addr %s181, 54
      %s183 = smul.addr %s182, 4
      %s184 = scalar_lea.vmem %s0, %s183
      %s185 = smul.u32 8, %s19
      %p186 = scmp.lt.s32.totalorder %s18, 1
      %s187 = scalar_select %p186, %s18, 1
      %p188 = scmp.lt.s32.totalorder %s185, 15
      %s189 = scalar_select %p188, %s185, 15
      %s190 = smul.addr %s189, 8
      %s191 = smul.addr %s187, 128
      %s192 = sadd.s32 %s190, %s191
      %s193 = smul.addr %s192, 4
      %s194 = scalar_lea.vmem %s3, %s193
      %s195 = smul.u32 8, %s19
      %s197 = smul.u32 %s19, 8
      %s198 = smul.u32 %s197, 3
      %s199 = smul.addr %s198, 4
      %s200 = scalar_lea.vmem %s184, %s199
      %v201 = vld [vmem:[%s200] sm:$0xf]
      %v202 = vld [vmem:[%s200 + $0x4] sm:$0xf]
      %v203 = vld [vmem:[%s200 + $0xc] sm:$0xf]
      %v204 = vld [vmem:[%s200 + $0x10] sm:$0xf]
      %v205 = vld [vmem:[%s200 + $0x18] sm:$0xf]
      %v206 = vld [vmem:[%s200 + $0x1c] sm:$0xf]
      %v207 = vld [vmem:[%s200 + $0x24] sm:$0xf]
      %v208 = vld [vmem:[%s200 + $0x28] sm:$0xf]
      %v209 = vld [vmem:[%s200 + $0x30] sm:$0xf]
      %v210 = vld [vmem:[%s200 + $0x34] sm:$0xf]
      %v211 = vld [vmem:[%s200 + $0x3c] sm:$0xf]
      %v212 = vld [vmem:[%s200 + $0x40] sm:$0xf]
      %v213 = vld [vmem:[%s200 + $0x48] sm:$0xf]
      %v214 = vld [vmem:[%s200 + $0x4c] sm:$0xf]
      %v215 = vld [vmem:[%s200 + $0x54] sm:$0xf]
      %v216 = vld [vmem:[%s200 + $0x58] sm:$0xf]
      %v233 = vunpack.c.l.b16 %v201
      %v234 = vunpack.c.l.b16 %v202
      %v235 = vunpack.c.l.b16 %v203
      %v236 = vunpack.c.l.b16 %v204
      %v237 = vunpack.c.l.b16 %v205
      %v238 = vunpack.c.l.b16 %v206
      %v239 = vunpack.c.l.b16 %v207
      %v240 = vunpack.c.l.b16 %v208
      %v241 = vunpack.c.l.b16 %v209
      %v242 = vunpack.c.l.b16 %v210
      %v243 = vunpack.c.l.b16 %v211
      %v244 = vunpack.c.l.b16 %v212
      %v245 = vunpack.c.l.b16 %v213
      %v246 = vunpack.c.l.b16 %v214
      %v247 = vunpack.c.l.b16 %v215
      %v248 = vunpack.c.l.b16 %v216
      %v249 = vpack.c.b16 %v234, %v233
      %v250 = vpack.c.b16 %v236, %v235
      %v251 = vpack.c.b16 %v238, %v237
      %v252 = vpack.c.b16 %v240, %v239
      %v253 = vpack.c.b16 %v242, %v241
      %v254 = vpack.c.b16 %v244, %v243
      %v255 = vpack.c.b16 %v246, %v245
      %v256 = vpack.c.b16 %v248, %v247
      %265 = vst [vmem:[#allocation2] sm:$0xff] %v249
      %266 = vst [vmem:[#allocation2 + $0x48] sm:$0xff] %v250
      %267 = vst [vmem:[#allocation2 + $0x90] sm:$0xff] %v251
      %268 = vst [vmem:[#allocation2 + $0xd8] sm:$0xff] %v252
      %269 = vst [vmem:[#allocation2 + $0x120] sm:$0xff] %v253
      %270 = vst [vmem:[#allocation2 + $0x168] sm:$0xff] %v254
      %271 = vst [vmem:[#allocation2 + $0x1b0] sm:$0xff] %v255
      %272 = vst [vmem:[#allocation2 + $0x1f8] sm:$0xff] %v256
      %v273 = vld [vmem:[%s200] sm:$0xf]
      %v274 = vld [vmem:[%s200 + $0x4] sm:$0xf]
      %v275 = vld [vmem:[%s200 + $0x8] sm:$0x1]
      %v276 = vld [vmem:[%s200 + $0xc] sm:$0xf]
      %v277 = vld [vmem:[%s200 + $0x10] sm:$0xf]
      %v278 = vld [vmem:[%s200 + $0x14] sm:$0x1]
      %v279 = vld [vmem:[%s200 + $0x18] sm:$0xf]
      %v280 = vld [vmem:[%s200 + $0x1c] sm:$0xf]
      %v281 = vld [vmem:[%s200 + $0x20] sm:$0x1]
      %v282 = vld [vmem:[%s200 + $0x24] sm:$0xf]
      %v283 = vld [vmem:[%s200 + $0x28] sm:$0xf]
      %v284 = vld [vmem:[%s200 + $0x2c] sm:$0x1]
      %v285 = vld [vmem:[%s200 + $0x30] sm:$0xf]
      %v286 = vld [vmem:[%s200 + $0x34] sm:$0xf]
      %v287 = vld [vmem:[%s200 + $0x38] sm:$0x1]
      %v288 = vld [vmem:[%s200 + $0x3c] sm:$0xf]
      %v289 = vld [vmem:[%s200 + $0x40] sm:$0xf]
      %v290 = vld [vmem:[%s200 + $0x44] sm:$0x1]
      %v291 = vld [vmem:[%s200 + $0x48] sm:$0xf]
      %v292 = vld [vmem:[%s200 + $0x4c] sm:$0xf]
      %v293 = vld [vmem:[%s200 + $0x50] sm:$0x1]
      %v294 = vld [vmem:[%s200 + $0x54] sm:$0xf]
      %v295 = vld [vmem:[%s200 + $0x58] sm:$0xf]
      %v296 = vld [vmem:[%s200 + $0x5c] sm:$0x1]
      %vm297 = vsmask.f32 3328
      %vm298 = vsmask.f32 7440
      %vm299 = vmor %vm297, %vm298
      %v301 = vshrl.u32 %v273, 16
      %v303 = vrot.slane %v301, 4
      %v304 = vshll.u32 %v273, 16
      %v306 = vrot.slane %v304, 5
      %v307 = vor.u32 %v303, %v306
      %v308 = vrot.slane %v307, 4
      %v310 = vshll.u32 %v274, 16
      %v312 = vrot.slane %v310, 5
      %v313 = vsel %vm299, %v308, %v312
      %v314 = vshrl.u32 %v274, 16
      %v316 = vrot.slane %v314, 4
      %v317 = vor.u32 %v316, %v312
      %v318 = vrot.slane %v317, 4
      %v320 = vshll.u32 %v275, 16
      %v322 = vrot.slane %v320, 5
      %v323 = vsel %vm299, %v318, %v322
      %v325 = vshrl.u32 %v276, 16
      %v327 = vrot.slane %v325, 4
      %v328 = vshll.u32 %v276, 16
      %v330 = vrot.slane %v328, 5
      %v331 = vor.u32 %v327, %v330
      %v332 = vrot.slane %v331, 4
      %v334 = vshll.u32 %v277, 16
      %v336 = vrot.slane %v334, 5
      %v337 = vsel %vm299, %v332, %v336
      %v338 = vshrl.u32 %v277, 16
      %v340 = vrot.slane %v338, 4
      %v341 = vor.u32 %v340, %v336
      %v342 = vrot.slane %v341, 4
      %v344 = vshll.u32 %v278, 16
      %v346 = vrot.slane %v344, 5
      %v347 = vsel %vm299, %v342, %v346
      %v349 = vshrl.u32 %v279, 16
      %v351 = vrot.slane %v349, 4
      %v352 = vshll.u32 %v279, 16
      %v354 = vrot.slane %v352, 5
      %v355 = vor.u32 %v351, %v354
      %v356 = vrot.slane %v355, 4
      %v358 = vshll.u32 %v280, 16
      %v360 = vrot.slane %v358, 5
      %v361 = vsel %vm299, %v356, %v360
      %v362 = vshrl.u32 %v280, 16
      %v364 = vrot.slane %v362, 4
      %v365 = vor.u32 %v364, %v360
      %v366 = vrot.slane %v365, 4
      %v368 = vshll.u32 %v281, 16
      %v370 = vrot.slane %v368, 5
      %v371 = vsel %vm299, %v366, %v370
      %v373 = vshrl.u32 %v282, 16
      %v375 = vrot.slane %v373, 4
      %v376 = vshll.u32 %v282, 16
      %v378 = vrot.slane %v376, 5
      %v379 = vor.u32 %v375, %v378
      %v380 = vrot.slane %v379, 4
      %v382 = vshll.u32 %v283, 16
      %v384 = vrot.slane %v382, 5
      %v385 = vsel %vm299, %v380, %v384
      %v386 = vshrl.u32 %v283, 16
      %v388 = vrot.slane %v386, 4
      %v389 = vor.u32 %v388, %v384
      %v390 = vrot.slane %v389, 4
      %v392 = vshll.u32 %v284, 16
      %v394 = vrot.slane %v392, 5
      %v395 = vsel %vm299, %v390, %v394
      %v397 = vshrl.u32 %v285, 16
      %v399 = vrot.slane %v397, 4
      %v400 = vshll.u32 %v285, 16
      %v402 = vrot.slane %v400, 5
      %v403 = vor.u32 %v399, %v402
      %v404 = vrot.slane %v403, 4
      %v406 = vshll.u32 %v286, 16
      %v408 = vrot.slane %v406, 5
      %v409 = vsel %vm299, %v404, %v408
      %v410 = vshrl.u32 %v286, 16
      %v412 = vrot.slane %v410, 4
      %v413 = vor.u32 %v412, %v408
      %v414 = vrot.slane %v413, 4
      %v416 = vshll.u32 %v287, 16
      %v418 = vrot.slane %v416, 5
      %v419 = vsel %vm299, %v414, %v418
      %v421 = vshrl.u32 %v288, 16
      %v423 = vrot.slane %v421, 4
      %v424 = vshll.u32 %v288, 16
      %v426 = vrot.slane %v424, 5
      %v427 = vor.u32 %v423, %v426
      %v428 = vrot.slane %v427, 4
      %v430 = vshll.u32 %v289, 16
      %v432 = vrot.slane %v430, 5
      %v433 = vsel %vm299, %v428, %v432
      %v434 = vshrl.u32 %v289, 16
      %v436 = vrot.slane %v434, 4
      %v437 = vor.u32 %v436, %v432
      %v438 = vrot.slane %v437, 4
      %v440 = vshll.u32 %v290, 16
      %v442 = vrot.slane %v440, 5
      %v443 = vsel %vm299, %v438, %v442
      %v445 = vshrl.u32 %v291, 16
      %v447 = vrot.slane %v445, 4
      %v448 = vshll.u32 %v291, 16
      %v450 = vrot.slane %v448, 5
      %v451 = vor.u32 %v447, %v450
      %v452 = vrot.slane %v451, 4
      %v454 = vshll.u32 %v292, 16
      %v456 = vrot.slane %v454, 5
      %v457 = vsel %vm299, %v452, %v456
      %v458 = vshrl.u32 %v292, 16
      %v460 = vrot.slane %v458, 4
      %v461 = vor.u32 %v460, %v456
      %v462 = vrot.slane %v461, 4
      %v464 = vshll.u32 %v293, 16
      %v466 = vrot.slane %v464, 5
      %v467 = vsel %vm299, %v462, %v466
      %v469 = vshrl.u32 %v294, 16
      %v471 = vrot.slane %v469, 4
      %v472 = vshll.u32 %v294, 16
      %v474 = vrot.slane %v472, 5
      %v475 = vor.u32 %v471, %v474
      %v476 = vrot.slane %v475, 4
      %v478 = vshll.u32 %v295, 16
      %v480 = vrot.slane %v478, 5
      %v481 = vsel %vm299, %v476, %v480
      %v482 = vshrl.u32 %v295, 16
      %v484 = vrot.slane %v482, 4
      %v485 = vor.u32 %v484, %v480
      %v486 = vrot.slane %v485, 4
      %v488 = vshll.u32 %v296, 16
      %v490 = vrot.slane %v488, 5
      %v491 = vsel %vm299, %v486, %v490
      %v492 = vunpack.c.l.b16 %v313
      %v493 = vunpack.c.l.b16 %v323
      %v494 = vunpack.c.l.b16 %v337
      %v495 = vunpack.c.l.b16 %v347
      %v496 = vunpack.c.l.b16 %v361
      %v497 = vunpack.c.l.b16 %v371
      %v498 = vunpack.c.l.b16 %v385
      %v499 = vunpack.c.l.b16 %v395
      %v500 = vunpack.c.l.b16 %v409
      %v501 = vunpack.c.l.b16 %v419
      %v502 = vunpack.c.l.b16 %v433
      %v503 = vunpack.c.l.b16 %v443
      %v504 = vunpack.c.l.b16 %v457
      %v505 = vunpack.c.l.b16 %v467
      %v506 = vunpack.c.l.b16 %v481
      %v507 = vunpack.c.l.b16 %v491
      %v508 = vpack.c.b16 %v493, %v492
      %v509 = vpack.c.b16 %v495, %v494
      %v510 = vpack.c.b16 %v497, %v496
      %v511 = vpack.c.b16 %v499, %v498
      %v512 = vpack.c.b16 %v501, %v500
      %v513 = vpack.c.b16 %v503, %v502
      %v514 = vpack.c.b16 %v505, %v504
      %v515 = vpack.c.b16 %v507, %v506
      %524 = vst [vmem:[#allocation2 + $0x8] sm:$0xff] %v508
      %525 = vst [vmem:[#allocation2 + $0x50] sm:$0xff] %v509
      %526 = vst [vmem:[#allocation2 + $0x98] sm:$0xff] %v510
      %527 = vst [vmem:[#allocation2 + $0xe0] sm:$0xff] %v511
      %528 = vst [vmem:[#allocation2 + $0x128] sm:$0xff] %v512
      %529 = vst [vmem:[#allocation2 + $0x170] sm:$0xff] %v513
      %530 = vst [vmem:[#allocation2 + $0x1b8] sm:$0xff] %v514
      %531 = vst [vmem:[#allocation2 + $0x200] sm:$0xff] %v515
      %v532 = vld [vmem:[%s200] sm:$0xe]
      %v533 = vld [vmem:[%s200 + $0x4] sm:$0xf]
      %v534 = vld [vmem:[%s200 + $0x8] sm:$0x1]
      %v535 = vld [vmem:[%s200 + $0xc] sm:$0xe]
      %v536 = vld [vmem:[%s200 + $0x10] sm:$0xf]
      %v537 = vld [vmem:[%s200 + $0x14] sm:$0x1]
      %v538 = vld [vmem:[%s200 + $0x18] sm:$0xe]
      %v539 = vld [vmem:[%s200 + $0x1c] sm:$0xf]
      %v540 = vld [vmem:[%s200 + $0x20] sm:$0x1]
      %v541 = vld [vmem:[%s200 + $0x24] sm:$0xe]
      %v542 = vld [vmem:[%s200 + $0x28] sm:$0xf]
      %v543 = vld [vmem:[%s200 + $0x2c] sm:$0x1]
      %v544 = vld [vmem:[%s200 + $0x30] sm:$0xe]
      %v545 = vld [vmem:[%s200 + $0x34] sm:$0xf]
      %v546 = vld [vmem:[%s200 + $0x38] sm:$0x1]
      %v547 = vld [vmem:[%s200 + $0x3c] sm:$0xe]
      %v548 = vld [vmem:[%s200 + $0x40] sm:$0xf]
      %v549 = vld [vmem:[%s200 + $0x44] sm:$0x1]
      %v550 = vld [vmem:[%s200 + $0x48] sm:$0xe]
      %v551 = vld [vmem:[%s200 + $0x4c] sm:$0xf]
      %v552 = vld [vmem:[%s200 + $0x50] sm:$0x1]
      %v553 = vld [vmem:[%s200 + $0x54] sm:$0xe]
      %v554 = vld [vmem:[%s200 + $0x58] sm:$0xf]
      %v555 = vld [vmem:[%s200 + $0x5c] sm:$0x1]
      %vm580 = vcmask 1042432
      %vm581 = vcmask 1046532
      %vm582 = vmor %vm580, %vm581
      %v583 = vrot.slane %v532, 5
      %v584 = vrot.slane %v583, 4
      %v585 = vrot.slane %v533, 5
      %v586 = vsel %vm582, %v584, %v585
      %v587 = vrot.slane %v585, 4
      %v588 = vrot.slane %v534, 5
      %v589 = vsel %vm582, %v587, %v588
      %v590 = vrot.slane %v535, 5
      %v591 = vrot.slane %v590, 4
      %v592 = vrot.slane %v536, 5
      %v593 = vsel %vm582, %v591, %v592
      %v594 = vrot.slane %v592, 4
      %v595 = vrot.slane %v537, 5
      %v596 = vsel %vm582, %v594, %v595
      %v597 = vrot.slane %v538, 5
      %v598 = vrot.slane %v597, 4
      %v599 = vrot.slane %v539, 5
      %v600 = vsel %vm582, %v598, %v599
      %v601 = vrot.slane %v599, 4
      %v602 = vrot.slane %v540, 5
      %v603 = vsel %vm582, %v601, %v602
      %v604 = vrot.slane %v541, 5
      %v605 = vrot.slane %v604, 4
      %v606 = vrot.slane %v542, 5
      %v607 = vsel %vm582, %v605, %v606
      %v608 = vrot.slane %v606, 4
      %v609 = vrot.slane %v543, 5
      %v610 = vsel %vm582, %v608, %v609
      %v611 = vrot.slane %v544, 5
      %v612 = vrot.slane %v611, 4
      %v613 = vrot.slane %v545, 5
      %v614 = vsel %vm582, %v612, %v613
      %v615 = vrot.slane %v613, 4
      %v616 = vrot.slane %v546, 5
      %v617 = vsel %vm582, %v615, %v616
      %v618 = vrot.slane %v547, 5
      %v619 = vrot.slane %v618, 4
      %v620 = vrot.slane %v548, 5
      %v621 = vsel %vm582, %v619, %v620
      %v622 = vrot.slane %v620, 4
      %v623 = vrot.slane %v549, 5
      %v624 = vsel %vm582, %v622, %v623
      %v625 = vrot.slane %v550, 5
      %v626 = vrot.slane %v625, 4
      %v627 = vrot.slane %v551, 5
      %v628 = vsel %vm582, %v626, %v627
      %v629 = vrot.slane %v627, 4
      %v630 = vrot.slane %v552, 5
      %v631 = vsel %vm582, %v629, %v630
      %v632 = vrot.slane %v553, 5
      %v633 = vrot.slane %v632, 4
      %v634 = vrot.slane %v554, 5
      %v635 = vsel %vm582, %v633, %v634
      %v636 = vrot.slane %v634, 4
      %v637 = vrot.slane %v555, 5
      %v638 = vsel %vm582, %v636, %v637
      %v639 = vunpack.c.l.b16 %v586
      %v640 = vunpack.c.l.b16 %v589
      %v641 = vunpack.c.l.b16 %v593
      %v642 = vunpack.c.l.b16 %v596
      %v643 = vunpack.c.l.b16 %v600
      %v644 = vunpack.c.l.b16 %v603
      %v645 = vunpack.c.l.b16 %v607
      %v646 = vunpack.c.l.b16 %v610
      %v647 = vunpack.c.l.b16 %v614
      %v648 = vunpack.c.l.b16 %v617
      %v649 = vunpack.c.l.b16 %v621
      %v650 = vunpack.c.l.b16 %v624
      %v651 = vunpack.c.l.b16 %v628
      %v652 = vunpack.c.l.b16 %v631
      %v653 = vunpack.c.l.b16 %v635
      %v654 = vunpack.c.l.b16 %v638
      %v655 = vpack.c.b16 %v640, %v639
      %v656 = vpack.c.b16 %v642, %v641
      %v657 = vpack.c.b16 %v644, %v643
      %v658 = vpack.c.b16 %v646, %v645
      %v659 = vpack.c.b16 %v648, %v647
      %v660 = vpack.c.b16 %v650, %v649
      %v661 = vpack.c.b16 %v652, %v651
      %v662 = vpack.c.b16 %v654, %v653
      %671 = vst [vmem:[#allocation2 + $0x10] sm:$0xff] %v655
      %672 = vst [vmem:[#allocation2 + $0x58] sm:$0xff] %v656
      %673 = vst [vmem:[#allocation2 + $0xa0] sm:$0xff] %v657
      %674 = vst [vmem:[#allocation2 + $0xe8] sm:$0xff] %v658
      %675 = vst [vmem:[#allocation2 + $0x130] sm:$0xff] %v659
      %676 = vst [vmem:[#allocation2 + $0x178] sm:$0xff] %v660
      %677 = vst [vmem:[#allocation2 + $0x1c0] sm:$0xff] %v661
      %678 = vst [vmem:[#allocation2 + $0x208] sm:$0xff] %v662
      %s679 = sadd.s32 %s197, 1
      %s680 = smul.u32 %s679, 3
      %s681 = smul.addr %s680, 4
      %s682 = scalar_lea.vmem %s184, %s681
      %v683 = vld [vmem:[%s682] sm:$0xf]
      %v684 = vld [vmem:[%s682 + $0x4] sm:$0xf]
      %v685 = vld [vmem:[%s682 + $0xc] sm:$0xf]
      %v686 = vld [vmem:[%s682 + $0x10] sm:$0xf]
      %v687 = vld [vmem:[%s682 + $0x18] sm:$0xf]
      %v688 = vld [vmem:[%s682 + $0x1c] sm:$0xf]
      %v689 = vld [vmem:[%s682 + $0x24] sm:$0xf]
      %v690 = vld [vmem:[%s682 + $0x28] sm:$0xf]
      %v691 = vld [vmem:[%s682 + $0x30] sm:$0xf]
      %v692 = vld [vmem:[%s682 + $0x34] sm:$0xf]
      %v693 = vld [vmem:[%s682 + $0x3c] sm:$0xf]
      %v694 = vld [vmem:[%s682 + $0x40] sm:$0xf]
      %v695 = vld [vmem:[%s682 + $0x48] sm:$0xf]
      %v696 = vld [vmem:[%s682 + $0x4c] sm:$0xf]
      %v697 = vld [vmem:[%s682 + $0x54] sm:$0xf]
      %v698 = vld [vmem:[%s682 + $0x58] sm:$0xf]
      %v715 = vunpack.c.l.b16 %v683
      %v716 = vunpack.c.l.b16 %v684
      %v717 = vunpack.c.l.b16 %v685
      %v718 = vunpack.c.l.b16 %v686
      %v719 = vunpack.c.l.b16 %v687
      %v720 = vunpack.c.l.b16 %v688
      %v721 = vunpack.c.l.b16 %v689
      %v722 = vunpack.c.l.b16 %v690
      %v723 = vunpack.c.l.b16 %v691
      %v724 = vunpack.c.l.b16 %v692
      %v725 = vunpack.c.l.b16 %v693
      %v726 = vunpack.c.l.b16 %v694
      %v727 = vunpack.c.l.b16 %v695
      %v728 = vunpack.c.l.b16 %v696
      %v729 = vunpack.c.l.b16 %v697
      %v730 = vunpack.c.l.b16 %v698
      %v731 = vpack.c.b16 %v716, %v715
      %v732 = vpack.c.b16 %v718, %v717
      %v733 = vpack.c.b16 %v720, %v719
      %v734 = vpack.c.b16 %v722, %v721
      %v735 = vpack.c.b16 %v724, %v723
      %v736 = vpack.c.b16 %v726, %v725
      %v737 = vpack.c.b16 %v728, %v727
      %v738 = vpack.c.b16 %v730, %v729
      %747 = vst [vmem:[#allocation2 + $0x18] sm:$0xff] %v731
      %748 = vst [vmem:[#allocation2 + $0x60] sm:$0xff] %v732
      %749 = vst [vmem:[#allocation2 + $0xa8] sm:$0xff] %v733
      %750 = vst [vmem:[#allocation2 + $0xf0] sm:$0xff] %v734
      %751 = vst [vmem:[#allocation2 + $0x138] sm:$0xff] %v735
      %752 = vst [vmem:[#allocation2 + $0x180] sm:$0xff] %v736
      %753 = vst [vmem:[#allocation2 + $0x1c8] sm:$0xff] %v737
      %754 = vst [vmem:[#allocation2 + $0x210] sm:$0xff] %v738
      %v755 = vld [vmem:[%s682] sm:$0xf]
      %v756 = vld [vmem:[%s682 + $0x4] sm:$0xf]
      %v757 = vld [vmem:[%s682 + $0x8] sm:$0x1]
      %v758 = vld [vmem:[%s682 + $0xc] sm:$0xf]
      %v759 = vld [vmem:[%s682 + $0x10] sm:$0xf]
      %v760 = vld [vmem:[%s682 + $0x14] sm:$0x1]
      %v761 = vld [vmem:[%s682 + $0x18] sm:$0xf]
      %v762 = vld [vmem:[%s682 + $0x1c] sm:$0xf]
      %v763 = vld [vmem:[%s682 + $0x20] sm:$0x1]
      %v764 = vld [vmem:[%s682 + $0x24] sm:$0xf]
      %v765 = vld [vmem:[%s682 + $0x28] sm:$0xf]
      %v766 = vld [vmem:[%s682 + $0x2c] sm:$0x1]
      %v767 = vld [vmem:[%s682 + $0x30] sm:$0xf]
      %v768 = vld [vmem:[%s682 + $0x34] sm:$0xf]
      %v769 = vld [vmem:[%s682 + $0x38] sm:$0x1]
      %v770 = vld [vmem:[%s682 + $0x3c] sm:$0xf]
      %v771 = vld [vmem:[%s682 + $0x40] sm:$0xf]
      %v772 = vld [vmem:[%s682 + $0x44] sm:$0x1]
      %v773 = vld [vmem:[%s682 + $0x48] sm:$0xf]
      %v774 = vld [vmem:[%s682 + $0x4c] sm:$0xf]
      %v775 = vld [vmem:[%s682 + $0x50] sm:$0x1]
      %v776 = vld [vmem:[%s682 + $0x54] sm:$0xf]
      %v777 = vld [vmem:[%s682 + $0x58] sm:$0xf]
      %v778 = vld [vmem:[%s682 + $0x5c] sm:$0x1]
      %v780 = vshrl.u32 %v755, 16
      %v782 = vrot.slane %v780, 4
      %v783 = vshll.u32 %v755, 16
      %v785 = vrot.slane %v783, 5
      %v786 = vor.u32 %v782, %v785
      %v787 = vrot.slane %v786, 4
      %v789 = vshll.u32 %v756, 16
      %v791 = vrot.slane %v789, 5
      %v792 = vsel %vm299, %v787, %v791
      %v793 = vshrl.u32 %v756, 16
      %v795 = vrot.slane %v793, 4
      %v796 = vor.u32 %v795, %v791
      %v797 = vrot.slane %v796, 4
      %v799 = vshll.u32 %v757, 16
      %v801 = vrot.slane %v799, 5
      %v802 = vsel %vm299, %v797, %v801
      %v804 = vshrl.u32 %v758, 16
      %v806 = vrot.slane %v804, 4
      %v807 = vshll.u32 %v758, 16
      %v809 = vrot.slane %v807, 5
      %v810 = vor.u32 %v806, %v809
      %v811 = vrot.slane %v810, 4
      %v813 = vshll.u32 %v759, 16
      %v815 = vrot.slane %v813, 5
      %v816 = vsel %vm299, %v811, %v815
      %v817 = vshrl.u32 %v759, 16
      %v819 = vrot.slane %v817, 4
      %v820 = vor.u32 %v819, %v815
      %v821 = vrot.slane %v820, 4
      %v823 = vshll.u32 %v760, 16
      %v825 = vrot.slane %v823, 5
      %v826 = vsel %vm299, %v821, %v825
      %v828 = vshrl.u32 %v761, 16
      %v830 = vrot.slane %v828, 4
      %v831 = vshll.u32 %v761, 16
      %v833 = vrot.slane %v831, 5
      %v834 = vor.u32 %v830, %v833
      %v835 = vrot.slane %v834, 4
      %v837 = vshll.u32 %v762, 16
      %v839 = vrot.slane %v837, 5
      %v840 = vsel %vm299, %v835, %v839
      %v841 = vshrl.u32 %v762, 16
      %v843 = vrot.slane %v841, 4
      %v844 = vor.u32 %v843, %v839
      %v845 = vrot.slane %v844, 4
      %v847 = vshll.u32 %v763, 16
      %v849 = vrot.slane %v847, 5
      %v850 = vsel %vm299, %v845, %v849
      %v852 = vshrl.u32 %v764, 16
      %v854 = vrot.slane %v852, 4
      %v855 = vshll.u32 %v764, 16
      %v857 = vrot.slane %v855, 5
      %v858 = vor.u32 %v854, %v857
      %v859 = vrot.slane %v858, 4
      %v861 = vshll.u32 %v765, 16
      %v863 = vrot.slane %v861, 5
      %v864 = vsel %vm299, %v859, %v863
      %v865 = vshrl.u32 %v765, 16
      %v867 = vrot.slane %v865, 4
      %v868 = vor.u32 %v867, %v863
      %v869 = vrot.slane %v868, 4
      %v871 = vshll.u32 %v766, 16
      %v873 = vrot.slane %v871, 5
      %v874 = vsel %vm299, %v869, %v873
      %v876 = vshrl.u32 %v767, 16
      %v878 = vrot.slane %v876, 4
      %v879 = vshll.u32 %v767, 16
      %v881 = vrot.slane %v879, 5
      %v882 = vor.u32 %v878, %v881
      %v883 = vrot.slane %v882, 4
      %v885 = vshll.u32 %v768, 16
      %v887 = vrot.slane %v885, 5
      %v888 = vsel %vm299, %v883, %v887
      %v889 = vshrl.u32 %v768, 16
      %v891 = vrot.slane %v889, 4
      %v892 = vor.u32 %v891, %v887
      %v893 = vrot.slane %v892, 4
      %v895 = vshll.u32 %v769, 16
      %v897 = vrot.slane %v895, 5
      %v898 = vsel %vm299, %v893, %v897
      %v900 = vshrl.u32 %v770, 16
      %v902 = vrot.slane %v900, 4
      %v903 = vshll.u32 %v770, 16
      %v905 = vrot.slane %v903, 5
      %v906 = vor.u32 %v902, %v905
      %v907 = vrot.slane %v906, 4
      %v909 = vshll.u32 %v771, 16
      %v911 = vrot.slane %v909, 5
      %v912 = vsel %vm299, %v907, %v911
      %v913 = vshrl.u32 %v771, 16
      %v915 = vrot.slane %v913, 4
      %v916 = vor.u32 %v915, %v911
      %v917 = vrot.slane %v916, 4
      %v919 = vshll.u32 %v772, 16
      %v921 = vrot.slane %v919, 5
      %v922 = vsel %vm299, %v917, %v921
      %v924 = vshrl.u32 %v773, 16
      %v926 = vrot.slane %v924, 4
      %v927 = vshll.u32 %v773, 16
      %v929 = vrot.slane %v927, 5
      %v930 = vor.u32 %v926, %v929
      %v931 = vrot.slane %v930, 4
      %v933 = vshll.u32 %v774, 16
      %v935 = vrot.slane %v933, 5
      %v936 = vsel %vm299, %v931, %v935
      %v937 = vshrl.u32 %v774, 16
      %v939 = vrot.slane %v937, 4
      %v940 = vor.u32 %v939, %v935
      %v941 = vrot.slane %v940, 4
      %v943 = vshll.u32 %v775, 16
      %v945 = vrot.slane %v943, 5
      %v946 = vsel %vm299, %v941, %v945
      %v948 = vshrl.u32 %v776, 16
      %v950 = vrot.slane %v948, 4
      %v951 = vshll.u32 %v776, 16
      %v953 = vrot.slane %v951, 5
      %v954 = vor.u32 %v950, %v953
      %v955 = vrot.slane %v954, 4
      %v957 = vshll.u32 %v777, 16
      %v959 = vrot.slane %v957, 5
      %v960 = vsel %vm299, %v955, %v959
      %v961 = vshrl.u32 %v777, 16
      %v963 = vrot.slane %v961, 4
      %v964 = vor.u32 %v963, %v959
      %v965 = vrot.slane %v964, 4
      %v967 = vshll.u32 %v778, 16
      %v969 = vrot.slane %v967, 5
      %v970 = vsel %vm299, %v965, %v969
      %v971 = vunpack.c.l.b16 %v792
      %v972 = vunpack.c.l.b16 %v802
      %v973 = vunpack.c.l.b16 %v816
      %v974 = vunpack.c.l.b16 %v826
      %v975 = vunpack.c.l.b16 %v840
      %v976 = vunpack.c.l.b16 %v850
      %v977 = vunpack.c.l.b16 %v864
      %v978 = vunpack.c.l.b16 %v874
      %v979 = vunpack.c.l.b16 %v888
      %v980 = vunpack.c.l.b16 %v898
      %v981 = vunpack.c.l.b16 %v912
      %v982 = vunpack.c.l.b16 %v922
      %v983 = vunpack.c.l.b16 %v936
      %v984 = vunpack.c.l.b16 %v946
      %v985 = vunpack.c.l.b16 %v960
      %v986 = vunpack.c.l.b16 %v970
      %v987 = vpack.c.b16 %v972, %v971
      %v988 = vpack.c.b16 %v974, %v973
      %v989 = vpack.c.b16 %v976, %v975
      %v990 = vpack.c.b16 %v978, %v977
      %v991 = vpack.c.b16 %v980, %v979
      %v992 = vpack.c.b16 %v982, %v981
      %v993 = vpack.c.b16 %v984, %v983
      %v994 = vpack.c.b16 %v986, %v985
      %1003 = vst [vmem:[#allocation2 + $0x20] sm:$0xff] %v987
      %1004 = vst [vmem:[#allocation2 + $0x68] sm:$0xff] %v988
      %1005 = vst [vmem:[#allocation2 + $0xb0] sm:$0xff] %v989
      %1006 = vst [vmem:[#allocation2 + $0xf8] sm:$0xff] %v990
      %1007 = vst [vmem:[#allocation2 + $0x140] sm:$0xff] %v991
      %1008 = vst [vmem:[#allocation2 + $0x188] sm:$0xff] %v992
      %1009 = vst [vmem:[#allocation2 + $0x1d0] sm:$0xff] %v993
      %1010 = vst [vmem:[#allocation2 + $0x218] sm:$0xff] %v994
      %v1011 = vld [vmem:[%s682] sm:$0xe]
      %v1012 = vld [vmem:[%s682 + $0x4] sm:$0xf]
      %v1013 = vld [vmem:[%s682 + $0x8] sm:$0x1]
      %v1014 = vld [vmem:[%s682 + $0xc] sm:$0xe]
      %v1015 = vld [vmem:[%s682 + $0x10] sm:$0xf]
      %v1016 = vld [vmem:[%s682 + $0x14] sm:$0x1]
      %v1017 = vld [vmem:[%s682 + $0x18] sm:$0xe]
      %v1018 = vld [vmem:[%s682 + $0x1c] sm:$0xf]
      %v1019 = vld [vmem:[%s682 + $0x20] sm:$0x1]
      %v1020 = vld [vmem:[%s682 + $0x24] sm:$0xe]
      %v1021 = vld [vmem:[%s682 + $0x28] sm:$0xf]
      %v1022 = vld [vmem:[%s682 + $0x2c] sm:$0x1]
      %v1023 = vld [vmem:[%s682 + $0x30] sm:$0xe]
      %v1024 = vld [vmem:[%s682 + $0x34] sm:$0xf]
      %v1025 = vld [vmem:[%s682 + $0x38] sm:$0x1]
      %v1026 = vld [vmem:[%s682 + $0x3c] sm:$0xe]
      %v1027 = vld [vmem:[%s682 + $0x40] sm:$0xf]
      %v1028 = vld [vmem:[%s682 + $0x44] sm:$0x1]
      %v1029 = vld [vmem:[%s682 + $0x48] sm:$0xe]
      %v1030 = vld [vmem:[%s682 + $0x4c] sm:$0xf]
      %v1031 = vld [vmem:[%s682 + $0x50] sm:$0x1]
      %v1032 = vld [vmem:[%s682 + $0x54] sm:$0xe]
      %v1033 = vld [vmem:[%s682 + $0x58] sm:$0xf]
      %v1034 = vld [vmem:[%s682 + $0x5c] sm:$0x1]
      %v1059 = vrot.slane %v1011, 5
      %v1060 = vrot.slane %v1059, 4
      %v1061 = vrot.slane %v1012, 5
      %v1062 = vsel %vm582, %v1060, %v1061
      %v1063 = vrot.slane %v1061, 4
      %v1064 = vrot.slane %v1013, 5
      %v1065 = vsel %vm582, %v1063, %v1064
      %v1066 = vrot.slane %v1014, 5
      %v1067 = vrot.slane %v1066, 4
      %v1068 = vrot.slane %v1015, 5
      %v1069 = vsel %vm582, %v1067, %v1068
      %v1070 = vrot.slane %v1068, 4
      %v1071 = vrot.slane %v1016, 5
      %v1072 = vsel %vm582, %v1070, %v1071
      %v1073 = vrot.slane %v1017, 5
      %v1074 = vrot.slane %v1073, 4
      %v1075 = vrot.slane %v1018, 5
      %v1076 = vsel %vm582, %v1074, %v1075
      %v1077 = vrot.slane %v1075, 4
      %v1078 = vrot.slane %v1019, 5
      %v1079 = vsel %vm582, %v1077, %v1078
      %v1080 = vrot.slane %v1020, 5
      %v1081 = vrot.slane %v1080, 4
      %v1082 = vrot.slane %v1021, 5
      %v1083 = vsel %vm582, %v1081, %v1082
      %v1084 = vrot.slane %v1082, 4
      %v1085 = vrot.slane %v1022, 5
      %v1086 = vsel %vm582, %v1084, %v1085
      %v1087 = vrot.slane %v1023, 5
      %v1088 = vrot.slane %v1087, 4
      %v1089 = vrot.slane %v1024, 5
      %v1090 = vsel %vm582, %v1088, %v1089
      %v1091 = vrot.slane %v1089, 4
      %v1092 = vrot.slane %v1025, 5
      %v1093 = vsel %vm582, %v1091, %v1092
      %v1094 = vrot.slane %v1026, 5
      %v1095 = vrot.slane %v1094, 4
      %v1096 = vrot.slane %v1027, 5
      %v1097 = vsel %vm582, %v1095, %v1096
      %v1098 = vrot.slane %v1096, 4
      %v1099 = vrot.slane %v1028, 5
      %v1100 = vsel %vm582, %v1098, %v1099
      %v1101 = vrot.slane %v1029, 5
      %v1102 = vrot.slane %v1101, 4
      %v1103 = vrot.slane %v1030, 5
      %v1104 = vsel %vm582, %v1102, %v1103
      %v1105 = vrot.slane %v1103, 4
      %v1106 = vrot.slane %v1031, 5
      %v1107 = vsel %vm582, %v1105, %v1106
      %v1108 = vrot.slane %v1032, 5
      %v1109 = vrot.slane %v1108, 4
      %v1110 = vrot.slane %v1033, 5
      %v1111 = vsel %vm582, %v1109, %v1110
      %v1112 = vrot.slane %v1110, 4
      %v1113 = vrot.slane %v1034, 5
      %v1114 = vsel %vm582, %v1112, %v1113
      %v1115 = vunpack.c.l.b16 %v1062
      %v1116 = vunpack.c.l.b16 %v1065
      %v1117 = vunpack.c.l.b16 %v1069
      %v1118 = vunpack.c.l.b16 %v1072
      %v1119 = vunpack.c.l.b16 %v1076
      %v1120 = vunpack.c.l.b16 %v1079
      %v1121 = vunpack.c.l.b16 %v1083
      %v1122 = vunpack.c.l.b16 %v1086
      %v1123 = vunpack.c.l.b16 %v1090
      %v1124 = vunpack.c.l.b16 %v1093
      %v1125 = vunpack.c.l.b16 %v1097
      %v1126 = vunpack.c.l.b16 %v1100
      %v1127 = vunpack.c.l.b16 %v1104
      %v1128 = vunpack.c.l.b16 %v1107
      %v1129 = vunpack.c.l.b16 %v1111
      %v1130 = vunpack.c.l.b16 %v1114
      %v1131 = vpack.c.b16 %v1116, %v1115
      %v1132 = vpack.c.b16 %v1118, %v1117
      %v1133 = vpack.c.b16 %v1120, %v1119
      %v1134 = vpack.c.b16 %v1122, %v1121
      %v1135 = vpack.c.b16 %v1124, %v1123
      %v1136 = vpack.c.b16 %v1126, %v1125
      %v1137 = vpack.c.b16 %v1128, %v1127
      %v1138 = vpack.c.b16 %v1130, %v1129
      %1147 = vst [vmem:[#allocation2 + $0x28] sm:$0xff] %v1131
      %1148 = vst [vmem:[#allocation2 + $0x70] sm:$0xff] %v1132
      %1149 = vst [vmem:[#allocation2 + $0xb8] sm:$0xff] %v1133
      %1150 = vst [vmem:[#allocation2 + $0x100] sm:$0xff] %v1134
      %1151 = vst [vmem:[#allocation2 + $0x148] sm:$0xff] %v1135
      %1152 = vst [vmem:[#allocation2 + $0x190] sm:$0xff] %v1136
      %1153 = vst [vmem:[#allocation2 + $0x1d8] sm:$0xff] %v1137
      %1154 = vst [vmem:[#allocation2 + $0x220] sm:$0xff] %v1138
      %s1155 = sadd.s32 %s197, 2
      %s1156 = smul.u32 %s1155, 3
      %s1157 = smul.addr %s1156, 4
      %s1158 = scalar_lea.vmem %s184, %s1157
      %v1159 = vld [vmem:[%s1158] sm:$0xf]
      %v1160 = vld [vmem:[%s1158 + $0x4] sm:$0xf]
      %v1161 = vld [vmem:[%s1158 + $0xc] sm:$0xf]
      %v1162 = vld [vmem:[%s1158 + $0x10] sm:$0xf]
      %v1163 = vld [vmem:[%s1158 + $0x18] sm:$0xf]
      %v1164 = vld [vmem:[%s1158 + $0x1c] sm:$0xf]
      %v1165 = vld [vmem:[%s1158 + $0x24] sm:$0xf]
      %v1166 = vld [vmem:[%s1158 + $0x28] sm:$0xf]
      %v1167 = vld [vmem:[%s1158 + $0x30] sm:$0xf]
      %v1168 = vld [vmem:[%s1158 + $0x34] sm:$0xf]
      %v1169 = vld [vmem:[%s1158 + $0x3c] sm:$0xf]
      %v1170 = vld [vmem:[%s1158 + $0x40] sm:$0xf]
      %v1171 = vld [vmem:[%s1158 + $0x48] sm:$0xf]
      %v1172 = vld [vmem:[%s1158 + $0x4c] sm:$0xf]
      %v1173 = vld [vmem:[%s1158 + $0x54] sm:$0xf]
      %v1174 = vld [vmem:[%s1158 + $0x58] sm:$0xf]
      %v1191 = vunpack.c.l.b16 %v1159
      %v1192 = vunpack.c.l.b16 %v1160
      %v1193 = vunpack.c.l.b16 %v1161
      %v1194 = vunpack.c.l.b16 %v1162
      %v1195 = vunpack.c.l.b16 %v1163
      %v1196 = vunpack.c.l.b16 %v1164
      %v1197 = vunpack.c.l.b16 %v1165
      %v1198 = vunpack.c.l.b16 %v1166
      %v1199 = vunpack.c.l.b16 %v1167
      %v1200 = vunpack.c.l.b16 %v1168
      %v1201 = vunpack.c.l.b16 %v1169
      %v1202 = vunpack.c.l.b16 %v1170
      %v1203 = vunpack.c.l.b16 %v1171
      %v1204 = vunpack.c.l.b16 %v1172
      %v1205 = vunpack.c.l.b16 %v1173
      %v1206 = vunpack.c.l.b16 %v1174
      %v1207 = vpack.c.b16 %v1192, %v1191
      %v1208 = vpack.c.b16 %v1194, %v1193
      %v1209 = vpack.c.b16 %v1196, %v1195
      %v1210 = vpack.c.b16 %v1198, %v1197
      %v1211 = vpack.c.b16 %v1200, %v1199
      %v1212 = vpack.c.b16 %v1202, %v1201
      %v1213 = vpack.c.b16 %v1204, %v1203
      %v1214 = vpack.c.b16 %v1206, %v1205
      %1223 = vst [vmem:[#allocation2 + $0x30] sm:$0xff] %v1207
      %1224 = vst [vmem:[#allocation2 + $0x78] sm:$0xff] %v1208
      %1225 = vst [vmem:[#allocation2 + $0xc0] sm:$0xff] %v1209
      %1226 = vst [vmem:[#allocation2 + $0x108] sm:$0xff] %v1210
      %1227 = vst [vmem:[#allocation2 + $0x150] sm:$0xff] %v1211
      %1228 = vst [vmem:[#allocation2 + $0x198] sm:$0xff] %v1212
      %1229 = vst [vmem:[#allocation2 + $0x1e0] sm:$0xff] %v1213
      %1230 = vst [vmem:[#allocation2 + $0x228] sm:$0xff] %v1214
      %v1231 = vld [vmem:[%s1158] sm:$0xf]
      %v1232 = vld [vmem:[%s1158 + $0x4] sm:$0xf]
      %v1233 = vld [vmem:[%s1158 + $0x8] sm:$0x1]
      %v1234 = vld [vmem:[%s1158 + $0xc] sm:$0xf]
      %v1235 = vld [vmem:[%s1158 + $0x10] sm:$0xf]
      %v1236 = vld [vmem:[%s1158 + $0x14] sm:$0x1]
      %v1237 = vld [vmem:[%s1158 + $0x18] sm:$0xf]
      %v1238 = vld [vmem:[%s1158 + $0x1c] sm:$0xf]
      %v1239 = vld [vmem:[%s1158 + $0x20] sm:$0x1]
      %v1240 = vld [vmem:[%s1158 + $0x24] sm:$0xf]
      %v1241 = vld [vmem:[%s1158 + $0x28] sm:$0xf]
      %v1242 = vld [vmem:[%s1158 + $0x2c] sm:$0x1]
      %v1243 = vld [vmem:[%s1158 + $0x30] sm:$0xf]
      %v1244 = vld [vmem:[%s1158 + $0x34] sm:$0xf]
      %v1245 = vld [vmem:[%s1158 + $0x38] sm:$0x1]
      %v1246 = vld [vmem:[%s1158 + $0x3c] sm:$0xf]
      %v1247 = vld [vmem:[%s1158 + $0x40] sm:$0xf]
      %v1248 = vld [vmem:[%s1158 + $0x44] sm:$0x1]
      %v1249 = vld [vmem:[%s1158 + $0x48] sm:$0xf]
      %v1250 = vld [vmem:[%s1158 + $0x4c] sm:$0xf]
      %v1251 = vld [vmem:[%s1158 + $0x50] sm:$0x1]
      %v1252 = vld [vmem:[%s1158 + $0x54] sm:$0xf]
      %v1253 = vld [vmem:[%s1158 + $0x58] sm:$0xf]
      %v1254 = vld [vmem:[%s1158 + $0x5c] sm:$0x1]
      %v1256 = vshrl.u32 %v1231, 16
      %v1258 = vrot.slane %v1256, 4
      %v1259 = vshll.u32 %v1231, 16
      %v1261 = vrot.slane %v1259, 5
      %v1262 = vor.u32 %v1258, %v1261
      %v1263 = vrot.slane %v1262, 4
      %v1265 = vshll.u32 %v1232, 16
      %v1267 = vrot.slane %v1265, 5
      %v1268 = vsel %vm299, %v1263, %v1267
      %v1269 = vshrl.u32 %v1232, 16
      %v1271 = vrot.slane %v1269, 4
      %v1272 = vor.u32 %v1271, %v1267
      %v1273 = vrot.slane %v1272, 4
      %v1275 = vshll.u32 %v1233, 16
      %v1277 = vrot.slane %v1275, 5
      %v1278 = vsel %vm299, %v1273, %v1277
      %v1280 = vshrl.u32 %v1234, 16
      %v1282 = vrot.slane %v1280, 4
      %v1283 = vshll.u32 %v1234, 16
      %v1285 = vrot.slane %v1283, 5
      %v1286 = vor.u32 %v1282, %v1285
      %v1287 = vrot.slane %v1286, 4
      %v1289 = vshll.u32 %v1235, 16
      %v1291 = vrot.slane %v1289, 5
      %v1292 = vsel %vm299, %v1287, %v1291
      %v1293 = vshrl.u32 %v1235, 16
      %v1295 = vrot.slane %v1293, 4
      %v1296 = vor.u32 %v1295, %v1291
      %v1297 = vrot.slane %v1296, 4
      %v1299 = vshll.u32 %v1236, 16
      %v1301 = vrot.slane %v1299, 5
      %v1302 = vsel %vm299, %v1297, %v1301
      %v1304 = vshrl.u32 %v1237, 16
      %v1306 = vrot.slane %v1304, 4
      %v1307 = vshll.u32 %v1237, 16
      %v1309 = vrot.slane %v1307, 5
      %v1310 = vor.u32 %v1306, %v1309
      %v1311 = vrot.slane %v1310, 4
      %v1313 = vshll.u32 %v1238, 16
      %v1315 = vrot.slane %v1313, 5
      %v1316 = vsel %vm299, %v1311, %v1315
      %v1317 = vshrl.u32 %v1238, 16
      %v1319 = vrot.slane %v1317, 4
      %v1320 = vor.u32 %v1319, %v1315
      %v1321 = vrot.slane %v1320, 4
      %v1323 = vshll.u32 %v1239, 16
      %v1325 = vrot.slane %v1323, 5
      %v1326 = vsel %vm299, %v1321, %v1325
      %v1328 = vshrl.u32 %v1240, 16
      %v1330 = vrot.slane %v1328, 4
      %v1331 = vshll.u32 %v1240, 16
      %v1333 = vrot.slane %v1331, 5
      %v1334 = vor.u32 %v1330, %v1333
      %v1335 = vrot.slane %v1334, 4
      %v1337 = vshll.u32 %v1241, 16
      %v1339 = vrot.slane %v1337, 5
      %v1340 = vsel %vm299, %v1335, %v1339
      %v1341 = vshrl.u32 %v1241, 16
      %v1343 = vrot.slane %v1341, 4
      %v1344 = vor.u32 %v1343, %v1339
      %v1345 = vrot.slane %v1344, 4
      %v1347 = vshll.u32 %v1242, 16
      %v1349 = vrot.slane %v1347, 5
      %v1350 = vsel %vm299, %v1345, %v1349
      %v1352 = vshrl.u32 %v1243, 16
      %v1354 = vrot.slane %v1352, 4
      %v1355 = vshll.u32 %v1243, 16
      %v1357 = vrot.slane %v1355, 5
      %v1358 = vor.u32 %v1354, %v1357
      %v1359 = vrot.slane %v1358, 4
      %v1361 = vshll.u32 %v1244, 16
      %v1363 = vrot.slane %v1361, 5
      %v1364 = vsel %vm299, %v1359, %v1363
      %v1365 = vshrl.u32 %v1244, 16
      %v1367 = vrot.slane %v1365, 4
      %v1368 = vor.u32 %v1367, %v1363
      %v1369 = vrot.slane %v1368, 4
      %v1371 = vshll.u32 %v1245, 16
      %v1373 = vrot.slane %v1371, 5
      %v1374 = vsel %vm299, %v1369, %v1373
      %v1376 = vshrl.u32 %v1246, 16
      %v1378 = vrot.slane %v1376, 4
      %v1379 = vshll.u32 %v1246, 16
      %v1381 = vrot.slane %v1379, 5
      %v1382 = vor.u32 %v1378, %v1381
      %v1383 = vrot.slane %v1382, 4
      %v1385 = vshll.u32 %v1247, 16
      %v1387 = vrot.slane %v1385, 5
      %v1388 = vsel %vm299, %v1383, %v1387
      %v1389 = vshrl.u32 %v1247, 16
      %v1391 = vrot.slane %v1389, 4
      %v1392 = vor.u32 %v1391, %v1387
      %v1393 = vrot.slane %v1392, 4
      %v1395 = vshll.u32 %v1248, 16
      %v1397 = vrot.slane %v1395, 5
      %v1398 = vsel %vm299, %v1393, %v1397
      %v1400 = vshrl.u32 %v1249, 16
      %v1402 = vrot.slane %v1400, 4
      %v1403 = vshll.u32 %v1249, 16
      %v1405 = vrot.slane %v1403, 5
      %v1406 = vor.u32 %v1402, %v1405
      %v1407 = vrot.slane %v1406, 4
      %v1409 = vshll.u32 %v1250, 16
      %v1411 = vrot.slane %v1409, 5
      %v1412 = vsel %vm299, %v1407, %v1411
      %v1413 = vshrl.u32 %v1250, 16
      %v1415 = vrot.slane %v1413, 4
      %v1416 = vor.u32 %v1415, %v1411
      %v1417 = vrot.slane %v1416, 4
      %v1419 = vshll.u32 %v1251, 16
      %v1421 = vrot.slane %v1419, 5
      %v1422 = vsel %vm299, %v1417, %v1421
      %v1424 = vshrl.u32 %v1252, 16
      %v1426 = vrot.slane %v1424, 4
      %v1427 = vshll.u32 %v1252, 16
      %v1429 = vrot.slane %v1427, 5
      %v1430 = vor.u32 %v1426, %v1429
      %v1431 = vrot.slane %v1430, 4
      %v1433 = vshll.u32 %v1253, 16
      %v1435 = vrot.slane %v1433, 5
      %v1436 = vsel %vm299, %v1431, %v1435
      %v1437 = vshrl.u32 %v1253, 16
      %v1439 = vrot.slane %v1437, 4
      %v1440 = vor.u32 %v1439, %v1435
      %v1441 = vrot.slane %v1440, 4
      %v1443 = vshll.u32 %v1254, 16
      %v1445 = vrot.slane %v1443, 5
      %v1446 = vsel %vm299, %v1441, %v1445
      %v1447 = vunpack.c.l.b16 %v1268
      %v1448 = vunpack.c.l.b16 %v1278
      %v1449 = vunpack.c.l.b16 %v1292
      %v1450 = vunpack.c.l.b16 %v1302
      %v1451 = vunpack.c.l.b16 %v1316
      %v1452 = vunpack.c.l.b16 %v1326
      %v1453 = vunpack.c.l.b16 %v1340
      %v1454 = vunpack.c.l.b16 %v1350
      %v1455 = vunpack.c.l.b16 %v1364
      %v1456 = vunpack.c.l.b16 %v1374
      %v1457 = vunpack.c.l.b16 %v1388
      %v1458 = vunpack.c.l.b16 %v1398
      %v1459 = vunpack.c.l.b16 %v1412
      %v1460 = vunpack.c.l.b16 %v1422
      %v1461 = vunpack.c.l.b16 %v1436
      %v1462 = vunpack.c.l.b16 %v1446
      %v1463 = vpack.c.b16 %v1448, %v1447
      %v1464 = vpack.c.b16 %v1450, %v1449
      %v1465 = vpack.c.b16 %v1452, %v1451
      %v1466 = vpack.c.b16 %v1454, %v1453
      %v1467 = vpack.c.b16 %v1456, %v1455
      %v1468 = vpack.c.b16 %v1458, %v1457
      %v1469 = vpack.c.b16 %v1460, %v1459
      %v1470 = vpack.c.b16 %v1462, %v1461
      %1479 = vst [vmem:[#allocation2 + $0x38] sm:$0xff] %v1463
      %1480 = vst [vmem:[#allocation2 + $0x80] sm:$0xff] %v1464
      %1481 = vst [vmem:[#allocation2 + $0xc8] sm:$0xff] %v1465
      %1482 = vst [vmem:[#allocation2 + $0x110] sm:$0xff] %v1466
      %1483 = vst [vmem:[#allocation2 + $0x158] sm:$0xff] %v1467
      %1484 = vst [vmem:[#allocation2 + $0x1a0] sm:$0xff] %v1468
      %1485 = vst [vmem:[#allocation2 + $0x1e8] sm:$0xff] %v1469
      %1486 = vst [vmem:[#allocation2 + $0x230] sm:$0xff] %v1470
      %v1487 = vld [vmem:[%s1158] sm:$0xe]
      %v1488 = vld [vmem:[%s1158 + $0x4] sm:$0xf]
      %v1489 = vld [vmem:[%s1158 + $0x8] sm:$0x1]
      %v1490 = vld [vmem:[%s1158 + $0xc] sm:$0xe]
      %v1491 = vld [vmem:[%s1158 + $0x10] sm:$0xf]
      %v1492 = vld [vmem:[%s1158 + $0x14] sm:$0x1]
      %v1493 = vld [vmem:[%s1158 + $0x18] sm:$0xe]
      %v1494 = vld [vmem:[%s1158 + $0x1c] sm:$0xf]
      %v1495 = vld [vmem:[%s1158 + $0x20] sm:$0x1]
      %v1496 = vld [vmem:[%s1158 + $0x24] sm:$0xe]
      %v1497 = vld [vmem:[%s1158 + $0x28] sm:$0xf]
      %v1498 = vld [vmem:[%s1158 + $0x2c] sm:$0x1]
      %v1499 = vld [vmem:[%s1158 + $0x30] sm:$0xe]
      %v1500 = vld [vmem:[%s1158 + $0x34] sm:$0xf]
      %v1501 = vld [vmem:[%s1158 + $0x38] sm:$0x1]
      %v1502 = vld [vmem:[%s1158 + $0x3c] sm:$0xe]
      %v1503 = vld [vmem:[%s1158 + $0x40] sm:$0xf]
      %v1504 = vld [vmem:[%s1158 + $0x44] sm:$0x1]
      %v1505 = vld [vmem:[%s1158 + $0x48] sm:$0xe]
      %v1506 = vld [vmem:[%s1158 + $0x4c] sm:$0xf]
      %v1507 = vld [vmem:[%s1158 + $0x50] sm:$0x1]
      %v1508 = vld [vmem:[%s1158 + $0x54] sm:$0xe]
      %v1509 = vld [vmem:[%s1158 + $0x58] sm:$0xf]
      %v1510 = vld [vmem:[%s1158 + $0x5c] sm:$0x1]
      %v1535 = vrot.slane %v1487, 5
      %v1536 = vrot.slane %v1535, 4
      %v1537 = vrot.slane %v1488, 5
      %v1538 = vsel %vm582, %v1536, %v1537
      %v1539 = vrot.slane %v1537, 4
      %v1540 = vrot.slane %v1489, 5
      %v1541 = vsel %vm582, %v1539, %v1540
      %v1542 = vrot.slane %v1490, 5
      %v1543 = vrot.slane %v1542, 4
      %v1544 = vrot.slane %v1491, 5
      %v1545 = vsel %vm582, %v1543, %v1544
      %v1546 = vrot.slane %v1544, 4
      %v1547 = vrot.slane %v1492, 5
      %v1548 = vsel %vm582, %v1546, %v1547
      %v1549 = vrot.slane %v1493, 5
      %v1550 = vrot.slane %v1549, 4
      %v1551 = vrot.slane %v1494, 5
      %v1552 = vsel %vm582, %v1550, %v1551
      %v1553 = vrot.slane %v1551, 4
      %v1554 = vrot.slane %v1495, 5
      %v1555 = vsel %vm582, %v1553, %v1554
      %v1556 = vrot.slane %v1496, 5
      %v1557 = vrot.slane %v1556, 4
      %v1558 = vrot.slane %v1497, 5
      %v1559 = vsel %vm582, %v1557, %v1558
      %v1560 = vrot.slane %v1558, 4
      %v1561 = vrot.slane %v1498, 5
      %v1562 = vsel %vm582, %v1560, %v1561
      %v1563 = vrot.slane %v1499, 5
      %v1564 = vrot.slane %v1563, 4
      %v1565 = vrot.slane %v1500, 5
      %v1566 = vsel %vm582, %v1564, %v1565
      %v1567 = vrot.slane %v1565, 4
      %v1568 = vrot.slane %v1501, 5
      %v1569 = vsel %vm582, %v1567, %v1568
      %v1570 = vrot.slane %v1502, 5
      %v1571 = vrot.slane %v1570, 4
      %v1572 = vrot.slane %v1503, 5
      %v1573 = vsel %vm582, %v1571, %v1572
      %v1574 = vrot.slane %v1572, 4
      %v1575 = vrot.slane %v1504, 5
      %v1576 = vsel %vm582, %v1574, %v1575
      %v1577 = vrot.slane %v1505, 5
      %v1578 = vrot.slane %v1577, 4
      %v1579 = vrot.slane %v1506, 5
      %v1580 = vsel %vm582, %v1578, %v1579
      %v1581 = vrot.slane %v1579, 4
      %v1582 = vrot.slane %v1507, 5
      %v1583 = vsel %vm582, %v1581, %v1582
      %v1584 = vrot.slane %v1508, 5
      %v1585 = vrot.slane %v1584, 4
      %v1586 = vrot.slane %v1509, 5
      %v1587 = vsel %vm582, %v1585, %v1586
      %v1588 = vrot.slane %v1586, 4
      %v1589 = vrot.slane %v1510, 5
      %v1590 = vsel %vm582, %v1588, %v1589
      %v1591 = vunpack.c.l.b16 %v1538
      %v1592 = vunpack.c.l.b16 %v1541
      %v1593 = vunpack.c.l.b16 %v1545
      %v1594 = vunpack.c.l.b16 %v1548
      %v1595 = vunpack.c.l.b16 %v1552
      %v1596 = vunpack.c.l.b16 %v1555
      %v1597 = vunpack.c.l.b16 %v1559
      %v1598 = vunpack.c.l.b16 %v1562
      %v1599 = vunpack.c.l.b16 %v1566
      %v1600 = vunpack.c.l.b16 %v1569
      %v1601 = vunpack.c.l.b16 %v1573
      %v1602 = vunpack.c.l.b16 %v1576
      %v1603 = vunpack.c.l.b16 %v1580
      %v1604 = vunpack.c.l.b16 %v1583
      %v1605 = vunpack.c.l.b16 %v1587
      %v1606 = vunpack.c.l.b16 %v1590
      %v1607 = vpack.c.b16 %v1592, %v1591
      %v1608 = vpack.c.b16 %v1594, %v1593
      %v1609 = vpack.c.b16 %v1596, %v1595
      %v1610 = vpack.c.b16 %v1598, %v1597
      %v1611 = vpack.c.b16 %v1600, %v1599
      %v1612 = vpack.c.b16 %v1602, %v1601
      %v1613 = vpack.c.b16 %v1604, %v1603
      %v1614 = vpack.c.b16 %v1606, %v1605
      %1623 = vst [vmem:[#allocation2 + $0x40] sm:$0xff] %v1607
      %1624 = vst [vmem:[#allocation2 + $0x88] sm:$0xff] %v1608
      %1625 = vst [vmem:[#allocation2 + $0xd0] sm:$0xff] %v1609
      %1626 = vst [vmem:[#allocation2 + $0x118] sm:$0xff] %v1610
      %1627 = vst [vmem:[#allocation2 + $0x160] sm:$0xff] %v1611
      %1628 = vst [vmem:[#allocation2 + $0x1a8] sm:$0xff] %v1612
      %1629 = vst [vmem:[#allocation2 + $0x1f0] sm:$0xff] %v1613
      %1630 = vst [vmem:[#allocation2 + $0x238] sm:$0xff] %v1614
      %v1631 = vld [vmem:[%s2] sm:$0x1]
      %v1632 = vld [vmem:[#allocation2] sm:$0xff]
      %v1633 = vld [vmem:[#allocation2 + $0x8] sm:$0xff]
      %v1634 = vld [vmem:[#allocation2 + $0x48] sm:$0xff]
      %v1635 = vld [vmem:[#allocation2 + $0x50] sm:$0xff]
      %v1636 = vld [vmem:[#allocation2 + $0x90] sm:$0xff]
      %v1637 = vld [vmem:[#allocation2 + $0x98] sm:$0xff]
      %v1638 = vld [vmem:[#allocation2 + $0xd8] sm:$0xff]
      %v1639 = vld [vmem:[#allocation2 + $0xe0] sm:$0xff]
      %v1640 = vld [vmem:[#allocation2 + $0x120] sm:$0xff]
      %v1641 = vld [vmem:[#allocation2 + $0x128] sm:$0xff]
      %v1642 = vld [vmem:[#allocation2 + $0x168] sm:$0xff]
      %v1643 = vld [vmem:[#allocation2 + $0x170] sm:$0xff]
      %v1644 = vld [vmem:[#allocation2 + $0x1b0] sm:$0xff]
      %v1645 = vld [vmem:[#allocation2 + $0x1b8] sm:$0xff]
      %v1646 = vld [vmem:[#allocation2 + $0x1f8] sm:$0xff]
      %v1647 = vld [vmem:[#allocation2 + $0x200] sm:$0xff]
      %v1648 = vld [vmem:[%s1] sm:$0xf]
      %v1649 = vld [vmem:[%s1 + $0x4] sm:$0xf]
      %v1650 = vld [vmem:[%s1 + $0x8] sm:$0xf]
      %v1651 = vld [vmem:[%s1 + $0xc] sm:$0xf]
      %v1652 = vld [vmem:[%s1 + $0x10] sm:$0xf]
      %v1653 = vld [vmem:[%s1 + $0x14] sm:$0xf]
      %v1654 = vld [vmem:[%s1 + $0x18] sm:$0xf]
      %v1655 = vld [vmem:[%s1 + $0x1c] sm:$0xf]
      %v1656 = vld [vmem:[%s1 + $0x20] sm:$0xf]
      %v1657 = vld [vmem:[%s1 + $0x24] sm:$0xf]
      %v1658 = vld [vmem:[%s1 + $0x28] sm:$0xf]
      %v1659 = vld [vmem:[%s1 + $0x2c] sm:$0xf]
      %v1660 = vld [vmem:[%s1 + $0x30] sm:$0xf]
      %v1661 = vld [vmem:[%s1 + $0x34] sm:$0xf]
      %v1662 = vld [vmem:[%s1 + $0x38] sm:$0xf]
      %v1663 = vld [vmem:[%s1 + $0x3c] sm:$0xf]
      %v1664 = vld [vmem:[%s1 + $0x40] sm:$0xf]
      %v1665 = vld [vmem:[%s1 + $0x44] sm:$0xf]
      %v1666 = vld [vmem:[%s1 + $0x48] sm:$0xf]
      %v1667 = vld [vmem:[%s1 + $0x4c] sm:$0xf]
      %v1668 = vld [vmem:[%s1 + $0x50] sm:$0xf]
      %v1669 = vld [vmem:[%s1 + $0x54] sm:$0xf]
      %v1670 = vld [vmem:[%s1 + $0x58] sm:$0xf]
      %v1671 = vld [vmem:[%s1 + $0x5c] sm:$0xf]
      %v1672 = vld [vmem:[%s1 + $0x60] sm:$0xf]
      %v1673 = vld [vmem:[%s1 + $0x64] sm:$0xf]
      %v1674 = vld [vmem:[%s1 + $0x68] sm:$0xf]
      %v1675 = vld [vmem:[%s1 + $0x6c] sm:$0xf]
      %v1676 = vld [vmem:[%s1 + $0x70] sm:$0xf]
      %v1677 = vld [vmem:[%s1 + $0x74] sm:$0xf]
      %v1678 = vld [vmem:[%s1 + $0x78] sm:$0xf]
      %v1679 = vld [vmem:[%s1 + $0x7c] sm:$0xf]
      %v1680 = vld [vmem:[#allocation2 + $0x18] sm:$0xff]
      %v1681 = vld [vmem:[#allocation2 + $0x20] sm:$0xff]
      %v1682 = vld [vmem:[#allocation2 + $0x60] sm:$0xff]
      %v1683 = vld [vmem:[#allocation2 + $0x68] sm:$0xff]
      %v1684 = vld [vmem:[#allocation2 + $0xa8] sm:$0xff]
      %v1685 = vld [vmem:[#allocation2 + $0xb0] sm:$0xff]
      %v1686 = vld [vmem:[#allocation2 + $0xf0] sm:$0xff]
      %v1687 = vld [vmem:[#allocation2 + $0xf8] sm:$0xff]
      %v1688 = vld [vmem:[#allocation2 + $0x138] sm:$0xff]
      %v1689 = vld [vmem:[#allocation2 + $0x140] sm:$0xff]
      %v1690 = vld [vmem:[#allocation2 + $0x180] sm:$0xff]
      %v1691 = vld [vmem:[#allocation2 + $0x188] sm:$0xff]
      %v1692 = vld [vmem:[#allocation2 + $0x1c8] sm:$0xff]
      %v1693 = vld [vmem:[#allocation2 + $0x1d0] sm:$0xff]
      %v1694 = vld [vmem:[#allocation2 + $0x210] sm:$0xff]
      %v1695 = vld [vmem:[#allocation2 + $0x218] sm:$0xff]
      %s1696 = scalar_lea.vmem %s1, 128
      %v1697 = vld [vmem:[%s1696] sm:$0xf]
      %v1698 = vld [vmem:[%s1696 + $0x4] sm:$0xf]
      %v1699 = vld [vmem:[%s1696 + $0x8] sm:$0xf]
      %v1700 = vld [vmem:[%s1696 + $0xc] sm:$0xf]
      %v1701 = vld [vmem:[%s1696 + $0x10] sm:$0xf]
      %v1702 = vld [vmem:[%s1696 + $0x14] sm:$0xf]
      %v1703 = vld [vmem:[%s1696 + $0x18] sm:$0xf]
      %v1704 = vld [vmem:[%s1696 + $0x1c] sm:$0xf]
      %v1705 = vld [vmem:[%s1696 + $0x20] sm:$0xf]
      %v1706 = vld [vmem:[%s1696 + $0x24] sm:$0xf]
      %v1707 = vld [vmem:[%s1696 + $0x28] sm:$0xf]
      %v1708 = vld [vmem:[%s1696 + $0x2c] sm:$0xf]
      %v1709 = vld [vmem:[%s1696 + $0x30] sm:$0xf]
      %v1710 = vld [vmem:[%s1696 + $0x34] sm:$0xf]
      %v1711 = vld [vmem:[%s1696 + $0x38] sm:$0xf]
      %v1712 = vld [vmem:[%s1696 + $0x3c] sm:$0xf]
      %v1713 = vld [vmem:[%s1696 + $0x40] sm:$0xf]
      %v1714 = vld [vmem:[%s1696 + $0x44] sm:$0xf]
      %v1715 = vld [vmem:[%s1696 + $0x48] sm:$0xf]
      %v1716 = vld [vmem:[%s1696 + $0x4c] sm:$0xf]
      %v1717 = vld [vmem:[%s1696 + $0x50] sm:$0xf]
      %v1718 = vld [vmem:[%s1696 + $0x54] sm:$0xf]
      %v1719 = vld [vmem:[%s1696 + $0x58] sm:$0xf]
      %v1720 = vld [vmem:[%s1696 + $0x5c] sm:$0xf]
      %v1721 = vld [vmem:[%s1696 + $0x60] sm:$0xf]
      %v1722 = vld [vmem:[%s1696 + $0x64] sm:$0xf]
      %v1723 = vld [vmem:[%s1696 + $0x68] sm:$0xf]
      %v1724 = vld [vmem:[%s1696 + $0x6c] sm:$0xf]
      %v1725 = vld [vmem:[%s1696 + $0x70] sm:$0xf]
      %v1726 = vld [vmem:[%s1696 + $0x74] sm:$0xf]
      %v1727 = vld [vmem:[%s1696 + $0x78] sm:$0xf]
      %v1728 = vld [vmem:[%s1696 + $0x7c] sm:$0xf]
      %v1761 = vunpack.c.l.b16 %v1697
      %v1762 = vunpack.c.l.b16 %v1698
      %v1763 = vunpack.c.l.b16 %v1699
      %v1764 = vunpack.c.l.b16 %v1700
      %v1765 = vunpack.c.l.b16 %v1701
      %v1766 = vunpack.c.l.b16 %v1702
      %v1767 = vunpack.c.l.b16 %v1703
      %v1768 = vunpack.c.l.b16 %v1704
      %v1769 = vunpack.c.l.b16 %v1705
      %v1770 = vunpack.c.l.b16 %v1706
      %v1771 = vunpack.c.l.b16 %v1707
      %v1772 = vunpack.c.l.b16 %v1708
      %v1773 = vunpack.c.l.b16 %v1709
      %v1774 = vunpack.c.l.b16 %v1710
      %v1775 = vunpack.c.l.b16 %v1711
      %v1776 = vunpack.c.l.b16 %v1712
      %v1777 = vunpack.c.l.b16 %v1713
      %v1778 = vunpack.c.l.b16 %v1714
      %v1779 = vunpack.c.l.b16 %v1715
      %v1780 = vunpack.c.l.b16 %v1716
      %v1781 = vunpack.c.l.b16 %v1717
      %v1782 = vunpack.c.l.b16 %v1718
      %v1783 = vunpack.c.l.b16 %v1719
      %v1784 = vunpack.c.l.b16 %v1720
      %v1785 = vunpack.c.l.b16 %v1721
      %v1786 = vunpack.c.l.b16 %v1722
      %v1787 = vunpack.c.l.b16 %v1723
      %v1788 = vunpack.c.l.b16 %v1724
      %v1789 = vunpack.c.l.b16 %v1725
      %v1790 = vunpack.c.l.b16 %v1726
      %v1791 = vunpack.c.l.b16 %v1727
      %v1792 = vunpack.c.l.b16 %v1728
      %v1793 = vpack.c.b16 %v1762, %v1761
      %v1794 = vpack.c.b16 %v1764, %v1763
      %v1795 = vpack.c.b16 %v1766, %v1765
      %v1796 = vpack.c.b16 %v1768, %v1767
      %v1797 = vpack.c.b16 %v1770, %v1769
      %v1798 = vpack.c.b16 %v1772, %v1771
      %v1799 = vpack.c.b16 %v1774, %v1773
      %v1800 = vpack.c.b16 %v1776, %v1775
      %v1801 = vpack.c.b16 %v1778, %v1777
      %v1802 = vpack.c.b16 %v1780, %v1779
      %v1803 = vpack.c.b16 %v1782, %v1781
      %v1804 = vpack.c.b16 %v1784, %v1783
      %v1805 = vpack.c.b16 %v1786, %v1785
      %v1806 = vpack.c.b16 %v1788, %v1787
      %v1807 = vpack.c.b16 %v1790, %v1789
      %v1808 = vpack.c.b16 %v1792, %v1791
      %1825 = vmatprep.subr.bf16.mxu0 0
      %1826 = vmatpush1.bf16.msra.mxu0 %v1793
      %1827 = vmatprep.subr.bf16.mxu0 0
      %1828 = vmatpush1.bf16.msra.mxu0 %v1794
      %1829 = vmatprep.subr.bf16.mxu0 0
      %1830 = vmatpush1.bf16.msra.mxu0 %v1795
      %1831 = vmatprep.subr.bf16.mxu0 0
      %1832 = vmatpush1.bf16.msra.mxu0 %v1796
      %1833 = vmatprep.subr.bf16.mxu0 0
      %1834 = vmatpush1.bf16.msra.mxu0 %v1797
      %1835 = vmatprep.subr.bf16.mxu0 0
      %1836 = vmatpush1.bf16.msra.mxu0 %v1798
      %1837 = vmatprep.subr.bf16.mxu0 0
      %1838 = vmatpush1.bf16.msra.mxu0 %v1799
      %1839 = vmatprep.subr.bf16.mxu0 0
      %1840 = vmatpush1.bf16.msra.mxu0 %v1800
      %1841 = vmatprep.subr.bf16.mxu0 0
      %1842 = vmatpush1.bf16.msra.mxu0 %v1801
      %1843 = vmatprep.subr.bf16.mxu0 0
      %1844 = vmatpush1.bf16.msra.mxu0 %v1802
      %1845 = vmatprep.subr.bf16.mxu0 0
      %1846 = vmatpush1.bf16.msra.mxu0 %v1803
      %1847 = vmatprep.subr.bf16.mxu0 0
      %1848 = vmatpush1.bf16.msra.mxu0 %v1804
      %1849 = vmatprep.subr.bf16.mxu0 0
      %1850 = vmatpush1.bf16.msra.mxu0 %v1805
      %1851 = vmatprep.subr.bf16.mxu0 0
      %1852 = vmatpush1.bf16.msra.mxu0 %v1806
      %1853 = vmatprep.subr.bf16.mxu0 0
      %1854 = vmatpush1.bf16.msra.mxu0 %v1807
      %1855 = vmatprep.subr.bf16.mxu0 0
      %1856 = vmatpush1.bf16.msra.mxu0 %v1808
      %1857 = vmatprep.mubr.bf16.mxu0 %v1681
      %1858 = vmatmul.mubr.bf16.gmra.mrb[0].mxu0 %v1680
      %v1859 = vpop.f32.mrb[0].mxu0
      %v1860 = vadd.f32 0.0, %v1859
      %v1861 = vpop.f32.mrb[0].mxu0
      %v1862 = vpop.f32.mrb[0].mxu0
      %v1863 = vadd.f32 0.0, %v1862
      %v1864 = vpop.f32.mrb[0].mxu0
      %1865 = vmatprep.mubr.bf16.mxu0 %v1683
      %1866 = vmatmul.mubr.bf16.gmra.mrb[0].mxu0 %v1682
      %v1867 = vpop.f32.mrb[0].mxu0
      %v1868 = vadd.f32 0.0, %v1867
      %v1869 = vpop.f32.mrb[0].mxu0
      %v1870 = vpop.f32.mrb[0].mxu0
      %v1871 = vadd.f32 0.0, %v1870
      %v1872 = vpop.f32.mrb[0].mxu0
      %1873 = vmatprep.mubr.bf16.mxu0 %v1685
      %1874 = vmatmul.mubr.bf16.gmra.mrb[0].mxu0 %v1684
      %v1875 = vpop.f32.mrb[0].mxu0
      %v1876 = vadd.f32 0.0, %v1875
      %v1877 = vpop.f32.mrb[0].mxu0
      %v1878 = vpop.f32.mrb[0].mxu0
      %v1879 = vadd.f32 0.0, %v1878
      %v1880 = vpop.f32.mrb[0].mxu0
      %1881 = vmatprep.mubr.bf16.mxu0 %v1687
      %1882 = vmatmul.mubr.bf16.gmra.mrb[0].mxu0 %v1686
      %v1883 = vpop.f32.mrb[0].mxu0
      %v1884 = vadd.f32 0.0, %v1883
      %v1885 = vpop.f32.mrb[0].mxu0
      %v1886 = vpop.f32.mrb[0].mxu0
      %v1887 = vadd.f32 0.0, %v1886
      %v1888 = vpop.f32.mrb[0].mxu0
      %1889 = vmatprep.mubr.bf16.mxu0 %v1689
      %1890 = vmatmul.mubr.bf16.gmra.mrb[0].mxu0 %v1688
      %v1891 = vpop.f32.mrb[0].mxu0
      %v1892 = vadd.f32 0.0, %v1891
      %v1893 = vpop.f32.mrb[0].mxu0
      %v1894 = vpop.f32.mrb[0].mxu0
      %v1895 = vadd.f32 0.0, %v1894
      %v1896 = vpop.f32.mrb[0].mxu0
      %1897 = vmatprep.mubr.bf16.mxu0 %v1691
      %1898 = vmatmul.mubr.bf16.gmra.mrb[0].mxu0 %v1690
      %v1899 = vpop.f32.mrb[0].mxu0
      %v1900 = vadd.f32 0.0, %v1899
      %v1901 = vpop.f32.mrb[0].mxu0
      %v1902 = vpop.f32.mrb[0].mxu0
      %v1903 = vadd.f32 0.0, %v1902
      %v1904 = vpop.f32.mrb[0].mxu0
      %1905 = vmatprep.mubr.bf16.mxu0 %v1693
      %1906 = vmatmul.mubr.bf16.gmra.mrb[0].mxu0 %v1692
      %v1907 = vpop.f32.mrb[0].mxu0
      %v1908 = vadd.f32 0.0, %v1907
      %v1909 = vpop.f32.mrb[0].mxu0
      %v1910 = vpop.f32.mrb[0].mxu0
      %v1911 = vadd.f32 0.0, %v1910
      %v1912 = vpop.f32.mrb[0].mxu0
      %1913 = vmatprep.mubr.bf16.mxu0 %v1695
      %1914 = vmatmul.mubr.bf16.gmra.mrb[0].mxu0 %v1694
      %v1915 = vpop.f32.mrb[0].mxu0
      %v1916 = vadd.f32 0.0, %v1915
      %v1917 = vpop.f32.mrb[0].mxu0
      %v1918 = vpop.f32.mrb[0].mxu0
      %v1919 = vadd.f32 0.0, %v1918
      %v1920 = vpop.f32.mrb[0].mxu0
      %1921 = vdwg.mxu0
      %v1954 = vunpack.c.l.b16 %v1648
      %v1955 = vunpack.c.l.b16 %v1649
      %v1956 = vunpack.c.l.b16 %v1650
      %v1957 = vunpack.c.l.b16 %v1651
      %v1958 = vunpack.c.l.b16 %v1652
      %v1959 = vunpack.c.l.b16 %v1653
      %v1960 = vunpack.c.l.b16 %v1654
      %v1961 = vunpack.c.l.b16 %v1655
      %v1962 = vunpack.c.l.b16 %v1656
      %v1963 = vunpack.c.l.b16 %v1657
      %v1964 = vunpack.c.l.b16 %v1658
      %v1965 = vunpack.c.l.b16 %v1659
      %v1966 = vunpack.c.l.b16 %v1660
      %v1967 = vunpack.c.l.b16 %v1661
      %v1968 = vunpack.c.l.b16 %v1662
      %v1969 = vunpack.c.l.b16 %v1663
      %v1970 = vunpack.c.l.b16 %v1664
      %v1971 = vunpack.c.l.b16 %v1665
      %v1972 = vunpack.c.l.b16 %v1666
      %v1973 = vunpack.c.l.b16 %v1667
      %v1974 = vunpack.c.l.b16 %v1668
      %v1975 = vunpack.c.l.b16 %v1669
      %v1976 = vunpack.c.l.b16 %v1670
      %v1977 = vunpack.c.l.b16 %v1671
      %v1978 = vunpack.c.l.b16 %v1672
      %v1979 = vunpack.c.l.b16 %v1673
      %v1980 = vunpack.c.l.b16 %v1674
      %v1981 = vunpack.c.l.b16 %v1675
      %v1982 = vunpack.c.l.b16 %v1676
      %v1983 = vunpack.c.l.b16 %v1677
      %v1984 = vunpack.c.l.b16 %v1678
      %v1985 = vunpack.c.l.b16 %v1679
      %v1986 = vpack.c.b16 %v1955, %v1954
      %v1987 = vpack.c.b16 %v1957, %v1956
      %v1988 = vpack.c.b16 %v1959, %v1958
      %v1989 = vpack.c.b16 %v1961, %v1960
      %v1990 = vpack.c.b16 %v1963, %v1962
      %v1991 = vpack.c.b16 %v1965, %v1964
      %v1992 = vpack.c.b16 %v1967, %v1966
      %v1993 = vpack.c.b16 %v1969, %v1968
      %v1994 = vpack.c.b16 %v1971, %v1970
      %v1995 = vpack.c.b16 %v1973, %v1972
      %v1996 = vpack.c.b16 %v1975, %v1974
      %v1997 = vpack.c.b16 %v1977, %v1976
      %v1998 = vpack.c.b16 %v1979, %v1978
      %v1999 = vpack.c.b16 %v1981, %v1980
      %v2000 = vpack.c.b16 %v1983, %v1982
      %v2001 = vpack.c.b16 %v1985, %v1984
      %2018 = vmatprep.subr.bf16.mxu0 0
      %2019 = vmatpush1.bf16.msra.mxu0 %v1986
      %2020 = vmatprep.subr.bf16.mxu0 0
      %2021 = vmatpush1.bf16.msra.mxu0 %v1987
      %2022 = vmatprep.subr.bf16.mxu0 0
      %2023 = vmatpush1.bf16.msra.mxu0 %v1988
      %2024 = vmatprep.subr.bf16.mxu0 0
      %2025 = vmatpush1.bf16.msra.mxu0 %v1989
      %2026 = vmatprep.subr.bf16.mxu0 0
      %2027 = vmatpush1.bf16.msra.mxu0 %v1990
      %2028 = vmatprep.subr.bf16.mxu0 0
      %2029 = vmatpush1.bf16.msra.mxu0 %v1991
      %2030 = vmatprep.subr.bf16.mxu0 0
      %2031 = vmatpush1.bf16.msra.mxu0 %v1992
      %2032 = vmatprep.subr.bf16.mxu0 0
      %2033 = vmatpush1.bf16.msra.mxu0 %v1993
      %2034 = vmatprep.subr.bf16.mxu0 0
      %2035 = vmatpush1.bf16.msra.mxu0 %v1994
      %2036 = vmatprep.subr.bf16.mxu0 0
      %2037 = vmatpush1.bf16.msra.mxu0 %v1995
      %2038 = vmatprep.subr.bf16.mxu0 0
      %2039 = vmatpush1.bf16.msra.mxu0 %v1996
      %2040 = vmatprep.subr.bf16.mxu0 0
      %2041 = vmatpush1.bf16.msra.mxu0 %v1997
      %2042 = vmatprep.subr.bf16.mxu0 0
      %2043 = vmatpush1.bf16.msra.mxu0 %v1998
      %2044 = vmatprep.subr.bf16.mxu0 0
      %2045 = vmatpush1.bf16.msra.mxu0 %v1999
      %2046 = vmatprep.subr.bf16.mxu0 0
      %2047 = vmatpush1.bf16.msra.mxu0 %v2000
      %2048 = vmatprep.subr.bf16.mxu0 0
      %2049 = vmatpush1.bf16.msra.mxu0 %v2001
      %2050 = vmatprep.mubr.bf16.mxu0 %v1633
      %2051 = vmatmul.mubr.bf16.gmra.mrb[0].mxu0 %v1632
      %v2052 = vpop.f32.mrb[0].mxu0
      %v2053 = vadd.f32 %v1860, %v2052
      %v2054 = vpop.f32.mrb[0].mxu0
      %v2055 = vpop.f32.mrb[0].mxu0
      %v2056 = vadd.f32 %v1863, %v2055
      %v2057 = vpop.f32.mrb[0].mxu0
      %2058 = vmatprep.mubr.bf16.mxu0 %v1635
      %2059 = vmatmul.mubr.bf16.gmra.mrb[0].mxu0 %v1634
      %v2060 = vpop.f32.mrb[0].mxu0
      %v2061 = vadd.f32 %v1868, %v2060
      %v2062 = vpop.f32.mrb[0].mxu0
      %v2063 = vpop.f32.mrb[0].mxu0
      %v2064 = vadd.f32 %v1871, %v2063
      %v2065 = vpop.f32.mrb[0].mxu0
      %2066 = vmatprep.mubr.bf16.mxu0 %v1637
      %2067 = vmatmul.mubr.bf16.gmra.mrb[0].mxu0 %v1636
      %v2068 = vpop.f32.mrb[0].mxu0
      %v2069 = vadd.f32 %v1876, %v2068
      %v2070 = vpop.f32.mrb[0].mxu0
      %v2071 = vpop.f32.mrb[0].mxu0
      %v2072 = vadd.f32 %v1879, %v2071
      %v2073 = vpop.f32.mrb[0].mxu0
      %2074 = vmatprep.mubr.bf16.mxu0 %v1639
      %2075 = vmatmul.mubr.bf16.gmra.mrb[0].mxu0 %v1638
      %v2076 = vpop.f32.mrb[0].mxu0
      %v2077 = vadd.f32 %v1884, %v2076
      %v2078 = vpop.f32.mrb[0].mxu0
      %v2079 = vpop.f32.mrb[0].mxu0
      %v2080 = vadd.f32 %v1887, %v2079
      %v2081 = vpop.f32.mrb[0].mxu0
      %2082 = vmatprep.mubr.bf16.mxu0 %v1641
      %2083 = vmatmul.mubr.bf16.gmra.mrb[0].mxu0 %v1640
      %v2084 = vpop.f32.mrb[0].mxu0
      %v2085 = vadd.f32 %v1892, %v2084
      %v2086 = vpop.f32.mrb[0].mxu0
      %v2087 = vpop.f32.mrb[0].mxu0
      %v2088 = vadd.f32 %v1895, %v2087
      %v2089 = vpop.f32.mrb[0].mxu0
      %2090 = vmatprep.mubr.bf16.mxu0 %v1643
      %2091 = vmatmul.mubr.bf16.gmra.mrb[0].mxu0 %v1642
      %v2092 = vpop.f32.mrb[0].mxu0
      %v2093 = vadd.f32 %v1900, %v2092
      %v2094 = vpop.f32.mrb[0].mxu0
      %v2095 = vpop.f32.mrb[0].mxu0
      %v2096 = vadd.f32 %v1903, %v2095
      %v2097 = vpop.f32.mrb[0].mxu0
      %2098 = vmatprep.mubr.bf16.mxu0 %v1645
      %2099 = vmatmul.mubr.bf16.gmra.mrb[0].mxu0 %v1644
      %v2100 = vpop.f32.mrb[0].mxu0
      %v2101 = vadd.f32 %v1908, %v2100
      %v2102 = vpop.f32.mrb[0].mxu0
      %v2103 = vpop.f32.mrb[0].mxu0
      %v2104 = vadd.f32 %v1911, %v2103
      %v2105 = vpop.f32.mrb[0].mxu0
      %2106 = vmatprep.mubr.bf16.mxu0 %v1647
      %2107 = vmatmul.mubr.bf16.gmra.mrb[0].mxu0 %v1646
      %v2108 = vpop.f32.mrb[0].mxu0
      %v2109 = vadd.f32 %v1916, %v2108
      %v2110 = vpop.f32.mrb[0].mxu0
      %v2111 = vpop.f32.mrb[0].mxu0
      %v2112 = vadd.f32 %v1919, %v2111
      %v2113 = vpop.f32.mrb[0].mxu0
      %2114 = vdwg.mxu0
      %v2116 = vlaneseq
      %v2117 = vshrl.u32 %v2116, 7
      %v2118 = vsub.s32 0, %v2117
      %v2119 = vrot.slane %v1631, %v2118
      %v2121 = vadd.f32 %v2053, %v2119
      %v2122 = vadd.f32 %v2056, %v2119
      %v2123 = vadd.f32 %v2061, %v2119
      %v2124 = vadd.f32 %v2064, %v2119
      %v2125 = vadd.f32 %v2069, %v2119
      %v2126 = vadd.f32 %v2072, %v2119
      %v2127 = vadd.f32 %v2077, %v2119
      %v2128 = vadd.f32 %v2080, %v2119
      %v2129 = vadd.f32 %v2085, %v2119
      %v2130 = vadd.f32 %v2088, %v2119
      %v2131 = vadd.f32 %v2093, %v2119
      %v2132 = vadd.f32 %v2096, %v2119
      %v2133 = vadd.f32 %v2101, %v2119
      %v2134 = vadd.f32 %v2104, %v2119
      %v2135 = vadd.f32 %v2109, %v2119
      %v2136 = vadd.f32 %v2112, %v2119
      %v2137 = vpack.c.bf16 %v2122, %v2121
      %v2138 = vpack.c.bf16 %v2124, %v2123
      %v2139 = vpack.c.bf16 %v2126, %v2125
      %v2140 = vpack.c.bf16 %v2128, %v2127
      %v2141 = vpack.c.bf16 %v2130, %v2129
      %v2142 = vpack.c.bf16 %v2132, %v2131
      %v2143 = vpack.c.bf16 %v2134, %v2133
      %v2144 = vpack.c.bf16 %v2136, %v2135
      %v2153 = vunpack.c.l.b16 %v2137
      %v2154 = vunpack.c.h.b16 %v2137
      %v2155 = vunpack.c.l.b16 %v2138
      %v2156 = vunpack.c.h.b16 %v2138
      %v2157 = vunpack.c.l.b16 %v2139
      %v2158 = vunpack.c.h.b16 %v2139
      %v2159 = vunpack.c.l.b16 %v2140
      %v2160 = vunpack.c.h.b16 %v2140
      %v2161 = vunpack.c.l.b16 %v2141
      %v2162 = vunpack.c.h.b16 %v2141
      %v2163 = vunpack.c.l.b16 %v2142
      %v2164 = vunpack.c.h.b16 %v2142
      %v2165 = vunpack.c.l.b16 %v2143
      %v2166 = vunpack.c.h.b16 %v2143
      %v2167 = vunpack.c.l.b16 %v2144
      %v2168 = vunpack.c.h.b16 %v2144
      %v2169 = vpack.c.b16 %v2153, %v2153
      %v2170 = vpack.c.b16 %v2154, %v2154
      %v2171 = vpack.c.b16 %v2155, %v2155
      %v2172 = vpack.c.b16 %v2156, %v2156
      %v2173 = vpack.c.b16 %v2157, %v2157
      %v2174 = vpack.c.b16 %v2158, %v2158
      %v2175 = vpack.c.b16 %v2159, %v2159
      %v2176 = vpack.c.b16 %v2160, %v2160
      %v2177 = vpack.c.b16 %v2161, %v2161
      %v2178 = vpack.c.b16 %v2162, %v2162
      %v2179 = vpack.c.b16 %v2163, %v2163
      %v2180 = vpack.c.b16 %v2164, %v2164
      %v2181 = vpack.c.b16 %v2165, %v2165
      %v2182 = vpack.c.b16 %v2166, %v2166
      %v2183 = vpack.c.b16 %v2167, %v2167
      %v2184 = vpack.c.b16 %v2168, %v2168
      %2201 = vst [vmem:[%s194] sm:$0xf] %v2169
      %2202 = vst [vmem:[%s194 + $0x8] sm:$0xf] %v2170
      %2203 = vst [vmem:[%s194 + $0x20] sm:$0xf] %v2171
      %2204 = vst [vmem:[%s194 + $0x28] sm:$0xf] %v2172
      %2205 = vst [vmem:[%s194 + $0x40] sm:$0xf] %v2173
      %2206 = vst [vmem:[%s194 + $0x48] sm:$0xf] %v2174
      %2207 = vst [vmem:[%s194 + $0x60] sm:$0xf] %v2175
      %2208 = vst [vmem:[%s194 + $0x68] sm:$0xf] %v2176
      %2209 = vst [vmem:[%s194 + $0x80] sm:$0xf] %v2177
      %2210 = vst [vmem:[%s194 + $0x88] sm:$0xf] %v2178
      %2211 = vst [vmem:[%s194 + $0xa0] sm:$0xf] %v2179
      %2212 = vst [vmem:[%s194 + $0xa8] sm:$0xf] %v2180
      %2213 = vst [vmem:[%s194 + $0xc0] sm:$0xf] %v2181
      %2214 = vst [vmem:[%s194 + $0xc8] sm:$0xf] %v2182
      %2215 = vst [vmem:[%s194 + $0xe0] sm:$0xf] %v2183
      %2216 = vst [vmem:[%s194 + $0xe8] sm:$0xf] %v2184
      %v2217 = vld [vmem:[#allocation2 + $0x8] sm:$0xff]
      %v2218 = vld [vmem:[#allocation2 + $0x10] sm:$0xff]
      %v2219 = vld [vmem:[#allocation2 + $0x50] sm:$0xff]
      %v2220 = vld [vmem:[#allocation2 + $0x58] sm:$0xff]
      %v2221 = vld [vmem:[#allocation2 + $0x98] sm:$0xff]
      %v2222 = vld [vmem:[#allocation2 + $0xa0] sm:$0xff]
      %v2223 = vld [vmem:[#allocation2 + $0xe0] sm:$0xff]
      %v2224 = vld [vmem:[#allocation2 + $0xe8] sm:$0xff]
      %v2225 = vld [vmem:[#allocation2 + $0x128] sm:$0xff]
      %v2226 = vld [vmem:[#allocation2 + $0x130] sm:$0xff]
      %v2227 = vld [vmem:[#allocation2 + $0x170] sm:$0xff]
      %v2228 = vld [vmem:[#allocation2 + $0x178] sm:$0xff]
      %v2229 = vld [vmem:[#allocation2 + $0x1b8] sm:$0xff]
      %v2230 = vld [vmem:[#allocation2 + $0x1c0] sm:$0xff]
      %v2231 = vld [vmem:[#allocation2 + $0x200] sm:$0xff]
      %v2232 = vld [vmem:[#allocation2 + $0x208] sm:$0xff]
      %s2233 = scalar_lea.vmem %s1, 256
      %v2234 = vld [vmem:[%s2233] sm:$0xf]
      %v2235 = vld [vmem:[%s2233 + $0x4] sm:$0xf]
      %v2236 = vld [vmem:[%s2233 + $0x8] sm:$0xf]
      %v2237 = vld [vmem:[%s2233 + $0xc] sm:$0xf]
      %v2238 = vld [vmem:[%s2233 + $0x10] sm:$0xf]
      %v2239 = vld [vmem:[%s2233 + $0x14] sm:$0xf]
      %v2240 = vld [vmem:[%s2233 + $0x18] sm:$0xf]
      %v2241 = vld [vmem:[%s2233 + $0x1c] sm:$0xf]
      %v2242 = vld [vmem:[%s2233 + $0x20] sm:$0xf]
      %v2243 = vld [vmem:[%s2233 + $0x24] sm:$0xf]
      %v2244 = vld [vmem:[%s2233 + $0x28] sm:$0xf]
      %v2245 = vld [vmem:[%s2233 + $0x2c] sm:$0xf]
      %v2246 = vld [vmem:[%s2233 + $0x30] sm:$0xf]
      %v2247 = vld [vmem:[%s2233 + $0x34] sm:$0xf]
      %v2248 = vld [vmem:[%s2233 + $0x38] sm:$0xf]
      %v2249 = vld [vmem:[%s2233 + $0x3c] sm:$0xf]
      %v2250 = vld [vmem:[%s2233 + $0x40] sm:$0xf]
      %v2251 = vld [vmem:[%s2233 + $0x44] sm:$0xf]
      %v2252 = vld [vmem:[%s2233 + $0x48] sm:$0xf]
      %v2253 = vld [vmem:[%s2233 + $0x4c] sm:$0xf]
      %v2254 = vld [vmem:[%s2233 + $0x50] sm:$0xf]
      %v2255 = vld [vmem:[%s2233 + $0x54] sm:$0xf]
      %v2256 = vld [vmem:[%s2233 + $0x58] sm:$0xf]
      %v2257 = vld [vmem:[%s2233 + $0x5c] sm:$0xf]
      %v2258 = vld [vmem:[%s2233 + $0x60] sm:$0xf]
      %v2259 = vld [vmem:[%s2233 + $0x64] sm:$0xf]
      %v2260 = vld [vmem:[%s2233 + $0x68] sm:$0xf]
      %v2261 = vld [vmem:[%s2233 + $0x6c] sm:$0xf]
      %v2262 = vld [vmem:[%s2233 + $0x70] sm:$0xf]
      %v2263 = vld [vmem:[%s2233 + $0x74] sm:$0xf]
      %v2264 = vld [vmem:[%s2233 + $0x78] sm:$0xf]
      %v2265 = vld [vmem:[%s2233 + $0x7c] sm:$0xf]
      %v2266 = vld [vmem:[#allocation2 + $0x20] sm:$0xff]
      %v2267 = vld [vmem:[#allocation2 + $0x28] sm:$0xff]
      %v2268 = vld [vmem:[#allocation2 + $0x68] sm:$0xff]
      %v2269 = vld [vmem:[#allocation2 + $0x70] sm:$0xff]
      %v2270 = vld [vmem:[#allocation2 + $0xb0] sm:$0xff]
      %v2271 = vld [vmem:[#allocation2 + $0xb8] sm:$0xff]
      %v2272 = vld [vmem:[#allocation2 + $0xf8] sm:$0xff]
      %v2273 = vld [vmem:[#allocation2 + $0x100] sm:$0xff]
      %v2274 = vld [vmem:[#allocation2 + $0x140] sm:$0xff]
      %v2275 = vld [vmem:[#allocation2 + $0x148] sm:$0xff]
      %v2276 = vld [vmem:[#allocation2 + $0x188] sm:$0xff]
      %v2277 = vld [vmem:[#allocation2 + $0x190] sm:$0xff]
      %v2278 = vld [vmem:[#allocation2 + $0x1d0] sm:$0xff]
      %v2279 = vld [vmem:[#allocation2 + $0x1d8] sm:$0xff]
      %v2280 = vld [vmem:[#allocation2 + $0x218] sm:$0xff]
      %v2281 = vld [vmem:[#allocation2 + $0x220] sm:$0xff]
      %s2282 = scalar_lea.vmem %s1, 384
      %v2283 = vld [vmem:[%s2282] sm:$0xf]
      %v2284 = vld [vmem:[%s2282 + $0x4] sm:$0xf]
      %v2285 = vld [vmem:[%s2282 + $0x8] sm:$0xf]
      %v2286 = vld [vmem:[%s2282 + $0xc] sm:$0xf]
      %v2287 = vld [vmem:[%s2282 + $0x10] sm:$0xf]
      %v2288 = vld [vmem:[%s2282 + $0x14] sm:$0xf]
      %v2289 = vld [vmem:[%s2282 + $0x18] sm:$0xf]
      %v2290 = vld [vmem:[%s2282 + $0x1c] sm:$0xf]
      %v2291 = vld [vmem:[%s2282 + $0x20] sm:$0xf]
      %v2292 = vld [vmem:[%s2282 + $0x24] sm:$0xf]
      %v2293 = vld [vmem:[%s2282 + $0x28] sm:$0xf]
      %v2294 = vld [vmem:[%s2282 + $0x2c] sm:$0xf]
      %v2295 = vld [vmem:[%s2282 + $0x30] sm:$0xf]
      %v2296 = vld [vmem:[%s2282 + $0x34] sm:$0xf]
      %v2297 = vld [vmem:[%s2282 + $0x38] sm:$0xf]
      %v2298 = vld [vmem:[%s2282 + $0x3c] sm:$0xf]
      %v2299 = vld [vmem:[%s2282 + $0x40] sm:$0xf]
      %v2300 = vld [vmem:[%s2282 + $0x44] sm:$0xf]
      %v2301 = vld [vmem:[%s2282 + $0x48] sm:$0xf]
      %v2302 = vld [vmem:[%s2282 + $0x4c] sm:$0xf]
      %v2303 = vld [vmem:[%s2282 + $0x50] sm:$0xf]
      %v2304 = vld [vmem:[%s2282 + $0x54] sm:$0xf]
      %v2305 = vld [vmem:[%s2282 + $0x58] sm:$0xf]
      %v2306 = vld [vmem:[%s2282 + $0x5c] sm:$0xf]
      %v2307 = vld [vmem:[%s2282 + $0x60] sm:$0xf]
      %v2308 = vld [vmem:[%s2282 + $0x64] sm:$0xf]
      %v2309 = vld [vmem:[%s2282 + $0x68] sm:$0xf]
      %v2310 = vld [vmem:[%s2282 + $0x6c] sm:$0xf]
      %v2311 = vld [vmem:[%s2282 + $0x70] sm:$0xf]
      %v2312 = vld [vmem:[%s2282 + $0x74] sm:$0xf]
      %v2313 = vld [vmem:[%s2282 + $0x78] sm:$0xf]
      %v2314 = vld [vmem:[%s2282 + $0x7c] sm:$0xf]
      %v2347 = vunpack.c.l.b16 %v2283
      %v2348 = vunpack.c.l.b16 %v2284
      %v2349 = vunpack.c.l.b16 %v2285
      %v2350 = vunpack.c.l.b16 %v2286
      %v2351 = vunpack.c.l.b16 %v2287
      %v2352 = vunpack.c.l.b16 %v2288
      %v2353 = vunpack.c.l.b16 %v2289
      %v2354 = vunpack.c.l.b16 %v2290
      %v2355 = vunpack.c.l.b16 %v2291
      %v2356 = vunpack.c.l.b16 %v2292
      %v2357 = vunpack.c.l.b16 %v2293
      %v2358 = vunpack.c.l.b16 %v2294
      %v2359 = vunpack.c.l.b16 %v2295
      %v2360 = vunpack.c.l.b16 %v2296
      %v2361 = vunpack.c.l.b16 %v2297
      %v2362 = vunpack.c.l.b16 %v2298
      %v2363 = vunpack.c.l.b16 %v2299
      %v2364 = vunpack.c.l.b16 %v2300
      %v2365 = vunpack.c.l.b16 %v2301
      %v2366 = vunpack.c.l.b16 %v2302
      %v2367 = vunpack.c.l.b16 %v2303
      %v2368 = vunpack.c.l.b16 %v2304
      %v2369 = vunpack.c.l.b16 %v2305
      %v2370 = vunpack.c.l.b16 %v2306
      %v2371 = vunpack.c.l.b16 %v2307
      %v2372 = vunpack.c.l.b16 %v2308
      %v2373 = vunpack.c.l.b16 %v2309
      %v2374 = vunpack.c.l.b16 %v2310
      %v2375 = vunpack.c.l.b16 %v2311
      %v2376 = vunpack.c.l.b16 %v2312
      %v2377 = vunpack.c.l.b16 %v2313
      %v2378 = vunpack.c.l.b16 %v2314
      %v2379 = vpack.c.b16 %v2348, %v2347
      %v2380 = vpack.c.b16 %v2350, %v2349
      %v2381 = vpack.c.b16 %v2352, %v2351
      %v2382 = vpack.c.b16 %v2354, %v2353
      %v2383 = vpack.c.b16 %v2356, %v2355
      %v2384 = vpack.c.b16 %v2358, %v2357
      %v2385 = vpack.c.b16 %v2360, %v2359
      %v2386 = vpack.c.b16 %v2362, %v2361
      %v2387 = vpack.c.b16 %v2364, %v2363
      %v2388 = vpack.c.b16 %v2366, %v2365
      %v2389 = vpack.c.b16 %v2368, %v2367
      %v2390 = vpack.c.b16 %v2370, %v2369
      %v2391 = vpack.c.b16 %v2372, %v2371
      %v2392 = vpack.c.b16 %v2374, %v2373
      %v2393 = vpack.c.b16 %v2376, %v2375
      %v2394 = vpack.c.b16 %v2378, %v2377
      %2411 = vmatprep.subr.bf16.mxu0 0
      %2412 = vmatpush1.bf16.msra.mxu0 %v2379
      %2413 = vmatprep.subr.bf16.mxu0 0
      %2414 = vmatpush1.bf16.msra.mxu0 %v2380
      %2415 = vmatprep.subr.bf16.mxu0 0
      %2416 = vmatpush1.bf16.msra.mxu0 %v2381
      %2417 = vmatprep.subr.bf16.mxu0 0
      %2418 = vmatpush1.bf16.msra.mxu0 %v2382
      %2419 = vmatprep.subr.bf16.mxu0 0
      %2420 = vmatpush1.bf16.msra.mxu0 %v2383
      %2421 = vmatprep.subr.bf16.mxu0 0
      %2422 = vmatpush1.bf16.msra.mxu0 %v2384
      %2423 = vmatprep.subr.bf16.mxu0 0
      %2424 = vmatpush1.bf16.msra.mxu0 %v2385
      %2425 = vmatprep.subr.bf16.mxu0 0
      %2426 = vmatpush1.bf16.msra.mxu0 %v2386
      %2427 = vmatprep.subr.bf16.mxu0 0
      %2428 = vmatpush1.bf16.msra.mxu0 %v2387
      %2429 = vmatprep.subr.bf16.mxu0 0
      %2430 = vmatpush1.bf16.msra.mxu0 %v2388
      %2431 = vmatprep.subr.bf16.mxu0 0
      %2432 = vmatpush1.bf16.msra.mxu0 %v2389
      %2433 = vmatprep.subr.bf16.mxu0 0
      %2434 = vmatpush1.bf16.msra.mxu0 %v2390
      %2435 = vmatprep.subr.bf16.mxu0 0
      %2436 = vmatpush1.bf16.msra.mxu0 %v2391
      %2437 = vmatprep.subr.bf16.mxu0 0
      %2438 = vmatpush1.bf16.msra.mxu0 %v2392
      %2439 = vmatprep.subr.bf16.mxu0 0
      %2440 = vmatpush1.bf16.msra.mxu0 %v2393
      %2441 = vmatprep.subr.bf16.mxu0 0
      %2442 = vmatpush1.bf16.msra.mxu0 %v2394
      %2443 = vmatprep.mubr.bf16.mxu0 %v2267
      %2444 = vmatmul.mubr.bf16.gmra.mrb[0].mxu0 %v2266
      %v2445 = vpop.f32.mrb[0].mxu0
      %v2446 = vadd.f32 0.0, %v2445
      %v2447 = vpop.f32.mrb[0].mxu0
      %v2448 = vpop.f32.mrb[0].mxu0
      %v2449 = vadd.f32 0.0, %v2448
      %v2450 = vpop.f32.mrb[0].mxu0
      %2451 = vmatprep.mubr.bf16.mxu0 %v2269
      %2452 = vmatmul.mubr.bf16.gmra.mrb[0].mxu0 %v2268
      %v2453 = vpop.f32.mrb[0].mxu0
      %v2454 = vadd.f32 0.0, %v2453
      %v2455 = vpop.f32.mrb[0].mxu0
      %v2456 = vpop.f32.mrb[0].mxu0
      %v2457 = vadd.f32 0.0, %v2456
      %v2458 = vpop.f32.mrb[0].mxu0
      %2459 = vmatprep.mubr.bf16.mxu0 %v2271
      %2460 = vmatmul.mubr.bf16.gmra.mrb[0].mxu0 %v2270
      %v2461 = vpop.f32.mrb[0].mxu0
      %v2462 = vadd.f32 0.0, %v2461
      %v2463 = vpop.f32.mrb[0].mxu0
      %v2464 = vpop.f32.mrb[0].mxu0
      %v2465 = vadd.f32 0.0, %v2464
      %v2466 = vpop.f32.mrb[0].mxu0
      %2467 = vmatprep.mubr.bf16.mxu0 %v2273
      %2468 = vmatmul.mubr.bf16.gmra.mrb[0].mxu0 %v2272
      %v2469 = vpop.f32.mrb[0].mxu0
      %v2470 = vadd.f32 0.0, %v2469
      %v2471 = vpop.f32.mrb[0].mxu0
      %v2472 = vpop.f32.mrb[0].mxu0
      %v2473 = vadd.f32 0.0, %v2472
      %v2474 = vpop.f32.mrb[0].mxu0
      %2475 = vmatprep.mubr.bf16.mxu0 %v2275
      %2476 = vmatmul.mubr.bf16.gmra.mrb[0].mxu0 %v2274
      %v2477 = vpop.f32.mrb[0].mxu0
      %v2478 = vadd.f32 0.0, %v2477
      %v2479 = vpop.f32.mrb[0].mxu0
      %v2480 = vpop.f32.mrb[0].mxu0
      %v2481 = vadd.f32 0.0, %v2480
      %v2482 = vpop.f32.mrb[0].mxu0
      %2483 = vmatprep.mubr.bf16.mxu0 %v2277
      %2484 = vmatmul.mubr.bf16.gmra.mrb[0].mxu0 %v2276
      %v2485 = vpop.f32.mrb[0].mxu0
      %v2486 = vadd.f32 0.0, %v2485
      %v2487 = vpop.f32.mrb[0].mxu0
      %v2488 = vpop.f32.mrb[0].mxu0
      %v2489 = vadd.f32 0.0, %v2488
      %v2490 = vpop.f32.mrb[0].mxu0
      %2491 = vmatprep.mubr.bf16.mxu0 %v2279
      %2492 = vmatmul.mubr.bf16.gmra.mrb[0].mxu0 %v2278
      %v2493 = vpop.f32.mrb[0].mxu0
      %v2494 = vadd.f32 0.0, %v2493
      %v2495 = vpop.f32.mrb[0].mxu0
      %v2496 = vpop.f32.mrb[0].mxu0
      %v2497 = vadd.f32 0.0, %v2496
      %v2498 = vpop.f32.mrb[0].mxu0
      %2499 = vmatprep.mubr.bf16.mxu0 %v2281
      %2500 = vmatmul.mubr.bf16.gmra.mrb[0].mxu0 %v2280
      %v2501 = vpop.f32.mrb[0].mxu0
      %v2502 = vadd.f32 0.0, %v2501
      %v2503 = vpop.f32.mrb[0].mxu0
      %v2504 = vpop.f32.mrb[0].mxu0
      %v2505 = vadd.f32 0.0, %v2504
      %v2506 = vpop.f32.mrb[0].mxu0
      %2507 = vdwg.mxu0
      %v2540 = vunpack.c.l.b16 %v2234
      %v2541 = vunpack.c.l.b16 %v2235
      %v2542 = vunpack.c.l.b16 %v2236
      %v2543 = vunpack.c.l.b16 %v2237
      %v2544 = vunpack.c.l.b16 %v2238
      %v2545 = vunpack.c.l.b16 %v2239
      %v2546 = vunpack.c.l.b16 %v2240
      %v2547 = vunpack.c.l.b16 %v2241
      %v2548 = vunpack.c.l.b16 %v2242
      %v2549 = vunpack.c.l.b16 %v2243
      %v2550 = vunpack.c.l.b16 %v2244
      %v2551 = vunpack.c.l.b16 %v2245
      %v2552 = vunpack.c.l.b16 %v2246
      %v2553 = vunpack.c.l.b16 %v2247
      %v2554 = vunpack.c.l.b16 %v2248
      %v2555 = vunpack.c.l.b16 %v2249
      %v2556 = vunpack.c.l.b16 %v2250
      %v2557 = vunpack.c.l.b16 %v2251
      %v2558 = vunpack.c.l.b16 %v2252
      %v2559 = vunpack.c.l.b16 %v2253
      %v2560 = vunpack.c.l.b16 %v2254
      %v2561 = vunpack.c.l.b16 %v2255
      %v2562 = vunpack.c.l.b16 %v2256
      %v2563 = vunpack.c.l.b16 %v2257
      %v2564 = vunpack.c.l.b16 %v2258
      %v2565 = vunpack.c.l.b16 %v2259
      %v2566 = vunpack.c.l.b16 %v2260
      %v2567 = vunpack.c.l.b16 %v2261
      %v2568 = vunpack.c.l.b16 %v2262
      %v2569 = vunpack.c.l.b16 %v2263
      %v2570 = vunpack.c.l.b16 %v2264
      %v2571 = vunpack.c.l.b16 %v2265
      %v2572 = vpack.c.b16 %v2541, %v2540
      %v2573 = vpack.c.b16 %v2543, %v2542
      %v2574 = vpack.c.b16 %v2545, %v2544
      %v2575 = vpack.c.b16 %v2547, %v2546
      %v2576 = vpack.c.b16 %v2549, %v2548
      %v2577 = vpack.c.b16 %v2551, %v2550
      %v2578 = vpack.c.b16 %v2553, %v2552
      %v2579 = vpack.c.b16 %v2555, %v2554
      %v2580 = vpack.c.b16 %v2557, %v2556
      %v2581 = vpack.c.b16 %v2559, %v2558
      %v2582 = vpack.c.b16 %v2561, %v2560
      %v2583 = vpack.c.b16 %v2563, %v2562
      %v2584 = vpack.c.b16 %v2565, %v2564
      %v2585 = vpack.c.b16 %v2567, %v2566
      %v2586 = vpack.c.b16 %v2569, %v2568
      %v2587 = vpack.c.b16 %v2571, %v2570
      %2604 = vmatprep.subr.bf16.mxu0 0
      %2605 = vmatpush1.bf16.msra.mxu0 %v2572
      %2606 = vmatprep.subr.bf16.mxu0 0
      %2607 = vmatpush1.bf16.msra.mxu0 %v2573
      %2608 = vmatprep.subr.bf16.mxu0 0
      %2609 = vmatpush1.bf16.msra.mxu0 %v2574
      %2610 = vmatprep.subr.bf16.mxu0 0
      %2611 = vmatpush1.bf16.msra.mxu0 %v2575
      %2612 = vmatprep.subr.bf16.mxu0 0
      %2613 = vmatpush1.bf16.msra.mxu0 %v2576
      %2614 = vmatprep.subr.bf16.mxu0 0
      %2615 = vmatpush1.bf16.msra.mxu0 %v2577
      %2616 = vmatprep.subr.bf16.mxu0 0
      %2617 = vmatpush1.bf16.msra.mxu0 %v2578
      %2618 = vmatprep.subr.bf16.mxu0 0
      %2619 = vmatpush1.bf16.msra.mxu0 %v2579
      %2620 = vmatprep.subr.bf16.mxu0 0
      %2621 = vmatpush1.bf16.msra.mxu0 %v2580
      %2622 = vmatprep.subr.bf16.mxu0 0
      %2623 = vmatpush1.bf16.msra.mxu0 %v2581
      %2624 = vmatprep.subr.bf16.mxu0 0
      %2625 = vmatpush1.bf16.msra.mxu0 %v2582
      %2626 = vmatprep.subr.bf16.mxu0 0
      %2627 = vmatpush1.bf16.msra.mxu0 %v2583
      %2628 = vmatprep.subr.bf16.mxu0 0
      %2629 = vmatpush1.bf16.msra.mxu0 %v2584
      %2630 = vmatprep.subr.bf16.mxu0 0
      %2631 = vmatpush1.bf16.msra.mxu0 %v2585
      %2632 = vmatprep.subr.bf16.mxu0 0
      %2633 = vmatpush1.bf16.msra.mxu0 %v2586
      %2634 = vmatprep.subr.bf16.mxu0 0
      %2635 = vmatpush1.bf16.msra.mxu0 %v2587
      %2636 = vmatprep.mubr.bf16.mxu0 %v2218
      %2637 = vmatmul.mubr.bf16.gmra.mrb[0].mxu0 %v2217
      %v2638 = vpop.f32.mrb[0].mxu0
      %v2639 = vadd.f32 %v2446, %v2638
      %v2640 = vpop.f32.mrb[0].mxu0
      %v2641 = vpop.f32.mrb[0].mxu0
      %v2642 = vadd.f32 %v2449, %v2641
      %v2643 = vpop.f32.mrb[0].mxu0
      %2644 = vmatprep.mubr.bf16.mxu0 %v2220
      %2645 = vmatmul.mubr.bf16.gmra.mrb[0].mxu0 %v2219
      %v2646 = vpop.f32.mrb[0].mxu0
      %v2647 = vadd.f32 %v2454, %v2646
      %v2648 = vpop.f32.mrb[0].mxu0
      %v2649 = vpop.f32.mrb[0].mxu0
      %v2650 = vadd.f32 %v2457, %v2649
      %v2651 = vpop.f32.mrb[0].mxu0
      %2652 = vmatprep.mubr.bf16.mxu0 %v2222
      %2653 = vmatmul.mubr.bf16.gmra.mrb[0].mxu0 %v2221
      %v2654 = vpop.f32.mrb[0].mxu0
      %v2655 = vadd.f32 %v2462, %v2654
      %v2656 = vpop.f32.mrb[0].mxu0
      %v2657 = vpop.f32.mrb[0].mxu0
      %v2658 = vadd.f32 %v2465, %v2657
      %v2659 = vpop.f32.mrb[0].mxu0
      %2660 = vmatprep.mubr.bf16.mxu0 %v2224
      %2661 = vmatmul.mubr.bf16.gmra.mrb[0].mxu0 %v2223
      %v2662 = vpop.f32.mrb[0].mxu0
      %v2663 = vadd.f32 %v2470, %v2662
      %v2664 = vpop.f32.mrb[0].mxu0
      %v2665 = vpop.f32.mrb[0].mxu0
      %v2666 = vadd.f32 %v2473, %v2665
      %v2667 = vpop.f32.mrb[0].mxu0
      %2668 = vmatprep.mubr.bf16.mxu0 %v2226
      %2669 = vmatmul.mubr.bf16.gmra.mrb[0].mxu0 %v2225
      %v2670 = vpop.f32.mrb[0].mxu0
      %v2671 = vadd.f32 %v2478, %v2670
      %v2672 = vpop.f32.mrb[0].mxu0
      %v2673 = vpop.f32.mrb[0].mxu0
      %v2674 = vadd.f32 %v2481, %v2673
      %v2675 = vpop.f32.mrb[0].mxu0
      %2676 = vmatprep.mubr.bf16.mxu0 %v2228
      %2677 = vmatmul.mubr.bf16.gmra.mrb[0].mxu0 %v2227
      %v2678 = vpop.f32.mrb[0].mxu0
      %v2679 = vadd.f32 %v2486, %v2678
      %v2680 = vpop.f32.mrb[0].mxu0
      %v2681 = vpop.f32.mrb[0].mxu0
      %v2682 = vadd.f32 %v2489, %v2681
      %v2683 = vpop.f32.mrb[0].mxu0
      %2684 = vmatprep.mubr.bf16.mxu0 %v2230
      %2685 = vmatmul.mubr.bf16.gmra.mrb[0].mxu0 %v2229
      %v2686 = vpop.f32.mrb[0].mxu0
      %v2687 = vadd.f32 %v2494, %v2686
      %v2688 = vpop.f32.mrb[0].mxu0
      %v2689 = vpop.f32.mrb[0].mxu0
      %v2690 = vadd.f32 %v2497, %v2689
      %v2691 = vpop.f32.mrb[0].mxu0
      %2692 = vmatprep.mubr.bf16.mxu0 %v2232
      %2693 = vmatmul.mubr.bf16.gmra.mrb[0].mxu0 %v2231
      %v2694 = vpop.f32.mrb[0].mxu0
      %v2695 = vadd.f32 %v2502, %v2694
      %v2696 = vpop.f32.mrb[0].mxu0
      %v2697 = vpop.f32.mrb[0].mxu0
      %v2698 = vadd.f32 %v2505, %v2697
      %v2699 = vpop.f32.mrb[0].mxu0
      %2700 = vdwg.mxu0
      %v2701 = vadd.f32 %v2639, %v2119
      %v2702 = vadd.f32 %v2642, %v2119
      %v2703 = vadd.f32 %v2647, %v2119
      %v2704 = vadd.f32 %v2650, %v2119
      %v2705 = vadd.f32 %v2655, %v2119
      %v2706 = vadd.f32 %v2658, %v2119
      %v2707 = vadd.f32 %v2663, %v2119
      %v2708 = vadd.f32 %v2666, %v2119
      %v2709 = vadd.f32 %v2671, %v2119
      %v2710 = vadd.f32 %v2674, %v2119
      %v2711 = vadd.f32 %v2679, %v2119
      %v2712 = vadd.f32 %v2682, %v2119
      %v2713 = vadd.f32 %v2687, %v2119
      %v2714 = vadd.f32 %v2690, %v2119
      %v2715 = vadd.f32 %v2695, %v2119
      %v2716 = vadd.f32 %v2698, %v2119
      %v2717 = vpack.c.bf16 %v2702, %v2701
      %v2718 = vpack.c.bf16 %v2704, %v2703
      %v2719 = vpack.c.bf16 %v2706, %v2705
      %v2720 = vpack.c.bf16 %v2708, %v2707
      %v2721 = vpack.c.bf16 %v2710, %v2709
      %v2722 = vpack.c.bf16 %v2712, %v2711
      %v2723 = vpack.c.bf16 %v2714, %v2713
      %v2724 = vpack.c.bf16 %v2716, %v2715
      %v2733 = vunpack.c.l.b16 %v2717
      %v2734 = vunpack.c.h.b16 %v2717
      %v2735 = vunpack.c.l.b16 %v2718
      %v2736 = vunpack.c.h.b16 %v2718
      %v2737 = vunpack.c.l.b16 %v2719
      %v2738 = vunpack.c.h.b16 %v2719
      %v2739 = vunpack.c.l.b16 %v2720
      %v2740 = vunpack.c.h.b16 %v2720
      %v2741 = vunpack.c.l.b16 %v2721
      %v2742 = vunpack.c.h.b16 %v2721
      %v2743 = vunpack.c.l.b16 %v2722
      %v2744 = vunpack.c.h.b16 %v2722
      %v2745 = vunpack.c.l.b16 %v2723
      %v2746 = vunpack.c.h.b16 %v2723
      %v2747 = vunpack.c.l.b16 %v2724
      %v2748 = vunpack.c.h.b16 %v2724
      %v2749 = vpack.c.b16 %v2733, %v2733
      %v2750 = vpack.c.b16 %v2734, %v2734
      %v2751 = vpack.c.b16 %v2735, %v2735
      %v2752 = vpack.c.b16 %v2736, %v2736
      %v2753 = vpack.c.b16 %v2737, %v2737
      %v2754 = vpack.c.b16 %v2738, %v2738
      %v2755 = vpack.c.b16 %v2739, %v2739
      %v2756 = vpack.c.b16 %v2740, %v2740
      %v2757 = vpack.c.b16 %v2741, %v2741
      %v2758 = vpack.c.b16 %v2742, %v2742
      %v2759 = vpack.c.b16 %v2743, %v2743
      %v2760 = vpack.c.b16 %v2744, %v2744
      %v2761 = vpack.c.b16 %v2745, %v2745
      %v2762 = vpack.c.b16 %v2746, %v2746
      %v2763 = vpack.c.b16 %v2747, %v2747
      %v2764 = vpack.c.b16 %v2748, %v2748
      %2781 = vst [vmem:[%s194 + $0x4] sm:$0xf] %v2749
      %2782 = vst [vmem:[%s194 + $0xc] sm:$0xf] %v2750
      %2783 = vst [vmem:[%s194 + $0x24] sm:$0xf] %v2751
      %2784 = vst [vmem:[%s194 + $0x2c] sm:$0xf] %v2752
      %2785 = vst [vmem:[%s194 + $0x44] sm:$0xf] %v2753
      %2786 = vst [vmem:[%s194 + $0x4c] sm:$0xf] %v2754
      %2787 = vst [vmem:[%s194 + $0x64] sm:$0xf] %v2755
      %2788 = vst [vmem:[%s194 + $0x6c] sm:$0xf] %v2756
      %2789 = vst [vmem:[%s194 + $0x84] sm:$0xf] %v2757
      %2790 = vst [vmem:[%s194 + $0x8c] sm:$0xf] %v2758
      %2791 = vst [vmem:[%s194 + $0xa4] sm:$0xf] %v2759
      %2792 = vst [vmem:[%s194 + $0xac] sm:$0xf] %v2760
      %2793 = vst [vmem:[%s194 + $0xc4] sm:$0xf] %v2761
      %2794 = vst [vmem:[%s194 + $0xcc] sm:$0xf] %v2762
      %2795 = vst [vmem:[%s194 + $0xe4] sm:$0xf] %v2763
      %2796 = vst [vmem:[%s194 + $0xec] sm:$0xf] %v2764
      %v2797 = vld [vmem:[#allocation2 + $0x18] sm:$0xff]
      %v2798 = vld [vmem:[#allocation2 + $0x20] sm:$0xff]
      %v2799 = vld [vmem:[#allocation2 + $0x60] sm:$0xff]
      %v2800 = vld [vmem:[#allocation2 + $0x68] sm:$0xff]
      %v2801 = vld [vmem:[#allocation2 + $0xa8] sm:$0xff]
      %v2802 = vld [vmem:[#allocation2 + $0xb0] sm:$0xff]
      %v2803 = vld [vmem:[#allocation2 + $0xf0] sm:$0xff]
      %v2804 = vld [vmem:[#allocation2 + $0xf8] sm:$0xff]
      %v2805 = vld [vmem:[#allocation2 + $0x138] sm:$0xff]
      %v2806 = vld [vmem:[#allocation2 + $0x140] sm:$0xff]
      %v2807 = vld [vmem:[#allocation2 + $0x180] sm:$0xff]
      %v2808 = vld [vmem:[#allocation2 + $0x188] sm:$0xff]
      %v2809 = vld [vmem:[#allocation2 + $0x1c8] sm:$0xff]
      %v2810 = vld [vmem:[#allocation2 + $0x1d0] sm:$0xff]
      %v2811 = vld [vmem:[#allocation2 + $0x210] sm:$0xff]
      %v2812 = vld [vmem:[#allocation2 + $0x218] sm:$0xff]
      %s2813 = scalar_lea.vmem %s1, 512
      %v2814 = vld [vmem:[%s2813] sm:$0xf]
      %v2815 = vld [vmem:[%s2813 + $0x4] sm:$0xf]
      %v2816 = vld [vmem:[%s2813 + $0x8] sm:$0xf]
      %v2817 = vld [vmem:[%s2813 + $0xc] sm:$0xf]
      %v2818 = vld [vmem:[%s2813 + $0x10] sm:$0xf]
      %v2819 = vld [vmem:[%s2813 + $0x14] sm:$0xf]
      %v2820 = vld [vmem:[%s2813 + $0x18] sm:$0xf]
      %v2821 = vld [vmem:[%s2813 + $0x1c] sm:$0xf]
      %v2822 = vld [vmem:[%s2813 + $0x20] sm:$0xf]
      %v2823 = vld [vmem:[%s2813 + $0x24] sm:$0xf]
      %v2824 = vld [vmem:[%s2813 + $0x28] sm:$0xf]
      %v2825 = vld [vmem:[%s2813 + $0x2c] sm:$0xf]
      %v2826 = vld [vmem:[%s2813 + $0x30] sm:$0xf]
      %v2827 = vld [vmem:[%s2813 + $0x34] sm:$0xf]
      %v2828 = vld [vmem:[%s2813 + $0x38] sm:$0xf]
      %v2829 = vld [vmem:[%s2813 + $0x3c] sm:$0xf]
      %v2830 = vld [vmem:[%s2813 + $0x40] sm:$0xf]
      %v2831 = vld [vmem:[%s2813 + $0x44] sm:$0xf]
      %v2832 = vld [vmem:[%s2813 + $0x48] sm:$0xf]
      %v2833 = vld [vmem:[%s2813 + $0x4c] sm:$0xf]
      %v2834 = vld [vmem:[%s2813 + $0x50] sm:$0xf]
      %v2835 = vld [vmem:[%s2813 + $0x54] sm:$0xf]
      %v2836 = vld [vmem:[%s2813 + $0x58] sm:$0xf]
      %v2837 = vld [vmem:[%s2813 + $0x5c] sm:$0xf]
      %v2838 = vld [vmem:[%s2813 + $0x60] sm:$0xf]
      %v2839 = vld [vmem:[%s2813 + $0x64] sm:$0xf]
      %v2840 = vld [vmem:[%s2813 + $0x68] sm:$0xf]
      %v2841 = vld [vmem:[%s2813 + $0x6c] sm:$0xf]
      %v2842 = vld [vmem:[%s2813 + $0x70] sm:$0xf]
      %v2843 = vld [vmem:[%s2813 + $0x74] sm:$0xf]
      %v2844 = vld [vmem:[%s2813 + $0x78] sm:$0xf]
      %v2845 = vld [vmem:[%s2813 + $0x7c] sm:$0xf]
      %v2846 = vld [vmem:[#allocation2 + $0x30] sm:$0xff]
      %v2847 = vld [vmem:[#allocation2 + $0x38] sm:$0xff]
      %v2848 = vld [vmem:[#allocation2 + $0x78] sm:$0xff]
      %v2849 = vld [vmem:[#allocation2 + $0x80] sm:$0xff]
      %v2850 = vld [vmem:[#allocation2 + $0xc0] sm:$0xff]
      %v2851 = vld [vmem:[#allocation2 + $0xc8] sm:$0xff]
      %v2852 = vld [vmem:[#allocation2 + $0x108] sm:$0xff]
      %v2853 = vld [vmem:[#allocation2 + $0x110] sm:$0xff]
      %v2854 = vld [vmem:[#allocation2 + $0x150] sm:$0xff]
      %v2855 = vld [vmem:[#allocation2 + $0x158] sm:$0xff]
      %v2856 = vld [vmem:[#allocation2 + $0x198] sm:$0xff]
      %v2857 = vld [vmem:[#allocation2 + $0x1a0] sm:$0xff]
      %v2858 = vld [vmem:[#allocation2 + $0x1e0] sm:$0xff]
      %v2859 = vld [vmem:[#allocation2 + $0x1e8] sm:$0xff]
      %v2860 = vld [vmem:[#allocation2 + $0x228] sm:$0xff]
      %v2861 = vld [vmem:[#allocation2 + $0x230] sm:$0xff]
      %s2862 = scalar_lea.vmem %s1, 640
      %v2863 = vld [vmem:[%s2862] sm:$0xf]
      %v2864 = vld [vmem:[%s2862 + $0x4] sm:$0xf]
      %v2865 = vld [vmem:[%s2862 + $0x8] sm:$0xf]
      %v2866 = vld [vmem:[%s2862 + $0xc] sm:$0xf]
      %v2867 = vld [vmem:[%s2862 + $0x10] sm:$0xf]
      %v2868 = vld [vmem:[%s2862 + $0x14] sm:$0xf]
      %v2869 = vld [vmem:[%s2862 + $0x18] sm:$0xf]
      %v2870 = vld [vmem:[%s2862 + $0x1c] sm:$0xf]
      %v2871 = vld [vmem:[%s2862 + $0x20] sm:$0xf]
      %v2872 = vld [vmem:[%s2862 + $0x24] sm:$0xf]
      %v2873 = vld [vmem:[%s2862 + $0x28] sm:$0xf]
      %v2874 = vld [vmem:[%s2862 + $0x2c] sm:$0xf]
      %v2875 = vld [vmem:[%s2862 + $0x30] sm:$0xf]
      %v2876 = vld [vmem:[%s2862 + $0x34] sm:$0xf]
      %v2877 = vld [vmem:[%s2862 + $0x38] sm:$0xf]
      %v2878 = vld [vmem:[%s2862 + $0x3c] sm:$0xf]
      %v2879 = vld [vmem:[%s2862 + $0x40] sm:$0xf]
      %v2880 = vld [vmem:[%s2862 + $0x44] sm:$0xf]
      %v2881 = vld [vmem:[%s2862 + $0x48] sm:$0xf]
      %v2882 = vld [vmem:[%s2862 + $0x4c] sm:$0xf]
      %v2883 = vld [vmem:[%s2862 + $0x50] sm:$0xf]
      %v2884 = vld [vmem:[%s2862 + $0x54] sm:$0xf]
      %v2885 = vld [vmem:[%s2862 + $0x58] sm:$0xf]
      %v2886 = vld [vmem:[%s2862 + $0x5c] sm:$0xf]
      %v2887 = vld [vmem:[%s2862 + $0x60] sm:$0xf]
      %v2888 = vld [vmem:[%s2862 + $0x64] sm:$0xf]
      %v2889 = vld [vmem:[%s2862 + $0x68] sm:$0xf]
      %v2890 = vld [vmem:[%s2862 + $0x6c] sm:$0xf]
      %v2891 = vld [vmem:[%s2862 + $0x70] sm:$0xf]
      %v2892 = vld [vmem:[%s2862 + $0x74] sm:$0xf]
      %v2893 = vld [vmem:[%s2862 + $0x78] sm:$0xf]
      %v2894 = vld [vmem:[%s2862 + $0x7c] sm:$0xf]
      %v2927 = vunpack.c.l.b16 %v2863
      %v2928 = vunpack.c.l.b16 %v2864
      %v2929 = vunpack.c.l.b16 %v2865
      %v2930 = vunpack.c.l.b16 %v2866
      %v2931 = vunpack.c.l.b16 %v2867
      %v2932 = vunpack.c.l.b16 %v2868
      %v2933 = vunpack.c.l.b16 %v2869
      %v2934 = vunpack.c.l.b16 %v2870
      %v2935 = vunpack.c.l.b16 %v2871
      %v2936 = vunpack.c.l.b16 %v2872
      %v2937 = vunpack.c.l.b16 %v2873
      %v2938 = vunpack.c.l.b16 %v2874
      %v2939 = vunpack.c.l.b16 %v2875
      %v2940 = vunpack.c.l.b16 %v2876
      %v2941 = vunpack.c.l.b16 %v2877
      %v2942 = vunpack.c.l.b16 %v2878
      %v2943 = vunpack.c.l.b16 %v2879
      %v2944 = vunpack.c.l.b16 %v2880
      %v2945 = vunpack.c.l.b16 %v2881
      %v2946 = vunpack.c.l.b16 %v2882
      %v2947 = vunpack.c.l.b16 %v2883
      %v2948 = vunpack.c.l.b16 %v2884
      %v2949 = vunpack.c.l.b16 %v2885
      %v2950 = vunpack.c.l.b16 %v2886
      %v2951 = vunpack.c.l.b16 %v2887
      %v2952 = vunpack.c.l.b16 %v2888
      %v2953 = vunpack.c.l.b16 %v2889
      %v2954 = vunpack.c.l.b16 %v2890
      %v2955 = vunpack.c.l.b16 %v2891
      %v2956 = vunpack.c.l.b16 %v2892
      %v2957 = vunpack.c.l.b16 %v2893
      %v2958 = vunpack.c.l.b16 %v2894
      %v2959 = vpack.c.b16 %v2928, %v2927
      %v2960 = vpack.c.b16 %v2930, %v2929
      %v2961 = vpack.c.b16 %v2932, %v2931
      %v2962 = vpack.c.b16 %v2934, %v2933
      %v2963 = vpack.c.b16 %v2936, %v2935
      %v2964 = vpack.c.b16 %v2938, %v2937
      %v2965 = vpack.c.b16 %v2940, %v2939
      %v2966 = vpack.c.b16 %v2942, %v2941
      %v2967 = vpack.c.b16 %v2944, %v2943
      %v2968 = vpack.c.b16 %v2946, %v2945
      %v2969 = vpack.c.b16 %v2948, %v2947
      %v2970 = vpack.c.b16 %v2950, %v2949
      %v2971 = vpack.c.b16 %v2952, %v2951
      %v2972 = vpack.c.b16 %v2954, %v2953
      %v2973 = vpack.c.b16 %v2956, %v2955
      %v2974 = vpack.c.b16 %v2958, %v2957
      %2991 = vmatprep.subr.bf16.mxu0 0
      %2992 = vmatpush1.bf16.msra.mxu0 %v2959
      %2993 = vmatprep.subr.bf16.mxu0 0
      %2994 = vmatpush1.bf16.msra.mxu0 %v2960
      %2995 = vmatprep.subr.bf16.mxu0 0
      %2996 = vmatpush1.bf16.msra.mxu0 %v2961
      %2997 = vmatprep.subr.bf16.mxu0 0
      %2998 = vmatpush1.bf16.msra.mxu0 %v2962
      %2999 = vmatprep.subr.bf16.mxu0 0
      %3000 = vmatpush1.bf16.msra.mxu0 %v2963
      %3001 = vmatprep.subr.bf16.mxu0 0
      %3002 = vmatpush1.bf16.msra.mxu0 %v2964
      %3003 = vmatprep.subr.bf16.mxu0 0
      %3004 = vmatpush1.bf16.msra.mxu0 %v2965
      %3005 = vmatprep.subr.bf16.mxu0 0
      %3006 = vmatpush1.bf16.msra.mxu0 %v2966
      %3007 = vmatprep.subr.bf16.mxu0 0
      %3008 = vmatpush1.bf16.msra.mxu0 %v2967
      %3009 = vmatprep.subr.bf16.mxu0 0
      %3010 = vmatpush1.bf16.msra.mxu0 %v2968
      %3011 = vmatprep.subr.bf16.mxu0 0
      %3012 = vmatpush1.bf16.msra.mxu0 %v2969
      %3013 = vmatprep.subr.bf16.mxu0 0
      %3014 = vmatpush1.bf16.msra.mxu0 %v2970
      %3015 = vmatprep.subr.bf16.mxu0 0
      %3016 = vmatpush1.bf16.msra.mxu0 %v2971
      %3017 = vmatprep.subr.bf16.mxu0 0
      %3018 = vmatpush1.bf16.msra.mxu0 %v2972
      %3019 = vmatprep.subr.bf16.mxu0 0
      %3020 = vmatpush1.bf16.msra.mxu0 %v2973
      %3021 = vmatprep.subr.bf16.mxu0 0
      %3022 = vmatpush1.bf16.msra.mxu0 %v2974
      %3023 = vmatprep.mubr.bf16.mxu0 %v2847
      %3024 = vmatmul.mubr.bf16.gmra.mrb[0].mxu0 %v2846
      %v3025 = vpop.f32.mrb[0].mxu0
      %v3026 = vadd.f32 0.0, %v3025
      %v3027 = vpop.f32.mrb[0].mxu0
      %v3028 = vpop.f32.mrb[0].mxu0
      %v3029 = vadd.f32 0.0, %v3028
      %v3030 = vpop.f32.mrb[0].mxu0
      %3031 = vmatprep.mubr.bf16.mxu0 %v2849
      %3032 = vmatmul.mubr.bf16.gmra.mrb[0].mxu0 %v2848
      %v3033 = vpop.f32.mrb[0].mxu0
      %v3034 = vadd.f32 0.0, %v3033
      %v3035 = vpop.f32.mrb[0].mxu0
      %v3036 = vpop.f32.mrb[0].mxu0
      %v3037 = vadd.f32 0.0, %v3036
      %v3038 = vpop.f32.mrb[0].mxu0
      %3039 = vmatprep.mubr.bf16.mxu0 %v2851
      %3040 = vmatmul.mubr.bf16.gmra.mrb[0].mxu0 %v2850
      %v3041 = vpop.f32.mrb[0].mxu0
      %v3042 = vadd.f32 0.0, %v3041
      %v3043 = vpop.f32.mrb[0].mxu0
      %v3044 = vpop.f32.mrb[0].mxu0
      %v3045 = vadd.f32 0.0, %v3044
      %v3046 = vpop.f32.mrb[0].mxu0
      %3047 = vmatprep.mubr.bf16.mxu0 %v2853
      %3048 = vmatmul.mubr.bf16.gmra.mrb[0].mxu0 %v2852
      %v3049 = vpop.f32.mrb[0].mxu0
      %v3050 = vadd.f32 0.0, %v3049
      %v3051 = vpop.f32.mrb[0].mxu0
      %v3052 = vpop.f32.mrb[0].mxu0
      %v3053 = vadd.f32 0.0, %v3052
      %v3054 = vpop.f32.mrb[0].mxu0
      %3055 = vmatprep.mubr.bf16.mxu0 %v2855
      %3056 = vmatmul.mubr.bf16.gmra.mrb[0].mxu0 %v2854
      %v3057 = vpop.f32.mrb[0].mxu0
      %v3058 = vadd.f32 0.0, %v3057
      %v3059 = vpop.f32.mrb[0].mxu0
      %v3060 = vpop.f32.mrb[0].mxu0
      %v3061 = vadd.f32 0.0, %v3060
      %v3062 = vpop.f32.mrb[0].mxu0
      %3063 = vmatprep.mubr.bf16.mxu0 %v2857
      %3064 = vmatmul.mubr.bf16.gmra.mrb[0].mxu0 %v2856
      %v3065 = vpop.f32.mrb[0].mxu0
      %v3066 = vadd.f32 0.0, %v3065
      %v3067 = vpop.f32.mrb[0].mxu0
      %v3068 = vpop.f32.mrb[0].mxu0
      %v3069 = vadd.f32 0.0, %v3068
      %v3070 = vpop.f32.mrb[0].mxu0
      %3071 = vmatprep.mubr.bf16.mxu0 %v2859
      %3072 = vmatmul.mubr.bf16.gmra.mrb[0].mxu0 %v2858
      %v3073 = vpop.f32.mrb[0].mxu0
      %v3074 = vadd.f32 0.0, %v3073
      %v3075 = vpop.f32.mrb[0].mxu0
      %v3076 = vpop.f32.mrb[0].mxu0
      %v3077 = vadd.f32 0.0, %v3076
      %v3078 = vpop.f32.mrb[0].mxu0
      %3079 = vmatprep.mubr.bf16.mxu0 %v2861
      %3080 = vmatmul.mubr.bf16.gmra.mrb[0].mxu0 %v2860
      %v3081 = vpop.f32.mrb[0].mxu0
      %v3082 = vadd.f32 0.0, %v3081
      %v3083 = vpop.f32.mrb[0].mxu0
      %v3084 = vpop.f32.mrb[0].mxu0
      %v3085 = vadd.f32 0.0, %v3084
      %v3086 = vpop.f32.mrb[0].mxu0
      %3087 = vdwg.mxu0
      %v3120 = vunpack.c.l.b16 %v2814
      %v3121 = vunpack.c.l.b16 %v2815
      %v3122 = vunpack.c.l.b16 %v2816
      %v3123 = vunpack.c.l.b16 %v2817
      %v3124 = vunpack.c.l.b16 %v2818
      %v3125 = vunpack.c.l.b16 %v2819
      %v3126 = vunpack.c.l.b16 %v2820
      %v3127 = vunpack.c.l.b16 %v2821
      %v3128 = vunpack.c.l.b16 %v2822
      %v3129 = vunpack.c.l.b16 %v2823
      %v3130 = vunpack.c.l.b16 %v2824
      %v3131 = vunpack.c.l.b16 %v2825
      %v3132 = vunpack.c.l.b16 %v2826
      %v3133 = vunpack.c.l.b16 %v2827
      %v3134 = vunpack.c.l.b16 %v2828
      %v3135 = vunpack.c.l.b16 %v2829
      %v3136 = vunpack.c.l.b16 %v2830
      %v3137 = vunpack.c.l.b16 %v2831
      %v3138 = vunpack.c.l.b16 %v2832
      %v3139 = vunpack.c.l.b16 %v2833
      %v3140 = vunpack.c.l.b16 %v2834
      %v3141 = vunpack.c.l.b16 %v2835
      %v3142 = vunpack.c.l.b16 %v2836
      %v3143 = vunpack.c.l.b16 %v2837
      %v3144 = vunpack.c.l.b16 %v2838
      %v3145 = vunpack.c.l.b16 %v2839
      %v3146 = vunpack.c.l.b16 %v2840
      %v3147 = vunpack.c.l.b16 %v2841
      %v3148 = vunpack.c.l.b16 %v2842
      %v3149 = vunpack.c.l.b16 %v2843
      %v3150 = vunpack.c.l.b16 %v2844
      %v3151 = vunpack.c.l.b16 %v2845
      %v3152 = vpack.c.b16 %v3121, %v3120
      %v3153 = vpack.c.b16 %v3123, %v3122
      %v3154 = vpack.c.b16 %v3125, %v3124
      %v3155 = vpack.c.b16 %v3127, %v3126
      %v3156 = vpack.c.b16 %v3129, %v3128
      %v3157 = vpack.c.b16 %v3131, %v3130
      %v3158 = vpack.c.b16 %v3133, %v3132
      %v3159 = vpack.c.b16 %v3135, %v3134
      %v3160 = vpack.c.b16 %v3137, %v3136
      %v3161 = vpack.c.b16 %v3139, %v3138
      %v3162 = vpack.c.b16 %v3141, %v3140
      %v3163 = vpack.c.b16 %v3143, %v3142
      %v3164 = vpack.c.b16 %v3145, %v3144
      %v3165 = vpack.c.b16 %v3147, %v3146
      %v3166 = vpack.c.b16 %v3149, %v3148
      %v3167 = vpack.c.b16 %v3151, %v3150
      %3184 = vmatprep.subr.bf16.mxu0 0
      %3185 = vmatpush1.bf16.msra.mxu0 %v3152
      %3186 = vmatprep.subr.bf16.mxu0 0
      %3187 = vmatpush1.bf16.msra.mxu0 %v3153
      %3188 = vmatprep.subr.bf16.mxu0 0
      %3189 = vmatpush1.bf16.msra.mxu0 %v3154
      %3190 = vmatprep.subr.bf16.mxu0 0
      %3191 = vmatpush1.bf16.msra.mxu0 %v3155
      %3192 = vmatprep.subr.bf16.mxu0 0
      %3193 = vmatpush1.bf16.msra.mxu0 %v3156
      %3194 = vmatprep.subr.bf16.mxu0 0
      %3195 = vmatpush1.bf16.msra.mxu0 %v3157
      %3196 = vmatprep.subr.bf16.mxu0 0
      %3197 = vmatpush1.bf16.msra.mxu0 %v3158
      %3198 = vmatprep.subr.bf16.mxu0 0
      %3199 = vmatpush1.bf16.msra.mxu0 %v3159
      %3200 = vmatprep.subr.bf16.mxu0 0
      %3201 = vmatpush1.bf16.msra.mxu0 %v3160
      %3202 = vmatprep.subr.bf16.mxu0 0
      %3203 = vmatpush1.bf16.msra.mxu0 %v3161
      %3204 = vmatprep.subr.bf16.mxu0 0
      %3205 = vmatpush1.bf16.msra.mxu0 %v3162
      %3206 = vmatprep.subr.bf16.mxu0 0
      %3207 = vmatpush1.bf16.msra.mxu0 %v3163
      %3208 = vmatprep.subr.bf16.mxu0 0
      %3209 = vmatpush1.bf16.msra.mxu0 %v3164
      %3210 = vmatprep.subr.bf16.mxu0 0
      %3211 = vmatpush1.bf16.msra.mxu0 %v3165
      %3212 = vmatprep.subr.bf16.mxu0 0
      %3213 = vmatpush1.bf16.msra.mxu0 %v3166
      %3214 = vmatprep.subr.bf16.mxu0 0
      %3215 = vmatpush1.bf16.msra.mxu0 %v3167
      %3216 = vmatprep.mubr.bf16.mxu0 %v2798
      %3217 = vmatmul.mubr.bf16.gmra.mrb[0].mxu0 %v2797
      %v3218 = vpop.f32.mrb[0].mxu0
      %v3219 = vadd.f32 %v3026, %v3218
      %v3220 = vpop.f32.mrb[0].mxu0
      %v3221 = vpop.f32.mrb[0].mxu0
      %v3222 = vadd.f32 %v3029, %v3221
      %v3223 = vpop.f32.mrb[0].mxu0
      %3224 = vmatprep.mubr.bf16.mxu0 %v2800
      %3225 = vmatmul.mubr.bf16.gmra.mrb[0].mxu0 %v2799
      %v3226 = vpop.f32.mrb[0].mxu0
      %v3227 = vadd.f32 %v3034, %v3226
      %v3228 = vpop.f32.mrb[0].mxu0
      %v3229 = vpop.f32.mrb[0].mxu0
      %v3230 = vadd.f32 %v3037, %v3229
      %v3231 = vpop.f32.mrb[0].mxu0
      %3232 = vmatprep.mubr.bf16.mxu0 %v2802
      %3233 = vmatmul.mubr.bf16.gmra.mrb[0].mxu0 %v2801
      %v3234 = vpop.f32.mrb[0].mxu0
      %v3235 = vadd.f32 %v3042, %v3234
      %v3236 = vpop.f32.mrb[0].mxu0
      %v3237 = vpop.f32.mrb[0].mxu0
      %v3238 = vadd.f32 %v3045, %v3237
      %v3239 = vpop.f32.mrb[0].mxu0
      %3240 = vmatprep.mubr.bf16.mxu0 %v2804
      %3241 = vmatmul.mubr.bf16.gmra.mrb[0].mxu0 %v2803
      %v3242 = vpop.f32.mrb[0].mxu0
      %v3243 = vadd.f32 %v3050, %v3242
      %v3244 = vpop.f32.mrb[0].mxu0
      %v3245 = vpop.f32.mrb[0].mxu0
      %v3246 = vadd.f32 %v3053, %v3245
      %v3247 = vpop.f32.mrb[0].mxu0
      %3248 = vmatprep.mubr.bf16.mxu0 %v2806
      %3249 = vmatmul.mubr.bf16.gmra.mrb[0].mxu0 %v2805
      %v3250 = vpop.f32.mrb[0].mxu0
      %v3251 = vadd.f32 %v3058, %v3250
      %v3252 = vpop.f32.mrb[0].mxu0
      %v3253 = vpop.f32.mrb[0].mxu0
      %v3254 = vadd.f32 %v3061, %v3253
      %v3255 = vpop.f32.mrb[0].mxu0
      %3256 = vmatprep.mubr.bf16.mxu0 %v2808
      %3257 = vmatmul.mubr.bf16.gmra.mrb[0].mxu0 %v2807
      %v3258 = vpop.f32.mrb[0].mxu0
      %v3259 = vadd.f32 %v3066, %v3258
      %v3260 = vpop.f32.mrb[0].mxu0
      %v3261 = vpop.f32.mrb[0].mxu0
      %v3262 = vadd.f32 %v3069, %v3261
      %v3263 = vpop.f32.mrb[0].mxu0
      %3264 = vmatprep.mubr.bf16.mxu0 %v2810
      %3265 = vmatmul.mubr.bf16.gmra.mrb[0].mxu0 %v2809
      %v3266 = vpop.f32.mrb[0].mxu0
      %v3267 = vadd.f32 %v3074, %v3266
      %v3268 = vpop.f32.mrb[0].mxu0
      %v3269 = vpop.f32.mrb[0].mxu0
      %v3270 = vadd.f32 %v3077, %v3269
      %v3271 = vpop.f32.mrb[0].mxu0
      %3272 = vmatprep.mubr.bf16.mxu0 %v2812
      %3273 = vmatmul.mubr.bf16.gmra.mrb[0].mxu0 %v2811
      %v3274 = vpop.f32.mrb[0].mxu0
      %v3275 = vadd.f32 %v3082, %v3274
      %v3276 = vpop.f32.mrb[0].mxu0
      %v3277 = vpop.f32.mrb[0].mxu0
      %v3278 = vadd.f32 %v3085, %v3277
      %v3279 = vpop.f32.mrb[0].mxu0
      %3280 = vdwg.mxu0
      %v3281 = vadd.f32 %v3219, %v2119
      %v3282 = vadd.f32 %v3222, %v2119
      %v3283 = vadd.f32 %v3227, %v2119
      %v3284 = vadd.f32 %v3230, %v2119
      %v3285 = vadd.f32 %v3235, %v2119
      %v3286 = vadd.f32 %v3238, %v2119
      %v3287 = vadd.f32 %v3243, %v2119
      %v3288 = vadd.f32 %v3246, %v2119
      %v3289 = vadd.f32 %v3251, %v2119
      %v3290 = vadd.f32 %v3254, %v2119
      %v3291 = vadd.f32 %v3259, %v2119
      %v3292 = vadd.f32 %v3262, %v2119
      %v3293 = vadd.f32 %v3267, %v2119
      %v3294 = vadd.f32 %v3270, %v2119
      %v3295 = vadd.f32 %v3275, %v2119
      %v3296 = vadd.f32 %v3278, %v2119
      %v3297 = vpack.c.bf16 %v3282, %v3281
      %v3298 = vpack.c.bf16 %v3284, %v3283
      %v3299 = vpack.c.bf16 %v3286, %v3285
      %v3300 = vpack.c.bf16 %v3288, %v3287
      %v3301 = vpack.c.bf16 %v3290, %v3289
      %v3302 = vpack.c.bf16 %v3292, %v3291
      %v3303 = vpack.c.bf16 %v3294, %v3293
      %v3304 = vpack.c.bf16 %v3296, %v3295
      %v3313 = vunpack.c.l.b16 %v3297
      %v3314 = vunpack.c.h.b16 %v3297
      %v3315 = vunpack.c.l.b16 %v3298
      %v3316 = vunpack.c.h.b16 %v3298
      %v3317 = vunpack.c.l.b16 %v3299
      %v3318 = vunpack.c.h.b16 %v3299
      %v3319 = vunpack.c.l.b16 %v3300
      %v3320 = vunpack.c.h.b16 %v3300
      %v3321 = vunpack.c.l.b16 %v3301
      %v3322 = vunpack.c.h.b16 %v3301
      %v3323 = vunpack.c.l.b16 %v3302
      %v3324 = vunpack.c.h.b16 %v3302
      %v3325 = vunpack.c.l.b16 %v3303
      %v3326 = vunpack.c.h.b16 %v3303
      %v3327 = vunpack.c.l.b16 %v3304
      %v3328 = vunpack.c.h.b16 %v3304
      %v3329 = vpack.c.b16 %v3313, %v3313
      %v3330 = vpack.c.b16 %v3314, %v3314
      %v3331 = vpack.c.b16 %v3315, %v3315
      %v3332 = vpack.c.b16 %v3316, %v3316
      %v3333 = vpack.c.b16 %v3317, %v3317
      %v3334 = vpack.c.b16 %v3318, %v3318
      %v3335 = vpack.c.b16 %v3319, %v3319
      %v3336 = vpack.c.b16 %v3320, %v3320
      %v3337 = vpack.c.b16 %v3321, %v3321
      %v3338 = vpack.c.b16 %v3322, %v3322
      %v3339 = vpack.c.b16 %v3323, %v3323
      %v3340 = vpack.c.b16 %v3324, %v3324
      %v3341 = vpack.c.b16 %v3325, %v3325
      %v3342 = vpack.c.b16 %v3326, %v3326
      %v3343 = vpack.c.b16 %v3327, %v3327
      %v3344 = vpack.c.b16 %v3328, %v3328
      %s3361 = scalar_lea.vmem %s194, 16
      %3362 = vst [vmem:[%s3361] sm:$0xf] %v3329
      %3363 = vst [vmem:[%s3361 + $0x8] sm:$0xf] %v3330
      %3364 = vst [vmem:[%s3361 + $0x20] sm:$0xf] %v3331
      %3365 = vst [vmem:[%s3361 + $0x28] sm:$0xf] %v3332
      %3366 = vst [vmem:[%s3361 + $0x40] sm:$0xf] %v3333
      %3367 = vst [vmem:[%s3361 + $0x48] sm:$0xf] %v3334
      %3368 = vst [vmem:[%s3361 + $0x60] sm:$0xf] %v3335
      %3369 = vst [vmem:[%s3361 + $0x68] sm:$0xf] %v3336
      %3370 = vst [vmem:[%s3361 + $0x80] sm:$0xf] %v3337
      %3371 = vst [vmem:[%s3361 + $0x88] sm:$0xf] %v3338
      %3372 = vst [vmem:[%s3361 + $0xa0] sm:$0xf] %v3339
      %3373 = vst [vmem:[%s3361 + $0xa8] sm:$0xf] %v3340
      %3374 = vst [vmem:[%s3361 + $0xc0] sm:$0xf] %v3341
      %3375 = vst [vmem:[%s3361 + $0xc8] sm:$0xf] %v3342
      %3376 = vst [vmem:[%s3361 + $0xe0] sm:$0xf] %v3343
      %3377 = vst [vmem:[%s3361 + $0xe8] sm:$0xf] %v3344
      %v3378 = vld [vmem:[#allocation2 + $0x20] sm:$0xff]
      %v3379 = vld [vmem:[#allocation2 + $0x28] sm:$0xff]
      %v3380 = vld [vmem:[#allocation2 + $0x68] sm:$0xff]
      %v3381 = vld [vmem:[#allocation2 + $0x70] sm:$0xff]
      %v3382 = vld [vmem:[#allocation2 + $0xb0] sm:$0xff]
      %v3383 = vld [vmem:[#allocation2 + $0xb8] sm:$0xff]
      %v3384 = vld [vmem:[#allocation2 + $0xf8] sm:$0xff]
      %v3385 = vld [vmem:[#allocation2 + $0x100] sm:$0xff]
      %v3386 = vld [vmem:[#allocation2 + $0x140] sm:$0xff]
      %v3387 = vld [vmem:[#allocation2 + $0x148] sm:$0xff]
      %v3388 = vld [vmem:[#allocation2 + $0x188] sm:$0xff]
      %v3389 = vld [vmem:[#allocation2 + $0x190] sm:$0xff]
      %v3390 = vld [vmem:[#allocation2 + $0x1d0] sm:$0xff]
      %v3391 = vld [vmem:[#allocation2 + $0x1d8] sm:$0xff]
      %v3392 = vld [vmem:[#allocation2 + $0x218] sm:$0xff]
      %v3393 = vld [vmem:[#allocation2 + $0x220] sm:$0xff]
      %s3394 = scalar_lea.vmem %s1, 768
      %v3395 = vld [vmem:[%s3394] sm:$0xf]
      %v3396 = vld [vmem:[%s3394 + $0x4] sm:$0xf]
      %v3397 = vld [vmem:[%s3394 + $0x8] sm:$0xf]
      %v3398 = vld [vmem:[%s3394 + $0xc] sm:$0xf]
      %v3399 = vld [vmem:[%s3394 + $0x10] sm:$0xf]
      %v3400 = vld [vmem:[%s3394 + $0x14] sm:$0xf]
      %v3401 = vld [vmem:[%s3394 + $0x18] sm:$0xf]
      %v3402 = vld [vmem:[%s3394 + $0x1c] sm:$0xf]
      %v3403 = vld [vmem:[%s3394 + $0x20] sm:$0xf]
      %v3404 = vld [vmem:[%s3394 + $0x24] sm:$0xf]
      %v3405 = vld [vmem:[%s3394 + $0x28] sm:$0xf]
      %v3406 = vld [vmem:[%s3394 + $0x2c] sm:$0xf]
      %v3407 = vld [vmem:[%s3394 + $0x30] sm:$0xf]
      %v3408 = vld [vmem:[%s3394 + $0x34] sm:$0xf]
      %v3409 = vld [vmem:[%s3394 + $0x38] sm:$0xf]
      %v3410 = vld [vmem:[%s3394 + $0x3c] sm:$0xf]
      %v3411 = vld [vmem:[%s3394 + $0x40] sm:$0xf]
      %v3412 = vld [vmem:[%s3394 + $0x44] sm:$0xf]
      %v3413 = vld [vmem:[%s3394 + $0x48] sm:$0xf]
      %v3414 = vld [vmem:[%s3394 + $0x4c] sm:$0xf]
      %v3415 = vld [vmem:[%s3394 + $0x50] sm:$0xf]
      %v3416 = vld [vmem:[%s3394 + $0x54] sm:$0xf]
      %v3417 = vld [vmem:[%s3394 + $0x58] sm:$0xf]
      %v3418 = vld [vmem:[%s3394 + $0x5c] sm:$0xf]
      %v3419 = vld [vmem:[%s3394 + $0x60] sm:$0xf]
      %v3420 = vld [vmem:[%s3394 + $0x64] sm:$0xf]
      %v3421 = vld [vmem:[%s3394 + $0x68] sm:$0xf]
      %v3422 = vld [vmem:[%s3394 + $0x6c] sm:$0xf]
      %v3423 = vld [vmem:[%s3394 + $0x70] sm:$0xf]
      %v3424 = vld [vmem:[%s3394 + $0x74] sm:$0xf]
      %v3425 = vld [vmem:[%s3394 + $0x78] sm:$0xf]
      %v3426 = vld [vmem:[%s3394 + $0x7c] sm:$0xf]
      %v3427 = vld [vmem:[#allocation2 + $0x38] sm:$0xff]
      %v3428 = vld [vmem:[#allocation2 + $0x40] sm:$0xff]
      %v3429 = vld [vmem:[#allocation2 + $0x80] sm:$0xff]
      %v3430 = vld [vmem:[#allocation2 + $0x88] sm:$0xff]
      %v3431 = vld [vmem:[#allocation2 + $0xc8] sm:$0xff]
      %v3432 = vld [vmem:[#allocation2 + $0xd0] sm:$0xff]
      %v3433 = vld [vmem:[#allocation2 + $0x110] sm:$0xff]
      %v3434 = vld [vmem:[#allocation2 + $0x118] sm:$0xff]
      %v3435 = vld [vmem:[#allocation2 + $0x158] sm:$0xff]
      %v3436 = vld [vmem:[#allocation2 + $0x160] sm:$0xff]
      %v3437 = vld [vmem:[#allocation2 + $0x1a0] sm:$0xff]
      %v3438 = vld [vmem:[#allocation2 + $0x1a8] sm:$0xff]
      %v3439 = vld [vmem:[#allocation2 + $0x1e8] sm:$0xff]
      %v3440 = vld [vmem:[#allocation2 + $0x1f0] sm:$0xff]
      %v3441 = vld [vmem:[#allocation2 + $0x230] sm:$0xff]
      %v3442 = vld [vmem:[#allocation2 + $0x238] sm:$0xff]
      %s3443 = scalar_lea.vmem %s1, 896
      %v3444 = vld [vmem:[%s3443] sm:$0xf]
      %v3445 = vld [vmem:[%s3443 + $0x4] sm:$0xf]
      %v3446 = vld [vmem:[%s3443 + $0x8] sm:$0xf]
      %v3447 = vld [vmem:[%s3443 + $0xc] sm:$0xf]
      %v3448 = vld [vmem:[%s3443 + $0x10] sm:$0xf]
      %v3449 = vld [vmem:[%s3443 + $0x14] sm:$0xf]
      %v3450 = vld [vmem:[%s3443 + $0x18] sm:$0xf]
      %v3451 = vld [vmem:[%s3443 + $0x1c] sm:$0xf]
      %v3452 = vld [vmem:[%s3443 + $0x20] sm:$0xf]
      %v3453 = vld [vmem:[%s3443 + $0x24] sm:$0xf]
      %v3454 = vld [vmem:[%s3443 + $0x28] sm:$0xf]
      %v3455 = vld [vmem:[%s3443 + $0x2c] sm:$0xf]
      %v3456 = vld [vmem:[%s3443 + $0x30] sm:$0xf]
      %v3457 = vld [vmem:[%s3443 + $0x34] sm:$0xf]
      %v3458 = vld [vmem:[%s3443 + $0x38] sm:$0xf]
      %v3459 = vld [vmem:[%s3443 + $0x3c] sm:$0xf]
      %v3460 = vld [vmem:[%s3443 + $0x40] sm:$0xf]
      %v3461 = vld [vmem:[%s3443 + $0x44] sm:$0xf]
      %v3462 = vld [vmem:[%s3443 + $0x48] sm:$0xf]
      %v3463 = vld [vmem:[%s3443 + $0x4c] sm:$0xf]
      %v3464 = vld [vmem:[%s3443 + $0x50] sm:$0xf]
      %v3465 = vld [vmem:[%s3443 + $0x54] sm:$0xf]
      %v3466 = vld [vmem:[%s3443 + $0x58] sm:$0xf]
      %v3467 = vld [vmem:[%s3443 + $0x5c] sm:$0xf]
      %v3468 = vld [vmem:[%s3443 + $0x60] sm:$0xf]
      %v3469 = vld [vmem:[%s3443 + $0x64] sm:$0xf]
      %v3470 = vld [vmem:[%s3443 + $0x68] sm:$0xf]
      %v3471 = vld [vmem:[%s3443 + $0x6c] sm:$0xf]
      %v3472 = vld [vmem:[%s3443 + $0x70] sm:$0xf]
      %v3473 = vld [vmem:[%s3443 + $0x74] sm:$0xf]
      %v3474 = vld [vmem:[%s3443 + $0x78] sm:$0xf]
      %v3475 = vld [vmem:[%s3443 + $0x7c] sm:$0xf]
      %v3508 = vunpack.c.l.b16 %v3444
      %v3509 = vunpack.c.l.b16 %v3445
      %v3510 = vunpack.c.l.b16 %v3446
      %v3511 = vunpack.c.l.b16 %v3447
      %v3512 = vunpack.c.l.b16 %v3448
      %v3513 = vunpack.c.l.b16 %v3449
      %v3514 = vunpack.c.l.b16 %v3450
      %v3515 = vunpack.c.l.b16 %v3451
      %v3516 = vunpack.c.l.b16 %v3452
      %v3517 = vunpack.c.l.b16 %v3453
      %v3518 = vunpack.c.l.b16 %v3454
      %v3519 = vunpack.c.l.b16 %v3455
      %v3520 = vunpack.c.l.b16 %v3456
      %v3521 = vunpack.c.l.b16 %v3457
      %v3522 = vunpack.c.l.b16 %v3458
      %v3523 = vunpack.c.l.b16 %v3459
      %v3524 = vunpack.c.l.b16 %v3460
      %v3525 = vunpack.c.l.b16 %v3461
      %v3526 = vunpack.c.l.b16 %v3462
      %v3527 = vunpack.c.l.b16 %v3463
      %v3528 = vunpack.c.l.b16 %v3464
      %v3529 = vunpack.c.l.b16 %v3465
      %v3530 = vunpack.c.l.b16 %v3466
      %v3531 = vunpack.c.l.b16 %v3467
      %v3532 = vunpack.c.l.b16 %v3468
      %v3533 = vunpack.c.l.b16 %v3469
      %v3534 = vunpack.c.l.b16 %v3470
      %v3535 = vunpack.c.l.b16 %v3471
      %v3536 = vunpack.c.l.b16 %v3472
      %v3537 = vunpack.c.l.b16 %v3473
      %v3538 = vunpack.c.l.b16 %v3474
      %v3539 = vunpack.c.l.b16 %v3475
      %v3540 = vpack.c.b16 %v3509, %v3508
      %v3541 = vpack.c.b16 %v3511, %v3510
      %v3542 = vpack.c.b16 %v3513, %v3512
      %v3543 = vpack.c.b16 %v3515, %v3514
      %v3544 = vpack.c.b16 %v3517, %v3516
      %v3545 = vpack.c.b16 %v3519, %v3518
      %v3546 = vpack.c.b16 %v3521, %v3520
      %v3547 = vpack.c.b16 %v3523, %v3522
      %v3548 = vpack.c.b16 %v3525, %v3524
      %v3549 = vpack.c.b16 %v3527, %v3526
      %v3550 = vpack.c.b16 %v3529, %v3528
      %v3551 = vpack.c.b16 %v3531, %v3530
      %v3552 = vpack.c.b16 %v3533, %v3532
      %v3553 = vpack.c.b16 %v3535, %v3534
      %v3554 = vpack.c.b16 %v3537, %v3536
      %v3555 = vpack.c.b16 %v3539, %v3538
      %3572 = vmatprep.subr.bf16.mxu0 0
      %3573 = vmatpush1.bf16.msra.mxu0 %v3540
      %3574 = vmatprep.subr.bf16.mxu0 0
      %3575 = vmatpush1.bf16.msra.mxu0 %v3541
      %3576 = vmatprep.subr.bf16.mxu0 0
      %3577 = vmatpush1.bf16.msra.mxu0 %v3542
      %3578 = vmatprep.subr.bf16.mxu0 0
      %3579 = vmatpush1.bf16.msra.mxu0 %v3543
      %3580 = vmatprep.subr.bf16.mxu0 0
      %3581 = vmatpush1.bf16.msra.mxu0 %v3544
      %3582 = vmatprep.subr.bf16.mxu0 0
      %3583 = vmatpush1.bf16.msra.mxu0 %v3545
      %3584 = vmatprep.subr.bf16.mxu0 0
      %3585 = vmatpush1.bf16.msra.mxu0 %v3546
      %3586 = vmatprep.subr.bf16.mxu0 0
      %3587 = vmatpush1.bf16.msra.mxu0 %v3547
      %3588 = vmatprep.subr.bf16.mxu0 0
      %3589 = vmatpush1.bf16.msra.mxu0 %v3548
      %3590 = vmatprep.subr.bf16.mxu0 0
      %3591 = vmatpush1.bf16.msra.mxu0 %v3549
      %3592 = vmatprep.subr.bf16.mxu0 0
      %3593 = vmatpush1.bf16.msra.mxu0 %v3550
      %3594 = vmatprep.subr.bf16.mxu0 0
      %3595 = vmatpush1.bf16.msra.mxu0 %v3551
      %3596 = vmatprep.subr.bf16.mxu0 0
      %3597 = vmatpush1.bf16.msra.mxu0 %v3552
      %3598 = vmatprep.subr.bf16.mxu0 0
      %3599 = vmatpush1.bf16.msra.mxu0 %v3553
      %3600 = vmatprep.subr.bf16.mxu0 0
      %3601 = vmatpush1.bf16.msra.mxu0 %v3554
      %3602 = vmatprep.subr.bf16.mxu0 0
      %3603 = vmatpush1.bf16.msra.mxu0 %v3555
      %3604 = vmatprep.mubr.bf16.mxu0 %v3428
      %3605 = vmatmul.mubr.bf16.gmra.mrb[0].mxu0 %v3427
      %v3606 = vpop.f32.mrb[0].mxu0
      %v3607 = vadd.f32 0.0, %v3606
      %v3608 = vpop.f32.mrb[0].mxu0
      %v3609 = vpop.f32.mrb[0].mxu0
      %v3610 = vadd.f32 0.0, %v3609
      %v3611 = vpop.f32.mrb[0].mxu0
      %3612 = vmatprep.mubr.bf16.mxu0 %v3430
      %3613 = vmatmul.mubr.bf16.gmra.mrb[0].mxu0 %v3429
      %v3614 = vpop.f32.mrb[0].mxu0
      %v3615 = vadd.f32 0.0, %v3614
      %v3616 = vpop.f32.mrb[0].mxu0
      %v3617 = vpop.f32.mrb[0].mxu0
      %v3618 = vadd.f32 0.0, %v3617
      %v3619 = vpop.f32.mrb[0].mxu0
      %3620 = vmatprep.mubr.bf16.mxu0 %v3432
      %3621 = vmatmul.mubr.bf16.gmra.mrb[0].mxu0 %v3431
      %v3622 = vpop.f32.mrb[0].mxu0
      %v3623 = vadd.f32 0.0, %v3622
      %v3624 = vpop.f32.mrb[0].mxu0
      %v3625 = vpop.f32.mrb[0].mxu0
      %v3626 = vadd.f32 0.0, %v3625
      %v3627 = vpop.f32.mrb[0].mxu0
      %3628 = vmatprep.mubr.bf16.mxu0 %v3434
      %3629 = vmatmul.mubr.bf16.gmra.mrb[0].mxu0 %v3433
      %v3630 = vpop.f32.mrb[0].mxu0
      %v3631 = vadd.f32 0.0, %v3630
      %v3632 = vpop.f32.mrb[0].mxu0
      %v3633 = vpop.f32.mrb[0].mxu0
      %v3634 = vadd.f32 0.0, %v3633
      %v3635 = vpop.f32.mrb[0].mxu0
      %3636 = vmatprep.mubr.bf16.mxu0 %v3436
      %3637 = vmatmul.mubr.bf16.gmra.mrb[0].mxu0 %v3435
      %v3638 = vpop.f32.mrb[0].mxu0
      %v3639 = vadd.f32 0.0, %v3638
      %v3640 = vpop.f32.mrb[0].mxu0
      %v3641 = vpop.f32.mrb[0].mxu0
      %v3642 = vadd.f32 0.0, %v3641
      %v3643 = vpop.f32.mrb[0].mxu0
      %3644 = vmatprep.mubr.bf16.mxu0 %v3438
      %3645 = vmatmul.mubr.bf16.gmra.mrb[0].mxu0 %v3437
      %v3646 = vpop.f32.mrb[0].mxu0
      %v3647 = vadd.f32 0.0, %v3646
      %v3648 = vpop.f32.mrb[0].mxu0
      %v3649 = vpop.f32.mrb[0].mxu0
      %v3650 = vadd.f32 0.0, %v3649
      %v3651 = vpop.f32.mrb[0].mxu0
      %3652 = vmatprep.mubr.bf16.mxu0 %v3440
      %3653 = vmatmul.mubr.bf16.gmra.mrb[0].mxu0 %v3439
      %v3654 = vpop.f32.mrb[0].mxu0
      %v3655 = vadd.f32 0.0, %v3654
      %v3656 = vpop.f32.mrb[0].mxu0
      %v3657 = vpop.f32.mrb[0].mxu0
      %v3658 = vadd.f32 0.0, %v3657
      %v3659 = vpop.f32.mrb[0].mxu0
      %3660 = vmatprep.mubr.bf16.mxu0 %v3442
      %3661 = vmatmul.mubr.bf16.gmra.mrb[0].mxu0 %v3441
      %v3662 = vpop.f32.mrb[0].mxu0
      %v3663 = vadd.f32 0.0, %v3662
      %v3664 = vpop.f32.mrb[0].mxu0
      %v3665 = vpop.f32.mrb[0].mxu0
      %v3666 = vadd.f32 0.0, %v3665
      %v3667 = vpop.f32.mrb[0].mxu0
      %3668 = vdwg.mxu0
      %v3701 = vunpack.c.l.b16 %v3395
      %v3702 = vunpack.c.l.b16 %v3396
      %v3703 = vunpack.c.l.b16 %v3397
      %v3704 = vunpack.c.l.b16 %v3398
      %v3705 = vunpack.c.l.b16 %v3399
      %v3706 = vunpack.c.l.b16 %v3400
      %v3707 = vunpack.c.l.b16 %v3401
      %v3708 = vunpack.c.l.b16 %v3402
      %v3709 = vunpack.c.l.b16 %v3403
      %v3710 = vunpack.c.l.b16 %v3404
      %v3711 = vunpack.c.l.b16 %v3405
      %v3712 = vunpack.c.l.b16 %v3406
      %v3713 = vunpack.c.l.b16 %v3407
      %v3714 = vunpack.c.l.b16 %v3408
      %v3715 = vunpack.c.l.b16 %v3409
      %v3716 = vunpack.c.l.b16 %v3410
      %v3717 = vunpack.c.l.b16 %v3411
      %v3718 = vunpack.c.l.b16 %v3412
      %v3719 = vunpack.c.l.b16 %v3413
      %v3720 = vunpack.c.l.b16 %v3414
      %v3721 = vunpack.c.l.b16 %v3415
      %v3722 = vunpack.c.l.b16 %v3416
      %v3723 = vunpack.c.l.b16 %v3417
      %v3724 = vunpack.c.l.b16 %v3418
      %v3725 = vunpack.c.l.b16 %v3419
      %v3726 = vunpack.c.l.b16 %v3420
      %v3727 = vunpack.c.l.b16 %v3421
      %v3728 = vunpack.c.l.b16 %v3422
      %v3729 = vunpack.c.l.b16 %v3423
      %v3730 = vunpack.c.l.b16 %v3424
      %v3731 = vunpack.c.l.b16 %v3425
      %v3732 = vunpack.c.l.b16 %v3426
      %v3733 = vpack.c.b16 %v3702, %v3701
      %v3734 = vpack.c.b16 %v3704, %v3703
      %v3735 = vpack.c.b16 %v3706, %v3705
      %v3736 = vpack.c.b16 %v3708, %v3707
      %v3737 = vpack.c.b16 %v3710, %v3709
      %v3738 = vpack.c.b16 %v3712, %v3711
      %v3739 = vpack.c.b16 %v3714, %v3713
      %v3740 = vpack.c.b16 %v3716, %v3715
      %v3741 = vpack.c.b16 %v3718, %v3717
      %v3742 = vpack.c.b16 %v3720, %v3719
      %v3743 = vpack.c.b16 %v3722, %v3721
      %v3744 = vpack.c.b16 %v3724, %v3723
      %v3745 = vpack.c.b16 %v3726, %v3725
      %v3746 = vpack.c.b16 %v3728, %v3727
      %v3747 = vpack.c.b16 %v3730, %v3729
      %v3748 = vpack.c.b16 %v3732, %v3731
      %3765 = vmatprep.subr.bf16.mxu0 0
      %3766 = vmatpush1.bf16.msra.mxu0 %v3733
      %3767 = vmatprep.subr.bf16.mxu0 0
      %3768 = vmatpush1.bf16.msra.mxu0 %v3734
      %3769 = vmatprep.subr.bf16.mxu0 0
      %3770 = vmatpush1.bf16.msra.mxu0 %v3735
      %3771 = vmatprep.subr.bf16.mxu0 0
      %3772 = vmatpush1.bf16.msra.mxu0 %v3736
      %3773 = vmatprep.subr.bf16.mxu0 0
      %3774 = vmatpush1.bf16.msra.mxu0 %v3737
      %3775 = vmatprep.subr.bf16.mxu0 0
      %3776 = vmatpush1.bf16.msra.mxu0 %v3738
      %3777 = vmatprep.subr.bf16.mxu0 0
      %3778 = vmatpush1.bf16.msra.mxu0 %v3739
      %3779 = vmatprep.subr.bf16.mxu0 0
      %3780 = vmatpush1.bf16.msra.mxu0 %v3740
      %3781 = vmatprep.subr.bf16.mxu0 0
      %3782 = vmatpush1.bf16.msra.mxu0 %v3741
      %3783 = vmatprep.subr.bf16.mxu0 0
      %3784 = vmatpush1.bf16.msra.mxu0 %v3742
      %3785 = vmatprep.subr.bf16.mxu0 0
      %3786 = vmatpush1.bf16.msra.mxu0 %v3743
      %3787 = vmatprep.subr.bf16.mxu0 0
      %3788 = vmatpush1.bf16.msra.mxu0 %v3744
      %3789 = vmatprep.subr.bf16.mxu0 0
      %3790 = vmatpush1.bf16.msra.mxu0 %v3745
      %3791 = vmatprep.subr.bf16.mxu0 0
      %3792 = vmatpush1.bf16.msra.mxu0 %v3746
      %3793 = vmatprep.subr.bf16.mxu0 0
      %3794 = vmatpush1.bf16.msra.mxu0 %v3747
      %3795 = vmatprep.subr.bf16.mxu0 0
      %3796 = vmatpush1.bf16.msra.mxu0 %v3748
      %3797 = vmatprep.mubr.bf16.mxu0 %v3379
      %3798 = vmatmul.mubr.bf16.gmra.mrb[0].mxu0 %v3378
      %v3799 = vpop.f32.mrb[0].mxu0
      %v3800 = vadd.f32 %v3607, %v3799
      %v3801 = vpop.f32.mrb[0].mxu0
      %v3802 = vpop.f32.mrb[0].mxu0
      %v3803 = vadd.f32 %v3610, %v3802
      %v3804 = vpop.f32.mrb[0].mxu0
      %3805 = vmatprep.mubr.bf16.mxu0 %v3381
      %3806 = vmatmul.mubr.bf16.gmra.mrb[0].mxu0 %v3380
      %v3807 = vpop.f32.mrb[0].mxu0
      %v3808 = vadd.f32 %v3615, %v3807
      %v3809 = vpop.f32.mrb[0].mxu0
      %v3810 = vpop.f32.mrb[0].mxu0
      %v3811 = vadd.f32 %v3618, %v3810
      %v3812 = vpop.f32.mrb[0].mxu0
      %3813 = vmatprep.mubr.bf16.mxu0 %v3383
      %3814 = vmatmul.mubr.bf16.gmra.mrb[0].mxu0 %v3382
      %v3815 = vpop.f32.mrb[0].mxu0
      %v3816 = vadd.f32 %v3623, %v3815
      %v3817 = vpop.f32.mrb[0].mxu0
      %v3818 = vpop.f32.mrb[0].mxu0
      %v3819 = vadd.f32 %v3626, %v3818
      %v3820 = vpop.f32.mrb[0].mxu0
      %3821 = vmatprep.mubr.bf16.mxu0 %v3385
      %3822 = vmatmul.mubr.bf16.gmra.mrb[0].mxu0 %v3384
      %v3823 = vpop.f32.mrb[0].mxu0
      %v3824 = vadd.f32 %v3631, %v3823
      %v3825 = vpop.f32.mrb[0].mxu0
      %v3826 = vpop.f32.mrb[0].mxu0
      %v3827 = vadd.f32 %v3634, %v3826
      %v3828 = vpop.f32.mrb[0].mxu0
      %3829 = vmatprep.mubr.bf16.mxu0 %v3387
      %3830 = vmatmul.mubr.bf16.gmra.mrb[0].mxu0 %v3386
      %v3831 = vpop.f32.mrb[0].mxu0
      %v3832 = vadd.f32 %v3639, %v3831
      %v3833 = vpop.f32.mrb[0].mxu0
      %v3834 = vpop.f32.mrb[0].mxu0
      %v3835 = vadd.f32 %v3642, %v3834
      %v3836 = vpop.f32.mrb[0].mxu0
      %3837 = vmatprep.mubr.bf16.mxu0 %v3389
      %3838 = vmatmul.mubr.bf16.gmra.mrb[0].mxu0 %v3388
      %v3839 = vpop.f32.mrb[0].mxu0
      %v3840 = vadd.f32 %v3647, %v3839
      %v3841 = vpop.f32.mrb[0].mxu0
      %v3842 = vpop.f32.mrb[0].mxu0
      %v3843 = vadd.f32 %v3650, %v3842
      %v3844 = vpop.f32.mrb[0].mxu0
      %3845 = vmatprep.mubr.bf16.mxu0 %v3391
      %3846 = vmatmul.mubr.bf16.gmra.mrb[0].mxu0 %v3390
      %v3847 = vpop.f32.mrb[0].mxu0
      %v3848 = vadd.f32 %v3655, %v3847
      %v3849 = vpop.f32.mrb[0].mxu0
      %v3850 = vpop.f32.mrb[0].mxu0
      %v3851 = vadd.f32 %v3658, %v3850
      %v3852 = vpop.f32.mrb[0].mxu0
      %3853 = vmatprep.mubr.bf16.mxu0 %v3393
      %3854 = vmatmul.mubr.bf16.gmra.mrb[0].mxu0 %v3392
      %v3855 = vpop.f32.mrb[0].mxu0
      %v3856 = vadd.f32 %v3663, %v3855
      %v3857 = vpop.f32.mrb[0].mxu0
      %v3858 = vpop.f32.mrb[0].mxu0
      %v3859 = vadd.f32 %v3666, %v3858
      %v3860 = vpop.f32.mrb[0].mxu0
      %3861 = vdwg.mxu0
      %v3862 = vadd.f32 %v3800, %v2119
      %v3863 = vadd.f32 %v3803, %v2119
      %v3864 = vadd.f32 %v3808, %v2119
      %v3865 = vadd.f32 %v3811, %v2119
      %v3866 = vadd.f32 %v3816, %v2119
      %v3867 = vadd.f32 %v3819, %v2119
      %v3868 = vadd.f32 %v3824, %v2119
      %v3869 = vadd.f32 %v3827, %v2119
      %v3870 = vadd.f32 %v3832, %v2119
      %v3871 = vadd.f32 %v3835, %v2119
      %v3872 = vadd.f32 %v3840, %v2119
      %v3873 = vadd.f32 %v3843, %v2119
      %v3874 = vadd.f32 %v3848, %v2119
      %v3875 = vadd.f32 %v3851, %v2119
      %v3876 = vadd.f32 %v3856, %v2119
      %v3877 = vadd.f32 %v3859, %v2119
      %v3878 = vpack.c.bf16 %v3863, %v3862
      %v3879 = vpack.c.bf16 %v3865, %v3864
      %v3880 = vpack.c.bf16 %v3867, %v3866
      %v3881 = vpack.c.bf16 %v3869, %v3868
      %v3882 = vpack.c.bf16 %v3871, %v3870
      %v3883 = vpack.c.bf16 %v3873, %v3872
      %v3884 = vpack.c.bf16 %v3875, %v3874
      %v3885 = vpack.c.bf16 %v3877, %v3876
      %v3894 = vunpack.c.l.b16 %v3878
      %v3895 = vunpack.c.h.b16 %v3878
      %v3896 = vunpack.c.l.b16 %v3879
      %v3897 = vunpack.c.h.b16 %v3879
      %v3898 = vunpack.c.l.b16 %v3880
      %v3899 = vunpack.c.h.b16 %v3880
      %v3900 = vunpack.c.l.b16 %v3881
      %v3901 = vunpack.c.h.b16 %v3881
      %v3902 = vunpack.c.l.b16 %v3882
      %v3903 = vunpack.c.h.b16 %v3882
      %v3904 = vunpack.c.l.b16 %v3883
      %v3905 = vunpack.c.h.b16 %v3883
      %v3906 = vunpack.c.l.b16 %v3884
      %v3907 = vunpack.c.h.b16 %v3884
      %v3908 = vunpack.c.l.b16 %v3885
      %v3909 = vunpack.c.h.b16 %v3885
      %v3910 = vpack.c.b16 %v3894, %v3894
      %v3911 = vpack.c.b16 %v3895, %v3895
      %v3912 = vpack.c.b16 %v3896, %v3896
      %v3913 = vpack.c.b16 %v3897, %v3897
      %v3914 = vpack.c.b16 %v3898, %v3898
      %v3915 = vpack.c.b16 %v3899, %v3899
      %v3916 = vpack.c.b16 %v3900, %v3900
      %v3917 = vpack.c.b16 %v3901, %v3901
      %v3918 = vpack.c.b16 %v3902, %v3902
      %v3919 = vpack.c.b16 %v3903, %v3903
      %v3920 = vpack.c.b16 %v3904, %v3904
      %v3921 = vpack.c.b16 %v3905, %v3905
      %v3922 = vpack.c.b16 %v3906, %v3906
      %v3923 = vpack.c.b16 %v3907, %v3907
      %v3924 = vpack.c.b16 %v3908, %v3908
      %v3925 = vpack.c.b16 %v3909, %v3909
      %3942 = vst [vmem:[%s3361 + $0x4] sm:$0xf] %v3910
      %3943 = vst [vmem:[%s3361 + $0xc] sm:$0xf] %v3911
      %3944 = vst [vmem:[%s3361 + $0x24] sm:$0xf] %v3912
      %3945 = vst [vmem:[%s3361 + $0x2c] sm:$0xf] %v3913
      %3946 = vst [vmem:[%s3361 + $0x44] sm:$0xf] %v3914
      %3947 = vst [vmem:[%s3361 + $0x4c] sm:$0xf] %v3915
      %3948 = vst [vmem:[%s3361 + $0x64] sm:$0xf] %v3916
      %3949 = vst [vmem:[%s3361 + $0x6c] sm:$0xf] %v3917
      %3950 = vst [vmem:[%s3361 + $0x84] sm:$0xf] %v3918
      %3951 = vst [vmem:[%s3361 + $0x8c] sm:$0xf] %v3919
      %3952 = vst [vmem:[%s3361 + $0xa4] sm:$0xf] %v3920
      %3953 = vst [vmem:[%s3361 + $0xac] sm:$0xf] %v3921
      %3954 = vst [vmem:[%s3361 + $0xc4] sm:$0xf] %v3922
      %3955 = vst [vmem:[%s3361 + $0xcc] sm:$0xf] %v3923
      %3956 = vst [vmem:[%s3361 + $0xe4] sm:$0xf] %v3924
      %3957 = vst [vmem:[%s3361 + $0xec] sm:$0xf] %v3925
      %s3958 = smul.u32 8, %s19
      %p3959 = scmp.lt.s32.totalorder %s18, 1
      %s3960 = scalar_select %p3959, %s18, 1
      %p3961 = scmp.lt.s32.totalorder %s3958, 15
      %s3962 = scalar_select %p3961, %s3958, 15
      %s3963 = smul.addr %s3962, 8
      %s3964 = smul.addr %s3960, 128
      %s3965 = sadd.s32 %s3963, %s3964
      %s3966 = smul.addr %s3965, 4
      %s3967 = scalar_lea.vmem %s3, %s3966
      // Predicated region
      $region33: #{upsample_forward.1} parent=31 // pred_check
        %p3968 = pneg %p114
      $region34: #{upsample_forward.1} parent=31 // pred_check_branch
        %3970 = sbr.rel (%p3968) target = $region36
      $region35: #{upsample_forward.1} parent=31 // pred_region
        %s3971 = smul.u32 8, %s19
      $region36: #{upsample_forward.1} parent=31 // pred_fallthru
        _
    $region32: #{upsample_forward.1} parent=5 // pred_fallthru
      _
    %p3972 = scmp.le.s32.totalorder 2, %s9
    // Predicated region
    $region37: #{upsample_forward.1} parent=5 // pred_check
      %p3973 = pneg %p3972
    $region38: #{upsample_forward.1} parent=5 // pred_check_branch
      %3975 = sbr.rel (%p3973) target = $region40
    $region39: #{upsample_forward.1} parent=5 // pred_region
      %s3976 = ssub.s32 %s9, 2
      // Predicated region
      $region41: #{upsample_forward.1} parent=39 // pred_check
        %p3977 = pneg %p120
      $region42: #{upsample_forward.1} parent=39 // pred_check_branch
        %3979 = sbr.rel (%p3977) target = $region44
      $region43: #{upsample_forward.1} parent=39 // pred_region
        %s3980 = smul.u32 8, %s21
        %p3981 = scmp.lt.s32.totalorder %s20, 1
        %s3982 = scalar_select %p3981, %s20, 1
        %p3983 = scmp.lt.s32.totalorder %s3980, 15
        %s3984 = scalar_select %p3983, %s3980, 15
        %s3985 = smul.addr %s3984, 8
        %s3986 = smul.addr %s3982, 128
        %s3987 = sadd.s32 %s3985, %s3986
        %s3988 = smul.addr %s3987, 4
        %s3989 = scalar_lea.vmem %s3, %s3988
      $region44: #{upsample_forward.1} parent=39 // pred_fallthru
        _
    $region40: #{upsample_forward.1} parent=5 // pred_fallthru
      _
  $region6: #{upsample_forward.1} parent=0 // loop_footer
    %s13 = sadd.s32 1, %s9
  $region7: #{upsample_forward.1} parent=0 // loop_footer_branch
    %8 = sbr.rel target = $region3
  $region8: #{upsample_forward.1} parent=0 // loop_exit
    _

</llo_original>
